<compile_context>
chip_gen: v7x
topology: tpu7x:2x2x1
jax: 0.10.0
libtpu: 0.0.40
codegen_flags: <defaults>
</compile_context>

<pallas_src>
import jax
import jax.numpy as jnp
from jax import lax
from jax.experimental import pallas as pl
from jax.experimental.pallas import tpu as pltpu

BN_EPS = 1e-5


def _batchnorm(z):
    """z: (M, C). Per-channel batch-norm over M (biased variance, no affine)."""
    mean = jnp.mean(z, axis=0, keepdims=True)
    var = jnp.mean((z - mean) ** 2, axis=0, keepdims=True)
    return (z - mean) * lax.rsqrt(var + BN_EPS)


def _cell_kernel(x_ref, w9_ref, w1_ref, inv_ref, o_ref, pad_ref):
    N, H, W, C = x_ref.shape
    M = N * H * W

    x = x_ref[...].astype(jnp.float32)                      # (N, H, W, C)

    # Zero the padded scratch once; afterwards only its interior is written, so the
    # 1-pixel border stays zero for both the conv stage and the pool stage.
    pad_ref[...] = jnp.zeros(pad_ref.shape, jnp.float32)

    # ---- op_0: ReLUConvBN 3x3 (stride 1, pad 1, bias-free conv, batch-stat BN) ----
    pad_ref[:, 1:H + 1, 1:W + 1, :] = jnp.maximum(x, 0.0)
    taps = [pad_ref[:, kh:kh + H, kw:kw + W, :]             # 9 static slice loads
            for kh in range(3) for kw in range(3)]
    patches = jnp.concatenate(taps, axis=-1).reshape(M, 9 * C)   # im2col (M, 9C)
    z0 = jnp.dot(patches, w9_ref[...], preferred_element_type=jnp.float32)
    out0_flat = _batchnorm(z0)                              # (M, C)
    out0 = out0_flat.reshape(N, H, W, C)

    # ---- op_2: ReLUConvBN 1x1 applied to out_0 -------------------------------------
    z1 = jnp.dot(jnp.maximum(out0_flat, 0.0), w1_ref[...],
                 preferred_element_type=jnp.float32)
    out2 = _batchnorm(z1).reshape(N, H, W, C)

    # ---- op_5: AvgPool 3x3 on (out_1 + out_2) = (x + out_2), separable,
    #            stride 1, pad 1, count_include_pad=False ---------------------------
    pad_ref[:, 1:H + 1, 1:W + 1, :] = x + out2              # border still zero
    p = pad_ref[...]                                        # (N, H+2, W+2, C)
    hsum = p[:, :, 0:W, :] + p[:, :, 1:W + 1, :] + p[:, :, 2:W + 2, :]   # (N,H+2,W,C)
    tot = hsum[:, 0:H] + hsum[:, 1:H + 1] + hsum[:, 2:H + 2]             # (N,H,W,C)
    out5 = tot * inv_ref[...][None, :, :, None]             # multiply by 1/count

    # ---- y = out_3 + out_4 + out_5 = x + out_0 + out_5 -----------------------------
    o_ref[...] = (x + out0 + out5).astype(o_ref.dtype)


def pack_weights(w3, w1):
    """PyTorch conv weights -> kernel layout (done once, outside the hot path)."""
    C = w3.shape[0]
    w9 = jnp.transpose(w3, (2, 3, 1, 0)).reshape(9 * C, C)  # (kh,kw,Cin,Cout) -> (9C, C)
    w1m = jnp.transpose(w1[:, :, 0, 0], (1, 0))             # (Cin, Cout)
    return w9, w1m


def pool_inv_count(H, W):
    """Reciprocal of valid-element counts for 3x3/stride1/pad1, count_include_pad=False."""
    ih = jnp.arange(H)
    iw = jnp.arange(W)
    cnt_h = (jnp.minimum(ih + 1, H - 1) - jnp.maximum(ih - 1, 0) + 1).astype(jnp.float32)
    cnt_w = (jnp.minimum(iw + 1, W - 1) - jnp.maximum(iw - 1, 0) + 1).astype(jnp.float32)
    return 1.0 / (cnt_h[:, None] * cnt_w[None, :])           # (H, W)


def cell_skip_fcdag_nhwc(x_nhwc, w9, w1m, inv_cnt):
    """NHWC entry point with pre-packed weights / pool mask (preferred in production)."""
    N, H, W, C = x_nhwc.shape
    return pl.pallas_call(
        _cell_kernel,
        out_shape=jax.ShapeDtypeStruct((N, H, W, C), x_nhwc.dtype),
        grid=(1,),
        in_specs=[
            pl.BlockSpec((N, H, W, C), lambda i: (0, 0, 0, 0)),
            pl.BlockSpec((9 * C, C), lambda i: (0, 0)),
            pl.BlockSpec((C, C), lambda i: (0, 0)),
            pl.BlockSpec((H, W), lambda i: (0, 0)),
        ],
        out_specs=pl.BlockSpec((N, H, W, C), lambda i: (0, 0, 0, 0)),
        scratch_shapes=[pltpu.VMEM((N, H + 2, W + 2, C), jnp.float32)],
        compiler_params=pltpu.CompilerParams(
            dimension_semantics=("arbitrary",)),
    )(x_nhwc, w9, w1m, inv_cnt)


def cell_skip_fcdag(x_nchw, w3, w1):
    """PyTorch-compatible interface: x (N,C,H,W), w3 (C,C,3,3), w1 (C,C,1,1)."""
    x = jnp.transpose(x_nchw, (0, 2, 3, 1))                 # NCHW -> NHWC (boundary only)
    _, H, W, _ = x.shape
    w9, w1m = pack_weights(w3, w1)
    inv_cnt = pool_inv_count(H, W)
    y = cell_skip_fcdag_nhwc(x, w9, w1m, inv_cnt)
    return jnp.transpose(y, (0, 3, 1, 2))                   # back to NCHW


def _reference(x_nchw, w3, w1):
    """Pure-JAX reference (NHWC lax.conv + batch-stat BN + avg pool)."""
    x = jnp.transpose(x_nchw, (0, 2, 3, 1))

    def relu_conv_bn(inp, w, pad):
        r = jnp.maximum(inp, 0.0)
        wt = jnp.transpose(w, (2, 3, 1, 0))                 # HWIO
        z = lax.conv_general_dilated(r, wt, (1, 1), [(pad, pad), (pad, pad)],
                                     dimension_numbers=("NHWC", "HWIO", "NHWC"))
        mean = jnp.mean(z, axis=(0, 1, 2), keepdims=True)
        var = jnp.mean((z - mean) ** 2, axis=(0, 1, 2), keepdims=True)
        return (z - mean) / jnp.sqrt(var + BN_EPS)

    out0 = relu_conv_bn(x, w3, 1)
    out2 = relu_conv_bn(out0, w1, 0)
    s = x + out2
    pad = [(0, 0), (1, 1), (1, 1), (0, 0)]
    ssum = lax.reduce_window(s, 0.0, lax.add, (1, 3, 3, 1), (1, 1, 1, 1), pad)
    cnt = lax.reduce_window(jnp.ones_like(s), 0.0, lax.add, (1, 3, 3, 1),
                            (1, 1, 1, 1), pad)
    out5 = ssum / cnt
    return jnp.transpose(x + out0 + out5, (0, 3, 1, 2))


if __name__ == "__main__":
    key = jax.random.PRNGKey(0)
    kx, k3, k1 = jax.random.split(key, 3)
    N, C, H, W = 2, 4, 16, 16
    x = jax.random.normal(kx, (N, C, H, W), jnp.float32)
    w3 = 0.1 * jax.random.normal(k3, (C, C, 3, 3), jnp.float32)   # nor_conv_3x3 weight
    w1 = 0.1 * jax.random.normal(k1, (C, C, 1, 1), jnp.float32)   # nor_conv_1x1 weight

    y = cell_skip_fcdag(x, w3, w1)
    jax.block_until_ready(y)

    y_ref = _reference(x, w3, w1)
    assert y.shape == (N, C, H, W)
    assert jnp.allclose(y, y_ref, atol=2e-3, rtol=2e-3), float(jnp.max(jnp.abs(y - y_ref)))

    print("KERNEL_OK")
</pallas_src>

<mosaic_0001>
module attributes {stable_mosaic.version = 11 : i64} {
  func.func @_cell_kernel(%arg0: i32, %arg1: memref<2x16x16x4xf32, #tpu.memory_space<vmem>>, %arg2: memref<36x4xf32, #tpu.memory_space<vmem>>, %arg3: memref<4x4xf32, #tpu.memory_space<vmem>>, %arg4: memref<16x16xf32, #tpu.memory_space<vmem>>, %arg5: memref<2x16x16x4xf32, #tpu.memory_space<vmem>>, %arg6: memref<2x18x18x4xf32, #tpu.memory_space<vmem>>) attributes {dimension_semantics = [#tpu.dimension_semantics<arbitrary>], iteration_bounds = array<i64: 1>, scalar_prefetch = 0 : i64, scratch_operands = 1 : i64, tpu.core_type = #tpu.core_type<tc>, window_params = [{pipeline_mode = #tpu.pipeline_mode<synchronous>, transform_indices = @transform_0, window_bounds = array<i64: 2, 16, 16, 4>}, {pipeline_mode = #tpu.pipeline_mode<synchronous>, transform_indices = @transform_1, window_bounds = array<i64: 36, 4>}, {pipeline_mode = #tpu.pipeline_mode<synchronous>, transform_indices = @transform_2, window_bounds = array<i64: 4, 4>}, {pipeline_mode = #tpu.pipeline_mode<synchronous>, transform_indices = @transform_3, window_bounds = array<i64: 16, 16>}, {pipeline_mode = #tpu.pipeline_mode<synchronous>, transform_indices = @transform_4, window_bounds = array<i64: 2, 16, 16, 4>}]} {
    %c0 = arith.constant 0 : index
    %c0_0 = arith.constant 0 : index
    %c0_1 = arith.constant 0 : index
    %c0_2 = arith.constant 0 : index
    %0 = vector.load %arg1[%c0, %c0_0, %c0_1, %c0_2] : memref<2x16x16x4xf32, #tpu.memory_space<vmem>>, vector<2x16x16x4xf32>
    %cst = arith.constant 0.000000e+00 : f32
    %1 = vector.broadcast %cst : f32 to vector<2x18x18x4xf32>
    %c0_3 = arith.constant 0 : index
    %c0_4 = arith.constant 0 : index
    %c0_5 = arith.constant 0 : index
    %c0_6 = arith.constant 0 : index
    %2 = vector.load %arg6[%c0_3, %c0_4, %c0_5, %c0_6] : memref<2x18x18x4xf32, #tpu.memory_space<vmem>>, vector<2x18x18x4xf32>
    tpu.vector_store %arg6[%c0_3, %c0_4, %c0_5, %c0_6], %1 {strides = array<i32>} : memref<2x18x18x4xf32, #tpu.memory_space<vmem>>, vector<2x18x18x4xf32>,
    %cst_7 = arith.constant 0.000000e+00 : f32
    %3 = vector.broadcast %cst_7 : f32 to vector<2x16x16x4xf32>
    %4 = arith.maximumf %0, %3 : vector<2x16x16x4xf32>
    %c0_8 = arith.constant 0 : index
    %c1 = arith.constant 1 : index
    %c1_9 = arith.constant 1 : index
    %c0_10 = arith.constant 0 : index
    %5 = vector.load %arg6[%c0_8, %c1, %c1_9, %c0_10] : memref<2x18x18x4xf32, #tpu.memory_space<vmem>>, vector<2x16x16x4xf32>
    tpu.vector_store %arg6[%c0_8, %c1, %c1_9, %c0_10], %4 {strides = array<i32>} : memref<2x18x18x4xf32, #tpu.memory_space<vmem>>, vector<2x16x16x4xf32>,
    %c0_11 = arith.constant 0 : index
    %c0_12 = arith.constant 0 : index
    %c0_13 = arith.constant 0 : index
    %c0_14 = arith.constant 0 : index
    %6 = vector.load %arg6[%c0_11, %c0_12, %c0_13, %c0_14] : memref<2x18x18x4xf32, #tpu.memory_space<vmem>>, vector<2x16x16x4xf32>
    %c0_15 = arith.constant 0 : index
    %c0_16 = arith.constant 0 : index
    %c1_17 = arith.constant 1 : index
    %c0_18 = arith.constant 0 : index
    %7 = vector.load %arg6[%c0_15, %c0_16, %c1_17, %c0_18] : memref<2x18x18x4xf32, #tpu.memory_space<vmem>>, vector<2x16x16x4xf32>
    %c0_19 = arith.constant 0 : index
    %c0_20 = arith.constant 0 : index
    %c2 = arith.constant 2 : index
    %c0_21 = arith.constant 0 : index
    %8 = vector.load %arg6[%c0_19, %c0_20, %c2, %c0_21] : memref<2x18x18x4xf32, #tpu.memory_space<vmem>>, vector<2x16x16x4xf32>
    %c0_22 = arith.constant 0 : index
    %c1_23 = arith.constant 1 : index
    %c0_24 = arith.constant 0 : index
    %c0_25 = arith.constant 0 : index
    %9 = vector.load %arg6[%c0_22, %c1_23, %c0_24, %c0_25] : memref<2x18x18x4xf32, #tpu.memory_space<vmem>>, vector<2x16x16x4xf32>
    %c0_26 = arith.constant 0 : index
    %c1_27 = arith.constant 1 : index
    %c1_28 = arith.constant 1 : index
    %c0_29 = arith.constant 0 : index
    %10 = vector.load %arg6[%c0_26, %c1_27, %c1_28, %c0_29] : memref<2x18x18x4xf32, #tpu.memory_space<vmem>>, vector<2x16x16x4xf32>
    %c0_30 = arith.constant 0 : index
    %c1_31 = arith.constant 1 : index
    %c2_32 = arith.constant 2 : index
    %c0_33 = arith.constant 0 : index
    %11 = vector.load %arg6[%c0_30, %c1_31, %c2_32, %c0_33] : memref<2x18x18x4xf32, #tpu.memory_space<vmem>>, vector<2x16x16x4xf32>
    %c0_34 = arith.constant 0 : index
    %c2_35 = arith.constant 2 : index
    %c0_36 = arith.constant 0 : index
    %c0_37 = arith.constant 0 : index
    %12 = vector.load %arg6[%c0_34, %c2_35, %c0_36, %c0_37] : memref<2x18x18x4xf32, #tpu.memory_space<vmem>>, vector<2x16x16x4xf32>
    %c0_38 = arith.constant 0 : index
    %c2_39 = arith.constant 2 : index
    %c1_40 = arith.constant 1 : index
    %c0_41 = arith.constant 0 : index
    %13 = vector.load %arg6[%c0_38, %c2_39, %c1_40, %c0_41] : memref<2x18x18x4xf32, #tpu.memory_space<vmem>>, vector<2x16x16x4xf32>
    %c0_42 = arith.constant 0 : index
    %c2_43 = arith.constant 2 : index
    %c2_44 = arith.constant 2 : index
    %c0_45 = arith.constant 0 : index
    %14 = vector.load %arg6[%c0_42, %c2_43, %c2_44, %c0_45] : memref<2x18x18x4xf32, #tpu.memory_space<vmem>>, vector<2x16x16x4xf32>
    %15 = tpu.concatenate %6, %7, %8, %9, %10, %11, %12, %13, %14 in 3 : vector<2x16x16x4xf32>, vector<2x16x16x4xf32>, vector<2x16x16x4xf32>, vector<2x16x16x4xf32>, vector<2x16x16x4xf32>, vector<2x16x16x4xf32>, vector<2x16x16x4xf32>, vector<2x16x16x4xf32>, vector<2x16x16x4xf32> -> vector<2x16x16x36xf32>
    %16 = vector.shape_cast %15 : vector<2x16x16x36xf32> to vector<512x36xf32>
    %c0_46 = arith.constant 0 : index
    %c0_47 = arith.constant 0 : index
    %17 = vector.load %arg2[%c0_46, %c0_47] : memref<36x4xf32, #tpu.memory_space<vmem>>, vector<36x4xf32>
    %cst_48 = arith.constant dense<0.000000e+00> : vector<512x4xf32>
    %18 = tpu.matmul %16, %17, %cst_48 {dimension_numbers = #tpu.dot_dimension_numbers<[1], [0], [0], [1], [0, 0, 1, 1], [], []>} : vector<512x36xf32>, vector<36x4xf32>, vector<512x4xf32> -> vector<512x4xf32>
    %cst_49 = arith.constant dense<0.000000e+00> : vector<4xf32>
    %19 = vector.multi_reduction <add>, %18, %cst_49 [0] : vector<512x4xf32> to vector<4xf32>
    %20 = vector.shape_cast %19 : vector<4xf32> to vector<1x4xf32>
    %cst_50 = arith.constant 5.120000e+02 : f32
    %21 = vector.broadcast %cst_50 : f32 to vector<1x4xf32>
    %22 = arith.divf %20, %21 : vector<1x4xf32>
    %23 = vector.broadcast %22 : vector<1x4xf32> to vector<512x4xf32>
    %24 = arith.subf %18, %23 : vector<512x4xf32>
    %25 = arith.mulf %24, %24 : vector<512x4xf32>
    %cst_51 = arith.constant dense<0.000000e+00> : vector<4xf32>
    %26 = vector.multi_reduction <add>, %25, %cst_51 [0] : vector<512x4xf32> to vector<4xf32>
    %27 = vector.shape_cast %26 : vector<4xf32> to vector<1x4xf32>
    %cst_52 = arith.constant 5.120000e+02 : f32
    %28 = vector.broadcast %cst_52 : f32 to vector<1x4xf32>
    %29 = arith.divf %27, %28 : vector<1x4xf32>
    %30 = vector.broadcast %22 : vector<1x4xf32> to vector<512x4xf32>
    %31 = arith.subf %18, %30 : vector<512x4xf32>
    %cst_53 = arith.constant 9.99999974E-6 : f32
    %32 = vector.broadcast %cst_53 : f32 to vector<1x4xf32>
    %33 = arith.addf %29, %32 : vector<1x4xf32>
    %34 = math.rsqrt %33 : vector<1x4xf32>
    %35 = vector.broadcast %34 : vector<1x4xf32> to vector<512x4xf32>
    %36 = arith.mulf %31, %35 : vector<512x4xf32>
    %37 = vector.shape_cast %36 : vector<512x4xf32> to vector<2x16x16x4xf32>
    %cst_54 = arith.constant 0.000000e+00 : f32
    %38 = vector.broadcast %cst_54 : f32 to vector<512x4xf32>
    %39 = arith.maximumf %36, %38 : vector<512x4xf32>
    %c0_55 = arith.constant 0 : index
    %c0_56 = arith.constant 0 : index
    %40 = vector.load %arg3[%c0_55, %c0_56] : memref<4x4xf32, #tpu.memory_space<vmem>>, vector<4x4xf32>
    %cst_57 = arith.constant dense<0.000000e+00> : vector<512x4xf32>
    %41 = tpu.matmul %39, %40, %cst_57 {dimension_numbers = #tpu.dot_dimension_numbers<[1], [0], [0], [1], [0, 0, 1, 1], [], []>} : vector<512x4xf32>, vector<4x4xf32>, vector<512x4xf32> -> vector<512x4xf32>
    %cst_58 = arith.constant dense<0.000000e+00> : vector<4xf32>
    %42 = vector.multi_reduction <add>, %41, %cst_58 [0] : vector<512x4xf32> to vector<4xf32>
    %43 = vector.shape_cast %42 : vector<4xf32> to vector<1x4xf32>
    %cst_59 = arith.constant 5.120000e+02 : f32
    %44 = vector.broadcast %cst_59 : f32 to vector<1x4xf32>
    %45 = arith.divf %43, %44 : vector<1x4xf32>
    %46 = vector.broadcast %45 : vector<1x4xf32> to vector<512x4xf32>
    %47 = arith.subf %41, %46 : vector<512x4xf32>
    %48 = arith.mulf %47, %47 : vector<512x4xf32>
    %cst_60 = arith.constant dense<0.000000e+00> : vector<4xf32>
    %49 = vector.multi_reduction <add>, %48, %cst_60 [0] : vector<512x4xf32> to vector<4xf32>
    %50 = vector.shape_cast %49 : vector<4xf32> to vector<1x4xf32>
    %cst_61 = arith.constant 5.120000e+02 : f32
    %51 = vector.broadcast %cst_61 : f32 to vector<1x4xf32>
    %52 = arith.divf %50, %51 : vector<1x4xf32>
    %53 = vector.broadcast %45 : vector<1x4xf32> to vector<512x4xf32>
    %54 = arith.subf %41, %53 : vector<512x4xf32>
    %cst_62 = arith.constant 9.99999974E-6 : f32
    %55 = vector.broadcast %cst_62 : f32 to vector<1x4xf32>
    %56 = arith.addf %52, %55 : vector<1x4xf32>
    %57 = math.rsqrt %56 : vector<1x4xf32>
    %58 = vector.broadcast %57 : vector<1x4xf32> to vector<512x4xf32>
    %59 = arith.mulf %54, %58 : vector<512x4xf32>
    %60 = vector.shape_cast %59 : vector<512x4xf32> to vector<2x16x16x4xf32>
    %61 = arith.addf %0, %60 : vector<2x16x16x4xf32>
    %c0_63 = arith.constant 0 : index
    %c1_64 = arith.constant 1 : index
    %c1_65 = arith.constant 1 : index
    %c0_66 = arith.constant 0 : index
    %62 = vector.load %arg6[%c0_63, %c1_64, %c1_65, %c0_66] : memref<2x18x18x4xf32, #tpu.memory_space<vmem>>, vector<2x16x16x4xf32>
    tpu.vector_store %arg6[%c0_63, %c1_64, %c1_65, %c0_66], %61 {strides = array<i32>} : memref<2x18x18x4xf32, #tpu.memory_space<vmem>>, vector<2x16x16x4xf32>,
    %c0_67 = arith.constant 0 : index
    %c0_68 = arith.constant 0 : index
    %c0_69 = arith.constant 0 : index
    %c0_70 = arith.constant 0 : index
    %63 = vector.load %arg6[%c0_67, %c0_68, %c0_69, %c0_70] : memref<2x18x18x4xf32, #tpu.memory_space<vmem>>, vector<2x18x18x4xf32>
    %64 = vector.extract_strided_slice %63 {offsets = [0, 0, 0, 0], sizes = [2, 18, 16, 4], strides = [1, 1, 1, 1]} : vector<2x18x18x4xf32> to vector<2x18x16x4xf32>
    %65 = vector.extract_strided_slice %63 {offsets = [0, 0, 1, 0], sizes = [2, 18, 16, 4], strides = [1, 1, 1, 1]} : vector<2x18x18x4xf32> to vector<2x18x16x4xf32>
    %66 = arith.addf %64, %65 : vector<2x18x16x4xf32>
    %67 = vector.extract_strided_slice %63 {offsets = [0, 0, 2, 0], sizes = [2, 18, 16, 4], strides = [1, 1, 1, 1]} : vector<2x18x18x4xf32> to vector<2x18x16x4xf32>
    %68 = arith.addf %66, %67 : vector<2x18x16x4xf32>
    %69 = vector.extract_strided_slice %68 {offsets = [0, 0, 0, 0], sizes = [2, 16, 16, 4], strides = [1, 1, 1, 1]} : vector<2x18x16x4xf32> to vector<2x16x16x4xf32>
    %70 = vector.extract_strided_slice %68 {offsets = [0, 1, 0, 0], sizes = [2, 16, 16, 4], strides = [1, 1, 1, 1]} : vector<2x18x16x4xf32> to vector<2x16x16x4xf32>
    %71 = arith.addf %69, %70 : vector<2x16x16x4xf32>
    %72 = vector.extract_strided_slice %68 {offsets = [0, 2, 0, 0], sizes = [2, 16, 16, 4], strides = [1, 1, 1, 1]} : vector<2x18x16x4xf32> to vector<2x16x16x4xf32>
    %73 = arith.addf %71, %72 : vector<2x16x16x4xf32>
    %c0_71 = arith.constant 0 : index
    %c0_72 = arith.constant 0 : index
    %74 = vector.load %arg4[%c0_71, %c0_72] : memref<16x16xf32, #tpu.memory_space<vmem>>, vector<16x16xf32>
    %75 = vector.shape_cast %74 : vector<16x16xf32> to vector<1x16x16x1xf32>
    %76 = vector.broadcast %75 : vector<1x16x16x1xf32> to vector<2x16x16x4xf32>
    %77 = arith.mulf %73, %76 : vector<2x16x16x4xf32>
    %78 = arith.addf %0, %37 : vector<2x16x16x4xf32>
    %79 = arith.addf %78, %77 : vector<2x16x16x4xf32>
    %c0_73 = arith.constant 0 : index
    %c0_74 = arith.constant 0 : index
    %c0_75 = arith.constant 0 : index
    %c0_76 = arith.constant 0 : index
    %80 = vector.load %arg5[%c0_73, %c0_74, %c0_75, %c0_76] : memref<2x16x16x4xf32, #tpu.memory_space<vmem>>, vector<2x16x16x4xf32>
    tpu.vector_store %arg5[%c0_73, %c0_74, %c0_75, %c0_76], %79 {strides = array<i32>} : memref<2x16x16x4xf32, #tpu.memory_space<vmem>>, vector<2x16x16x4xf32>,
    return
  }
  func.func @transform_0(%arg0: i32) -> (i32, i32, i32, i32) {
    %c0_i32 = arith.constant 0 : i32
    %c0_i32_0 = arith.constant 0 : i32
    %c0_i32_1 = arith.constant 0 : i32
    %c0_i32_2 = arith.constant 0 : i32
    %c0_i32_3 = arith.constant 0 : i32
    return %c0_i32, %c0_i32_0, %c0_i32_1, %c0_i32_2 : i32, i32, i32, i32
  }
  func.func @transform_1(%arg0: i32) -> (i32, i32) {
    %c0_i32 = arith.constant 0 : i32
    %c0_i32_0 = arith.constant 0 : i32
    %c0_i32_1 = arith.constant 0 : i32
    return %c0_i32, %c0_i32_0 : i32, i32
  }
  func.func @transform_2(%arg0: i32) -> (i32, i32) {
    %c0_i32 = arith.constant 0 : i32
    %c0_i32_0 = arith.constant 0 : i32
    %c0_i32_1 = arith.constant 0 : i32
    return %c0_i32, %c0_i32_0 : i32, i32
  }
  func.func @transform_3(%arg0: i32) -> (i32, i32) {
    %c0_i32 = arith.constant 0 : i32
    %c0_i32_0 = arith.constant 0 : i32
    %c0_i32_1 = arith.constant 0 : i32
    return %c0_i32, %c0_i32_0 : i32, i32
  }
  func.func @transform_4(%arg0: i32) -> (i32, i32, i32, i32) {
    %c0_i32 = arith.constant 0 : i32
    %c0_i32_0 = arith.constant 0 : i32
    %c0_i32_1 = arith.constant 0 : i32
    %c0_i32_2 = arith.constant 0 : i32
    %c0_i32_3 = arith.constant 0 : i32
    return %c0_i32, %c0_i32_0, %c0_i32_1, %c0_i32_2 : i32, i32, i32, i32
  }
}

</mosaic_0001>

<llo_original>
// kernel: tpu_custom_call.1
$region0: #{tpu_custom_call.1}
  #allocation0 [shape = 'u32[]', space=smem, size = 0x4, offset = 0x4, fixed_abs, tag = 'smem constant byte address 0x4 - core index']
  #allocation1 [shape = 'u32[144,128]{1,0:T(1,128)}', space=vmem, size = 0x12000, scoped, tag = 'internal scratch']
  #allocation2 [shape = 'f32[2,18,18,4]{3,2,1,0:T(8,128)}', space=vmem, size = 0x6c000, scoped, tag = 'scratch operand']
  %s0 = inlined_call_operand.vmem [shape: f32[2,16,16,4], index: 0, kind: input, shape index: {}]
  %s1 = inlined_call_operand.vmem [shape: f32[36,4], index: 1, kind: input, shape index: {}]
  %s2 = inlined_call_operand.vmem [shape: f32[4,4], index: 2, kind: input, shape index: {}]
  %s3 = inlined_call_operand.vmem [shape: f32[16,16], index: 3, kind: input, shape index: {}]
  %s4 = inlined_call_operand.vmem [shape: f32[2,16,16,4], index: 4, kind: output, shape index: {}]
  %s5 = sld [smem:[#allocation0]]
  $region26: #{tpu_custom_call.1} parent=0
    _
  %s7 = ssub.s32 1, %s5
  %s8 = scalar_select 0, %s7, %s5
  // Predicated region
  $region2: #{tpu_custom_call.1} parent=0 // pred_check
    _
  $region3: #{tpu_custom_call.1} parent=0 // pred_check_branch
    %10 = sbr.rel (0) target = $region5
  $region4: #{tpu_custom_call.1} parent=0 // pred_region
    _
  $region5: #{tpu_custom_call.1} parent=0 // pred_fallthru
    _
  // Predicated region
  $region6: #{tpu_custom_call.1} parent=0 // pred_check
    _
  $region7: #{tpu_custom_call.1} parent=0 // pred_check_branch
    %12 = sbr.rel (0) target = $region9
  $region8: #{tpu_custom_call.1} parent=0 // pred_region
    _
  $region9: #{tpu_custom_call.1} parent=0 // pred_fallthru
    _
  // Predicated region
  $region10: #{tpu_custom_call.1} parent=0 // pred_check
    _
  $region11: #{tpu_custom_call.1} parent=0 // pred_check_branch
    %14 = sbr.rel (0) target = $region13
  $region12: #{tpu_custom_call.1} parent=0 // pred_region
    _
  $region13: #{tpu_custom_call.1} parent=0 // pred_fallthru
    _
  // Predicated region
  $region14: #{tpu_custom_call.1} parent=0 // pred_check
    _
  $region15: #{tpu_custom_call.1} parent=0 // pred_check_branch
    %16 = sbr.rel (0) target = $region17
  $region16: #{tpu_custom_call.1} parent=0 // pred_region
    _
  $region17: #{tpu_custom_call.1} parent=0 // pred_fallthru
    _
  %v17 = vld [vmem:[%s0] sm:$0xff]
  %v18 = vld [vmem:[%s0 + $0x8] sm:$0xff]
  %v19 = vld [vmem:[%s0 + $0x10] sm:$0xff]
  %v20 = vld [vmem:[%s0 + $0x18] sm:$0xff]
  %v21 = vld [vmem:[%s0 + $0x20] sm:$0xff]
  %v22 = vld [vmem:[%s0 + $0x28] sm:$0xff]
  %v23 = vld [vmem:[%s0 + $0x30] sm:$0xff]
  %v24 = vld [vmem:[%s0 + $0x38] sm:$0xff]
  %v25 = vld [vmem:[%s0 + $0x40] sm:$0xff]
  %v26 = vld [vmem:[%s0 + $0x48] sm:$0xff]
  %v27 = vld [vmem:[%s0 + $0x50] sm:$0xff]
  %v28 = vld [vmem:[%s0 + $0x58] sm:$0xff]
  %v29 = vld [vmem:[%s0 + $0x60] sm:$0xff]
  %v30 = vld [vmem:[%s0 + $0x68] sm:$0xff]
  %v31 = vld [vmem:[%s0 + $0x70] sm:$0xff]
  %v32 = vld [vmem:[%s0 + $0x78] sm:$0xff]
  %v33 = vld [vmem:[%s0 + $0x80] sm:$0xff]
  %v34 = vld [vmem:[%s0 + $0x88] sm:$0xff]
  %v35 = vld [vmem:[%s0 + $0x90] sm:$0xff]
  %v36 = vld [vmem:[%s0 + $0x98] sm:$0xff]
  %v37 = vld [vmem:[%s0 + $0xa0] sm:$0xff]
  %v38 = vld [vmem:[%s0 + $0xa8] sm:$0xff]
  %v39 = vld [vmem:[%s0 + $0xb0] sm:$0xff]
  %v40 = vld [vmem:[%s0 + $0xb8] sm:$0xff]
  %v41 = vld [vmem:[%s0 + $0xc0] sm:$0xff]
  %v42 = vld [vmem:[%s0 + $0xc8] sm:$0xff]
  %v43 = vld [vmem:[%s0 + $0xd0] sm:$0xff]
  %v44 = vld [vmem:[%s0 + $0xd8] sm:$0xff]
  %v45 = vld [vmem:[%s0 + $0xe0] sm:$0xff]
  %v46 = vld [vmem:[%s0 + $0xe8] sm:$0xff]
  %v47 = vld [vmem:[%s0 + $0xf0] sm:$0xff]
  %v48 = vld [vmem:[%s0 + $0xf8] sm:$0xff]
  %v49 = vld [vmem:[%s0 + $0x100] sm:$0xff]
  %v50 = vld [vmem:[%s0 + $0x108] sm:$0xff]
  %v51 = vld [vmem:[%s0 + $0x110] sm:$0xff]
  %v52 = vld [vmem:[%s0 + $0x118] sm:$0xff]
  %v53 = vld [vmem:[%s0 + $0x120] sm:$0xff]
  %v54 = vld [vmem:[%s0 + $0x128] sm:$0xff]
  %v55 = vld [vmem:[%s0 + $0x130] sm:$0xff]
  %v56 = vld [vmem:[%s0 + $0x138] sm:$0xff]
  %v57 = vld [vmem:[%s0 + $0x140] sm:$0xff]
  %v58 = vld [vmem:[%s0 + $0x148] sm:$0xff]
  %v59 = vld [vmem:[%s0 + $0x150] sm:$0xff]
  %v60 = vld [vmem:[%s0 + $0x158] sm:$0xff]
  %v61 = vld [vmem:[%s0 + $0x160] sm:$0xff]
  %v62 = vld [vmem:[%s0 + $0x168] sm:$0xff]
  %v63 = vld [vmem:[%s0 + $0x170] sm:$0xff]
  %v64 = vld [vmem:[%s0 + $0x178] sm:$0xff]
  %v65 = vld [vmem:[%s0 + $0x180] sm:$0xff]
  %v66 = vld [vmem:[%s0 + $0x188] sm:$0xff]
  %v67 = vld [vmem:[%s0 + $0x190] sm:$0xff]
  %v68 = vld [vmem:[%s0 + $0x198] sm:$0xff]
  %v69 = vld [vmem:[%s0 + $0x1a0] sm:$0xff]
  %v70 = vld [vmem:[%s0 + $0x1a8] sm:$0xff]
  %v71 = vld [vmem:[%s0 + $0x1b0] sm:$0xff]
  %v72 = vld [vmem:[%s0 + $0x1b8] sm:$0xff]
  %v73 = vld [vmem:[%s0 + $0x1c0] sm:$0xff]
  %v74 = vld [vmem:[%s0 + $0x1c8] sm:$0xff]
  %v75 = vld [vmem:[%s0 + $0x1d0] sm:$0xff]
  %v76 = vld [vmem:[%s0 + $0x1d8] sm:$0xff]
  %v77 = vld [vmem:[%s0 + $0x1e0] sm:$0xff]
  %v78 = vld [vmem:[%s0 + $0x1e8] sm:$0xff]
  %v79 = vld [vmem:[%s0 + $0x1f0] sm:$0xff]
  %v80 = vld [vmem:[%s0 + $0x1f8] sm:$0xff]
  %vm81 = vcmask 31744
  %82 = vst.msk [vmem:[#allocation2] sm:$0xff] %vm81, 0.0
  %83 = vst.msk [vmem:[#allocation2 + $0x8] sm:$0xff] %vm81, 0.0
  %vm84 = vcmask 25600
  %85 = vst.msk [vmem:[#allocation2 + $0x10] sm:$0x3] %vm84, 0.0
  %86 = vst.msk [vmem:[#allocation2 + $0x18] sm:$0xff] %vm81, 0.0
  %87 = vst.msk [vmem:[#allocation2 + $0x20] sm:$0xff] %vm81, 0.0
  %88 = vst.msk [vmem:[#allocation2 + $0x28] sm:$0x3] %vm84, 0.0
  %89 = vst.msk [vmem:[#allocation2 + $0x30] sm:$0xff] %vm81, 0.0
  %90 = vst.msk [vmem:[#allocation2 + $0x38] sm:$0xff] %vm81, 0.0
  %91 = vst.msk [vmem:[#allocation2 + $0x40] sm:$0x3] %vm84, 0.0
  %92 = vst.msk [vmem:[#allocation2 + $0x48] sm:$0xff] %vm81, 0.0
  %93 = vst.msk [vmem:[#allocation2 + $0x50] sm:$0xff] %vm81, 0.0
  %94 = vst.msk [vmem:[#allocation2 + $0x58] sm:$0x3] %vm84, 0.0
  %95 = vst.msk [vmem:[#allocation2 + $0x60] sm:$0xff] %vm81, 0.0
  %96 = vst.msk [vmem:[#allocation2 + $0x68] sm:$0xff] %vm81, 0.0
  %97 = vst.msk [vmem:[#allocation2 + $0x70] sm:$0x3] %vm84, 0.0
  %98 = vst.msk [vmem:[#allocation2 + $0x78] sm:$0xff] %vm81, 0.0
  %99 = vst.msk [vmem:[#allocation2 + $0x80] sm:$0xff] %vm81, 0.0
  %100 = vst.msk [vmem:[#allocation2 + $0x88] sm:$0x3] %vm84, 0.0
  %101 = vst.msk [vmem:[#allocation2 + $0x90] sm:$0xff] %vm81, 0.0
  %102 = vst.msk [vmem:[#allocation2 + $0x98] sm:$0xff] %vm81, 0.0
  %103 = vst.msk [vmem:[#allocation2 + $0xa0] sm:$0x3] %vm84, 0.0
  %104 = vst.msk [vmem:[#allocation2 + $0xa8] sm:$0xff] %vm81, 0.0
  %105 = vst.msk [vmem:[#allocation2 + $0xb0] sm:$0xff] %vm81, 0.0
  %106 = vst.msk [vmem:[#allocation2 + $0xb8] sm:$0x3] %vm84, 0.0
  %107 = vst.msk [vmem:[#allocation2 + $0xc0] sm:$0xff] %vm81, 0.0
  %108 = vst.msk [vmem:[#allocation2 + $0xc8] sm:$0xff] %vm81, 0.0
  %109 = vst.msk [vmem:[#allocation2 + $0xd0] sm:$0x3] %vm84, 0.0
  %110 = vst.msk [vmem:[#allocation2 + $0xd8] sm:$0xff] %vm81, 0.0
  %111 = vst.msk [vmem:[#allocation2 + $0xe0] sm:$0xff] %vm81, 0.0
  %112 = vst.msk [vmem:[#allocation2 + $0xe8] sm:$0x3] %vm84, 0.0
  %113 = vst.msk [vmem:[#allocation2 + $0xf0] sm:$0xff] %vm81, 0.0
  %114 = vst.msk [vmem:[#allocation2 + $0xf8] sm:$0xff] %vm81, 0.0
  %115 = vst.msk [vmem:[#allocation2 + $0x100] sm:$0x3] %vm84, 0.0
  %116 = vst.msk [vmem:[#allocation2 + $0x108] sm:$0xff] %vm81, 0.0
  %117 = vst.msk [vmem:[#allocation2 + $0x110] sm:$0xff] %vm81, 0.0
  %118 = vst.msk [vmem:[#allocation2 + $0x118] sm:$0x3] %vm84, 0.0
  %119 = vst.msk [vmem:[#allocation2 + $0x120] sm:$0xff] %vm81, 0.0
  %120 = vst.msk [vmem:[#allocation2 + $0x128] sm:$0xff] %vm81, 0.0
  %121 = vst.msk [vmem:[#allocation2 + $0x130] sm:$0x3] %vm84, 0.0
  %122 = vst.msk [vmem:[#allocation2 + $0x138] sm:$0xff] %vm81, 0.0
  %123 = vst.msk [vmem:[#allocation2 + $0x140] sm:$0xff] %vm81, 0.0
  %124 = vst.msk [vmem:[#allocation2 + $0x148] sm:$0x3] %vm84, 0.0
  %125 = vst.msk [vmem:[#allocation2 + $0x150] sm:$0xff] %vm81, 0.0
  %126 = vst.msk [vmem:[#allocation2 + $0x158] sm:$0xff] %vm81, 0.0
  %127 = vst.msk [vmem:[#allocation2 + $0x160] sm:$0x3] %vm84, 0.0
  %128 = vst.msk [vmem:[#allocation2 + $0x168] sm:$0xff] %vm81, 0.0
  %129 = vst.msk [vmem:[#allocation2 + $0x170] sm:$0xff] %vm81, 0.0
  %130 = vst.msk [vmem:[#allocation2 + $0x178] sm:$0x3] %vm84, 0.0
  %131 = vst.msk [vmem:[#allocation2 + $0x180] sm:$0xff] %vm81, 0.0
  %132 = vst.msk [vmem:[#allocation2 + $0x188] sm:$0xff] %vm81, 0.0
  %133 = vst.msk [vmem:[#allocation2 + $0x190] sm:$0x3] %vm84, 0.0
  %134 = vst.msk [vmem:[#allocation2 + $0x198] sm:$0xff] %vm81, 0.0
  %135 = vst.msk [vmem:[#allocation2 + $0x1a0] sm:$0xff] %vm81, 0.0
  %136 = vst.msk [vmem:[#allocation2 + $0x1a8] sm:$0x3] %vm84, 0.0
  %137 = vst.msk [vmem:[#allocation2 + $0x1b0] sm:$0xff] %vm81, 0.0
  %138 = vst.msk [vmem:[#allocation2 + $0x1b8] sm:$0xff] %vm81, 0.0
  %139 = vst.msk [vmem:[#allocation2 + $0x1c0] sm:$0x3] %vm84, 0.0
  %140 = vst.msk [vmem:[#allocation2 + $0x1c8] sm:$0xff] %vm81, 0.0
  %141 = vst.msk [vmem:[#allocation2 + $0x1d0] sm:$0xff] %vm81, 0.0
  %142 = vst.msk [vmem:[#allocation2 + $0x1d8] sm:$0x3] %vm84, 0.0
  %143 = vst.msk [vmem:[#allocation2 + $0x1e0] sm:$0xff] %vm81, 0.0
  %144 = vst.msk [vmem:[#allocation2 + $0x1e8] sm:$0xff] %vm81, 0.0
  %145 = vst.msk [vmem:[#allocation2 + $0x1f0] sm:$0x3] %vm84, 0.0
  %146 = vst.msk [vmem:[#allocation2 + $0x1f8] sm:$0xff] %vm81, 0.0
  %147 = vst.msk [vmem:[#allocation2 + $0x200] sm:$0xff] %vm81, 0.0
  %148 = vst.msk [vmem:[#allocation2 + $0x208] sm:$0x3] %vm84, 0.0
  %149 = vst.msk [vmem:[#allocation2 + $0x210] sm:$0xff] %vm81, 0.0
  %150 = vst.msk [vmem:[#allocation2 + $0x218] sm:$0xff] %vm81, 0.0
  %151 = vst.msk [vmem:[#allocation2 + $0x220] sm:$0x3] %vm84, 0.0
  %152 = vst.msk [vmem:[#allocation2 + $0x228] sm:$0xff] %vm81, 0.0
  %153 = vst.msk [vmem:[#allocation2 + $0x230] sm:$0xff] %vm81, 0.0
  %154 = vst.msk [vmem:[#allocation2 + $0x238] sm:$0x3] %vm84, 0.0
  %155 = vst.msk [vmem:[#allocation2 + $0x240] sm:$0xff] %vm81, 0.0
  %156 = vst.msk [vmem:[#allocation2 + $0x248] sm:$0xff] %vm81, 0.0
  %157 = vst.msk [vmem:[#allocation2 + $0x250] sm:$0x3] %vm84, 0.0
  %158 = vst.msk [vmem:[#allocation2 + $0x258] sm:$0xff] %vm81, 0.0
  %159 = vst.msk [vmem:[#allocation2 + $0x260] sm:$0xff] %vm81, 0.0
  %160 = vst.msk [vmem:[#allocation2 + $0x268] sm:$0x3] %vm84, 0.0
  %161 = vst.msk [vmem:[#allocation2 + $0x270] sm:$0xff] %vm81, 0.0
  %162 = vst.msk [vmem:[#allocation2 + $0x278] sm:$0xff] %vm81, 0.0
  %163 = vst.msk [vmem:[#allocation2 + $0x280] sm:$0x3] %vm84, 0.0
  %164 = vst.msk [vmem:[#allocation2 + $0x288] sm:$0xff] %vm81, 0.0
  %165 = vst.msk [vmem:[#allocation2 + $0x290] sm:$0xff] %vm81, 0.0
  %166 = vst.msk [vmem:[#allocation2 + $0x298] sm:$0x3] %vm84, 0.0
  %167 = vst.msk [vmem:[#allocation2 + $0x2a0] sm:$0xff] %vm81, 0.0
  %168 = vst.msk [vmem:[#allocation2 + $0x2a8] sm:$0xff] %vm81, 0.0
  %169 = vst.msk [vmem:[#allocation2 + $0x2b0] sm:$0x3] %vm84, 0.0
  %170 = vst.msk [vmem:[#allocation2 + $0x2b8] sm:$0xff] %vm81, 0.0
  %171 = vst.msk [vmem:[#allocation2 + $0x2c0] sm:$0xff] %vm81, 0.0
  %172 = vst.msk [vmem:[#allocation2 + $0x2c8] sm:$0x3] %vm84, 0.0
  %173 = vst.msk [vmem:[#allocation2 + $0x2d0] sm:$0xff] %vm81, 0.0
  %174 = vst.msk [vmem:[#allocation2 + $0x2d8] sm:$0xff] %vm81, 0.0
  %175 = vst.msk [vmem:[#allocation2 + $0x2e0] sm:$0x3] %vm84, 0.0
  %176 = vst.msk [vmem:[#allocation2 + $0x2e8] sm:$0xff] %vm81, 0.0
  %177 = vst.msk [vmem:[#allocation2 + $0x2f0] sm:$0xff] %vm81, 0.0
  %178 = vst.msk [vmem:[#allocation2 + $0x2f8] sm:$0x3] %vm84, 0.0
  %179 = vst.msk [vmem:[#allocation2 + $0x300] sm:$0xff] %vm81, 0.0
  %180 = vst.msk [vmem:[#allocation2 + $0x308] sm:$0xff] %vm81, 0.0
  %181 = vst.msk [vmem:[#allocation2 + $0x310] sm:$0x3] %vm84, 0.0
  %182 = vst.msk [vmem:[#allocation2 + $0x318] sm:$0xff] %vm81, 0.0
  %183 = vst.msk [vmem:[#allocation2 + $0x320] sm:$0xff] %vm81, 0.0
  %184 = vst.msk [vmem:[#allocation2 + $0x328] sm:$0x3] %vm84, 0.0
  %185 = vst.msk [vmem:[#allocation2 + $0x330] sm:$0xff] %vm81, 0.0
  %186 = vst.msk [vmem:[#allocation2 + $0x338] sm:$0xff] %vm81, 0.0
  %187 = vst.msk [vmem:[#allocation2 + $0x340] sm:$0x3] %vm84, 0.0
  %188 = vst.msk [vmem:[#allocation2 + $0x348] sm:$0xff] %vm81, 0.0
  %189 = vst.msk [vmem:[#allocation2 + $0x350] sm:$0xff] %vm81, 0.0
  %190 = vst.msk [vmem:[#allocation2 + $0x358] sm:$0x3] %vm84, 0.0
  %v191 = vmax.f32 %v17, 0.0
  %v192 = vmax.f32 %v18, 0.0
  %v193 = vmax.f32 %v19, 0.0
  %v194 = vmax.f32 %v20, 0.0
  %v195 = vmax.f32 %v21, 0.0
  %v196 = vmax.f32 %v22, 0.0
  %v197 = vmax.f32 %v23, 0.0
  %v198 = vmax.f32 %v24, 0.0
  %v199 = vmax.f32 %v25, 0.0
  %v200 = vmax.f32 %v26, 0.0
  %v201 = vmax.f32 %v27, 0.0
  %v202 = vmax.f32 %v28, 0.0
  %v203 = vmax.f32 %v29, 0.0
  %v204 = vmax.f32 %v30, 0.0
  %v205 = vmax.f32 %v31, 0.0
  %v206 = vmax.f32 %v32, 0.0
  %v207 = vmax.f32 %v33, 0.0
  %v208 = vmax.f32 %v34, 0.0
  %v209 = vmax.f32 %v35, 0.0
  %v210 = vmax.f32 %v36, 0.0
  %v211 = vmax.f32 %v37, 0.0
  %v212 = vmax.f32 %v38, 0.0
  %v213 = vmax.f32 %v39, 0.0
  %v214 = vmax.f32 %v40, 0.0
  %v215 = vmax.f32 %v41, 0.0
  %v216 = vmax.f32 %v42, 0.0
  %v217 = vmax.f32 %v43, 0.0
  %v218 = vmax.f32 %v44, 0.0
  %v219 = vmax.f32 %v45, 0.0
  %v220 = vmax.f32 %v46, 0.0
  %v221 = vmax.f32 %v47, 0.0
  %v222 = vmax.f32 %v48, 0.0
  %v223 = vmax.f32 %v49, 0.0
  %v224 = vmax.f32 %v50, 0.0
  %v225 = vmax.f32 %v51, 0.0
  %v226 = vmax.f32 %v52, 0.0
  %v227 = vmax.f32 %v53, 0.0
  %v228 = vmax.f32 %v54, 0.0
  %v229 = vmax.f32 %v55, 0.0
  %v230 = vmax.f32 %v56, 0.0
  %v231 = vmax.f32 %v57, 0.0
  %v232 = vmax.f32 %v58, 0.0
  %v233 = vmax.f32 %v59, 0.0
  %v234 = vmax.f32 %v60, 0.0
  %v235 = vmax.f32 %v61, 0.0
  %v236 = vmax.f32 %v62, 0.0
  %v237 = vmax.f32 %v63, 0.0
  %v238 = vmax.f32 %v64, 0.0
  %v239 = vmax.f32 %v65, 0.0
  %v240 = vmax.f32 %v66, 0.0
  %v241 = vmax.f32 %v67, 0.0
  %v242 = vmax.f32 %v68, 0.0
  %v243 = vmax.f32 %v69, 0.0
  %v244 = vmax.f32 %v70, 0.0
  %v245 = vmax.f32 %v71, 0.0
  %v246 = vmax.f32 %v72, 0.0
  %v247 = vmax.f32 %v73, 0.0
  %v248 = vmax.f32 %v74, 0.0
  %v249 = vmax.f32 %v75, 0.0
  %v250 = vmax.f32 %v76, 0.0
  %v251 = vmax.f32 %v77, 0.0
  %v252 = vmax.f32 %v78, 0.0
  %v253 = vmax.f32 %v79, 0.0
  %v254 = vmax.f32 %v80, 0.0
  %s255 = scalar_lea.vmem [#allocation2], 24
  %256 = vst.msk [vmem:[%s255 + $0x1] sm:$0xff] %vm81, %v191
  %257 = vst.msk [vmem:[%s255 + $0x9] sm:$0xff] %vm81, %v192
  %258 = vst.msk [vmem:[%s255 + $0x19] sm:$0xff] %vm81, %v193
  %259 = vst.msk [vmem:[%s255 + $0x21] sm:$0xff] %vm81, %v194
  %260 = vst.msk [vmem:[%s255 + $0x31] sm:$0xff] %vm81, %v195
  %261 = vst.msk [vmem:[%s255 + $0x39] sm:$0xff] %vm81, %v196
  %262 = vst.msk [vmem:[%s255 + $0x49] sm:$0xff] %vm81, %v197
  %263 = vst.msk [vmem:[%s255 + $0x51] sm:$0xff] %vm81, %v198
  %264 = vst.msk [vmem:[%s255 + $0x61] sm:$0xff] %vm81, %v199
  %265 = vst.msk [vmem:[%s255 + $0x69] sm:$0xff] %vm81, %v200
  %266 = vst.msk [vmem:[%s255 + $0x79] sm:$0xff] %vm81, %v201
  %267 = vst.msk [vmem:[%s255 + $0x81] sm:$0xff] %vm81, %v202
  %268 = vst.msk [vmem:[%s255 + $0x91] sm:$0xff] %vm81, %v203
  %269 = vst.msk [vmem:[%s255 + $0x99] sm:$0xff] %vm81, %v204
  %270 = vst.msk [vmem:[%s255 + $0xa9] sm:$0xff] %vm81, %v205
  %271 = vst.msk [vmem:[%s255 + $0xb1] sm:$0xff] %vm81, %v206
  %272 = vst.msk [vmem:[%s255 + $0xc1] sm:$0xff] %vm81, %v207
  %273 = vst.msk [vmem:[%s255 + $0xc9] sm:$0xff] %vm81, %v208
  %274 = vst.msk [vmem:[%s255 + $0xd9] sm:$0xff] %vm81, %v209
  %275 = vst.msk [vmem:[%s255 + $0xe1] sm:$0xff] %vm81, %v210
  %276 = vst.msk [vmem:[%s255 + $0xf1] sm:$0xff] %vm81, %v211
  %277 = vst.msk [vmem:[%s255 + $0xf9] sm:$0xff] %vm81, %v212
  %278 = vst.msk [vmem:[%s255 + $0x109] sm:$0xff] %vm81, %v213
  %279 = vst.msk [vmem:[%s255 + $0x111] sm:$0xff] %vm81, %v214
  %280 = vst.msk [vmem:[%s255 + $0x121] sm:$0xff] %vm81, %v215
  %281 = vst.msk [vmem:[%s255 + $0x129] sm:$0xff] %vm81, %v216
  %282 = vst.msk [vmem:[%s255 + $0x139] sm:$0xff] %vm81, %v217
  %283 = vst.msk [vmem:[%s255 + $0x141] sm:$0xff] %vm81, %v218
  %284 = vst.msk [vmem:[%s255 + $0x151] sm:$0xff] %vm81, %v219
  %285 = vst.msk [vmem:[%s255 + $0x159] sm:$0xff] %vm81, %v220
  %286 = vst.msk [vmem:[%s255 + $0x169] sm:$0xff] %vm81, %v221
  %287 = vst.msk [vmem:[%s255 + $0x171] sm:$0xff] %vm81, %v222
  %288 = vst.msk [vmem:[%s255 + $0x1b1] sm:$0xff] %vm81, %v223
  %289 = vst.msk [vmem:[%s255 + $0x1b9] sm:$0xff] %vm81, %v224
  %290 = vst.msk [vmem:[%s255 + $0x1c9] sm:$0xff] %vm81, %v225
  %291 = vst.msk [vmem:[%s255 + $0x1d1] sm:$0xff] %vm81, %v226
  %292 = vst.msk [vmem:[%s255 + $0x1e1] sm:$0xff] %vm81, %v227
  %293 = vst.msk [vmem:[%s255 + $0x1e9] sm:$0xff] %vm81, %v228
  %294 = vst.msk [vmem:[%s255 + $0x1f9] sm:$0xff] %vm81, %v229
  %295 = vst.msk [vmem:[%s255 + $0x201] sm:$0xff] %vm81, %v230
  %296 = vst.msk [vmem:[%s255 + $0x211] sm:$0xff] %vm81, %v231
  %297 = vst.msk [vmem:[%s255 + $0x219] sm:$0xff] %vm81, %v232
  %298 = vst.msk [vmem:[%s255 + $0x229] sm:$0xff] %vm81, %v233
  %299 = vst.msk [vmem:[%s255 + $0x231] sm:$0xff] %vm81, %v234
  %300 = vst.msk [vmem:[%s255 + $0x241] sm:$0xff] %vm81, %v235
  %301 = vst.msk [vmem:[%s255 + $0x249] sm:$0xff] %vm81, %v236
  %302 = vst.msk [vmem:[%s255 + $0x259] sm:$0xff] %vm81, %v237
  %303 = vst.msk [vmem:[%s255 + $0x261] sm:$0xff] %vm81, %v238
  %304 = vst.msk [vmem:[%s255 + $0x271] sm:$0xff] %vm81, %v239
  %305 = vst.msk [vmem:[%s255 + $0x279] sm:$0xff] %vm81, %v240
  %306 = vst.msk [vmem:[%s255 + $0x289] sm:$0xff] %vm81, %v241
  %307 = vst.msk [vmem:[%s255 + $0x291] sm:$0xff] %vm81, %v242
  %308 = vst.msk [vmem:[%s255 + $0x2a1] sm:$0xff] %vm81, %v243
  %309 = vst.msk [vmem:[%s255 + $0x2a9] sm:$0xff] %vm81, %v244
  %310 = vst.msk [vmem:[%s255 + $0x2b9] sm:$0xff] %vm81, %v245
  %311 = vst.msk [vmem:[%s255 + $0x2c1] sm:$0xff] %vm81, %v246
  %312 = vst.msk [vmem:[%s255 + $0x2d1] sm:$0xff] %vm81, %v247
  %313 = vst.msk [vmem:[%s255 + $0x2d9] sm:$0xff] %vm81, %v248
  %314 = vst.msk [vmem:[%s255 + $0x2e9] sm:$0xff] %vm81, %v249
  %315 = vst.msk [vmem:[%s255 + $0x2f1] sm:$0xff] %vm81, %v250
  %316 = vst.msk [vmem:[%s255 + $0x301] sm:$0xff] %vm81, %v251
  %317 = vst.msk [vmem:[%s255 + $0x309] sm:$0xff] %vm81, %v252
  %318 = vst.msk [vmem:[%s255 + $0x319] sm:$0xff] %vm81, %v253
  %319 = vst.msk [vmem:[%s255 + $0x321] sm:$0xff] %vm81, %v254
  %v320 = vld [vmem:[#allocation2] sm:$0xff]
  %v321 = vld [vmem:[#allocation2 + $0x8] sm:$0xff]
  %v322 = vld [vmem:[#allocation2 + $0x18] sm:$0xff]
  %v323 = vld [vmem:[#allocation2 + $0x20] sm:$0xff]
  %v324 = vld [vmem:[#allocation2 + $0x30] sm:$0xff]
  %v325 = vld [vmem:[#allocation2 + $0x38] sm:$0xff]
  %v326 = vld [vmem:[#allocation2 + $0x48] sm:$0xff]
  %v327 = vld [vmem:[#allocation2 + $0x50] sm:$0xff]
  %v328 = vld [vmem:[#allocation2 + $0x60] sm:$0xff]
  %v329 = vld [vmem:[#allocation2 + $0x68] sm:$0xff]
  %v330 = vld [vmem:[#allocation2 + $0x78] sm:$0xff]
  %v331 = vld [vmem:[#allocation2 + $0x80] sm:$0xff]
  %v332 = vld [vmem:[#allocation2 + $0x90] sm:$0xff]
  %v333 = vld [vmem:[#allocation2 + $0x98] sm:$0xff]
  %v334 = vld [vmem:[#allocation2 + $0xa8] sm:$0xff]
  %v335 = vld [vmem:[#allocation2 + $0xb0] sm:$0xff]
  %v336 = vld [vmem:[#allocation2 + $0xc0] sm:$0xff]
  %v337 = vld [vmem:[#allocation2 + $0xc8] sm:$0xff]
  %v338 = vld [vmem:[#allocation2 + $0xd8] sm:$0xff]
  %v339 = vld [vmem:[#allocation2 + $0xe0] sm:$0xff]
  %v340 = vld [vmem:[#allocation2 + $0xf0] sm:$0xff]
  %v341 = vld [vmem:[#allocation2 + $0xf8] sm:$0xff]
  %v342 = vld [vmem:[#allocation2 + $0x108] sm:$0xff]
  %v343 = vld [vmem:[#allocation2 + $0x110] sm:$0xff]
  %v344 = vld [vmem:[#allocation2 + $0x120] sm:$0xff]
  %v345 = vld [vmem:[#allocation2 + $0x128] sm:$0xff]
  %v346 = vld [vmem:[#allocation2 + $0x138] sm:$0xff]
  %v347 = vld [vmem:[#allocation2 + $0x140] sm:$0xff]
  %v348 = vld [vmem:[#allocation2 + $0x150] sm:$0xff]
  %v349 = vld [vmem:[#allocation2 + $0x158] sm:$0xff]
  %v350 = vld [vmem:[#allocation2 + $0x168] sm:$0xff]
  %v351 = vld [vmem:[#allocation2 + $0x170] sm:$0xff]
  %v352 = vld [vmem:[#allocation2 + $0x1b0] sm:$0xff]
  %v353 = vld [vmem:[#allocation2 + $0x1b8] sm:$0xff]
  %v354 = vld [vmem:[#allocation2 + $0x1c8] sm:$0xff]
  %v355 = vld [vmem:[#allocation2 + $0x1d0] sm:$0xff]
  %v356 = vld [vmem:[#allocation2 + $0x1e0] sm:$0xff]
  %v357 = vld [vmem:[#allocation2 + $0x1e8] sm:$0xff]
  %v358 = vld [vmem:[#allocation2 + $0x1f8] sm:$0xff]
  %v359 = vld [vmem:[#allocation2 + $0x200] sm:$0xff]
  %v360 = vld [vmem:[#allocation2 + $0x210] sm:$0xff]
  %v361 = vld [vmem:[#allocation2 + $0x218] sm:$0xff]
  %v362 = vld [vmem:[#allocation2 + $0x228] sm:$0xff]
  %v363 = vld [vmem:[#allocation2 + $0x230] sm:$0xff]
  %v364 = vld [vmem:[#allocation2 + $0x240] sm:$0xff]
  %v365 = vld [vmem:[#allocation2 + $0x248] sm:$0xff]
  %v366 = vld [vmem:[#allocation2 + $0x258] sm:$0xff]
  %v367 = vld [vmem:[#allocation2 + $0x260] sm:$0xff]
  %v368 = vld [vmem:[#allocation2 + $0x270] sm:$0xff]
  %v369 = vld [vmem:[#allocation2 + $0x278] sm:$0xff]
  %v370 = vld [vmem:[#allocation2 + $0x288] sm:$0xff]
  %v371 = vld [vmem:[#allocation2 + $0x290] sm:$0xff]
  %v372 = vld [vmem:[#allocation2 + $0x2a0] sm:$0xff]
  %v373 = vld [vmem:[#allocation2 + $0x2a8] sm:$0xff]
  %v374 = vld [vmem:[#allocation2 + $0x2b8] sm:$0xff]
  %v375 = vld [vmem:[#allocation2 + $0x2c0] sm:$0xff]
  %v376 = vld [vmem:[#allocation2 + $0x2d0] sm:$0xff]
  %v377 = vld [vmem:[#allocation2 + $0x2d8] sm:$0xff]
  %v378 = vld [vmem:[#allocation2 + $0x2e8] sm:$0xff]
  %v379 = vld [vmem:[#allocation2 + $0x2f0] sm:$0xff]
  %v380 = vld [vmem:[#allocation2 + $0x300] sm:$0xff]
  %v381 = vld [vmem:[#allocation2 + $0x308] sm:$0xff]
  %v382 = vld [vmem:[#allocation2 + $0x318] sm:$0xff]
  %v383 = vld [vmem:[#allocation2 + $0x320] sm:$0xff]
  %v384 = vld [vmem:[#allocation2 + $0x1] sm:$0xff]
  %v385 = vld [vmem:[#allocation2 + $0x9] sm:$0xff]
  %v386 = vld [vmem:[#allocation2 + $0x19] sm:$0xff]
  %v387 = vld [vmem:[#allocation2 + $0x21] sm:$0xff]
  %v388 = vld [vmem:[#allocation2 + $0x31] sm:$0xff]
  %v389 = vld [vmem:[#allocation2 + $0x39] sm:$0xff]
  %v390 = vld [vmem:[#allocation2 + $0x49] sm:$0xff]
  %v391 = vld [vmem:[#allocation2 + $0x51] sm:$0xff]
  %v392 = vld [vmem:[#allocation2 + $0x61] sm:$0xff]
  %v393 = vld [vmem:[#allocation2 + $0x69] sm:$0xff]
  %v394 = vld [vmem:[#allocation2 + $0x79] sm:$0xff]
  %v395 = vld [vmem:[#allocation2 + $0x81] sm:$0xff]
  %v396 = vld [vmem:[#allocation2 + $0x91] sm:$0xff]
  %v397 = vld [vmem:[#allocation2 + $0x99] sm:$0xff]
  %v398 = vld [vmem:[#allocation2 + $0xa9] sm:$0xff]
  %v399 = vld [vmem:[#allocation2 + $0xb1] sm:$0xff]
  %v400 = vld [vmem:[#allocation2 + $0xc1] sm:$0xff]
  %v401 = vld [vmem:[#allocation2 + $0xc9] sm:$0xff]
  %v402 = vld [vmem:[#allocation2 + $0xd9] sm:$0xff]
  %v403 = vld [vmem:[#allocation2 + $0xe1] sm:$0xff]
  %v404 = vld [vmem:[#allocation2 + $0xf1] sm:$0xff]
  %v405 = vld [vmem:[#allocation2 + $0xf9] sm:$0xff]
  %v406 = vld [vmem:[#allocation2 + $0x109] sm:$0xff]
  %v407 = vld [vmem:[#allocation2 + $0x111] sm:$0xff]
  %v408 = vld [vmem:[#allocation2 + $0x121] sm:$0xff]
  %v409 = vld [vmem:[#allocation2 + $0x129] sm:$0xff]
  %v410 = vld [vmem:[#allocation2 + $0x139] sm:$0xff]
  %v411 = vld [vmem:[#allocation2 + $0x141] sm:$0xff]
  %v412 = vld [vmem:[#allocation2 + $0x151] sm:$0xff]
  %v413 = vld [vmem:[#allocation2 + $0x159] sm:$0xff]
  %v414 = vld [vmem:[#allocation2 + $0x169] sm:$0xff]
  %v415 = vld [vmem:[#allocation2 + $0x171] sm:$0xff]
  %v416 = vld [vmem:[#allocation2 + $0x1b1] sm:$0xff]
  %v417 = vld [vmem:[#allocation2 + $0x1b9] sm:$0xff]
  %v418 = vld [vmem:[#allocation2 + $0x1c9] sm:$0xff]
  %v419 = vld [vmem:[#allocation2 + $0x1d1] sm:$0xff]
  %v420 = vld [vmem:[#allocation2 + $0x1e1] sm:$0xff]
  %v421 = vld [vmem:[#allocation2 + $0x1e9] sm:$0xff]
  %v422 = vld [vmem:[#allocation2 + $0x1f9] sm:$0xff]
  %v423 = vld [vmem:[#allocation2 + $0x201] sm:$0xff]
  %v424 = vld [vmem:[#allocation2 + $0x211] sm:$0xff]
  %v425 = vld [vmem:[#allocation2 + $0x219] sm:$0xff]
  %v426 = vld [vmem:[#allocation2 + $0x229] sm:$0xff]
  %v427 = vld [vmem:[#allocation2 + $0x231] sm:$0xff]
  %v428 = vld [vmem:[#allocation2 + $0x241] sm:$0xff]
  %v429 = vld [vmem:[#allocation2 + $0x249] sm:$0xff]
  %v430 = vld [vmem:[#allocation2 + $0x259] sm:$0xff]
  %v431 = vld [vmem:[#allocation2 + $0x261] sm:$0xff]
  %v432 = vld [vmem:[#allocation2 + $0x271] sm:$0xff]
  %v433 = vld [vmem:[#allocation2 + $0x279] sm:$0xff]
  %v434 = vld [vmem:[#allocation2 + $0x289] sm:$0xff]
  %v435 = vld [vmem:[#allocation2 + $0x291] sm:$0xff]
  %v436 = vld [vmem:[#allocation2 + $0x2a1] sm:$0xff]
  %v437 = vld [vmem:[#allocation2 + $0x2a9] sm:$0xff]
  %v438 = vld [vmem:[#allocation2 + $0x2b9] sm:$0xff]
  %v439 = vld [vmem:[#allocation2 + $0x2c1] sm:$0xff]
  %v440 = vld [vmem:[#allocation2 + $0x2d1] sm:$0xff]
  %v441 = vld [vmem:[#allocation2 + $0x2d9] sm:$0xff]
  %v442 = vld [vmem:[#allocation2 + $0x2e9] sm:$0xff]
  %v443 = vld [vmem:[#allocation2 + $0x2f1] sm:$0xff]
  %v444 = vld [vmem:[#allocation2 + $0x301] sm:$0xff]
  %v445 = vld [vmem:[#allocation2 + $0x309] sm:$0xff]
  %v446 = vld [vmem:[#allocation2 + $0x319] sm:$0xff]
  %v447 = vld [vmem:[#allocation2 + $0x321] sm:$0xff]
  %v448 = vld [vmem:[#allocation2 + $0x2] sm:$0xff]
  %v449 = vld [vmem:[#allocation2 + $0xa] sm:$0xff]
  %v450 = vld [vmem:[#allocation2 + $0x1a] sm:$0xff]
  %v451 = vld [vmem:[#allocation2 + $0x22] sm:$0xff]
  %v452 = vld [vmem:[#allocation2 + $0x32] sm:$0xff]
  %v453 = vld [vmem:[#allocation2 + $0x3a] sm:$0xff]
  %v454 = vld [vmem:[#allocation2 + $0x4a] sm:$0xff]
  %v455 = vld [vmem:[#allocation2 + $0x52] sm:$0xff]
  %v456 = vld [vmem:[#allocation2 + $0x62] sm:$0xff]
  %v457 = vld [vmem:[#allocation2 + $0x6a] sm:$0xff]
  %v458 = vld [vmem:[#allocation2 + $0x7a] sm:$0xff]
  %v459 = vld [vmem:[#allocation2 + $0x82] sm:$0xff]
  %v460 = vld [vmem:[#allocation2 + $0x92] sm:$0xff]
  %v461 = vld [vmem:[#allocation2 + $0x9a] sm:$0xff]
  %v462 = vld [vmem:[#allocation2 + $0xaa] sm:$0xff]
  %v463 = vld [vmem:[#allocation2 + $0xb2] sm:$0xff]
  %v464 = vld [vmem:[#allocation2 + $0xc2] sm:$0xff]
  %v465 = vld [vmem:[#allocation2 + $0xca] sm:$0xff]
  %v466 = vld [vmem:[#allocation2 + $0xda] sm:$0xff]
  %v467 = vld [vmem:[#allocation2 + $0xe2] sm:$0xff]
  %v468 = vld [vmem:[#allocation2 + $0xf2] sm:$0xff]
  %v469 = vld [vmem:[#allocation2 + $0xfa] sm:$0xff]
  %v470 = vld [vmem:[#allocation2 + $0x10a] sm:$0xff]
  %v471 = vld [vmem:[#allocation2 + $0x112] sm:$0xff]
  %v472 = vld [vmem:[#allocation2 + $0x122] sm:$0xff]
  %v473 = vld [vmem:[#allocation2 + $0x12a] sm:$0xff]
  %v474 = vld [vmem:[#allocation2 + $0x13a] sm:$0xff]
  %v475 = vld [vmem:[#allocation2 + $0x142] sm:$0xff]
  %v476 = vld [vmem:[#allocation2 + $0x152] sm:$0xff]
  %v477 = vld [vmem:[#allocation2 + $0x15a] sm:$0xff]
  %v478 = vld [vmem:[#allocation2 + $0x16a] sm:$0xff]
  %v479 = vld [vmem:[#allocation2 + $0x172] sm:$0xff]
  %v480 = vld [vmem:[#allocation2 + $0x1b2] sm:$0xff]
  %v481 = vld [vmem:[#allocation2 + $0x1ba] sm:$0xff]
  %v482 = vld [vmem:[#allocation2 + $0x1ca] sm:$0xff]
  %v483 = vld [vmem:[#allocation2 + $0x1d2] sm:$0xff]
  %v484 = vld [vmem:[#allocation2 + $0x1e2] sm:$0xff]
  %v485 = vld [vmem:[#allocation2 + $0x1ea] sm:$0xff]
  %v486 = vld [vmem:[#allocation2 + $0x1fa] sm:$0xff]
  %v487 = vld [vmem:[#allocation2 + $0x202] sm:$0xff]
  %v488 = vld [vmem:[#allocation2 + $0x212] sm:$0xff]
  %v489 = vld [vmem:[#allocation2 + $0x21a] sm:$0xff]
  %v490 = vld [vmem:[#allocation2 + $0x22a] sm:$0xff]
  %v491 = vld [vmem:[#allocation2 + $0x232] sm:$0xff]
  %v492 = vld [vmem:[#allocation2 + $0x242] sm:$0xff]
  %v493 = vld [vmem:[#allocation2 + $0x24a] sm:$0xff]
  %v494 = vld [vmem:[#allocation2 + $0x25a] sm:$0xff]
  %v495 = vld [vmem:[#allocation2 + $0x262] sm:$0xff]
  %v496 = vld [vmem:[#allocation2 + $0x272] sm:$0xff]
  %v497 = vld [vmem:[#allocation2 + $0x27a] sm:$0xff]
  %v498 = vld [vmem:[#allocation2 + $0x28a] sm:$0xff]
  %v499 = vld [vmem:[#allocation2 + $0x292] sm:$0xff]
  %v500 = vld [vmem:[#allocation2 + $0x2a2] sm:$0xff]
  %v501 = vld [vmem:[#allocation2 + $0x2aa] sm:$0xff]
  %v502 = vld [vmem:[#allocation2 + $0x2ba] sm:$0xff]
  %v503 = vld [vmem:[#allocation2 + $0x2c2] sm:$0xff]
  %v504 = vld [vmem:[#allocation2 + $0x2d2] sm:$0xff]
  %v505 = vld [vmem:[#allocation2 + $0x2da] sm:$0xff]
  %v506 = vld [vmem:[#allocation2 + $0x2ea] sm:$0xff]
  %v507 = vld [vmem:[#allocation2 + $0x2f2] sm:$0xff]
  %v508 = vld [vmem:[#allocation2 + $0x302] sm:$0xff]
  %v509 = vld [vmem:[#allocation2 + $0x30a] sm:$0xff]
  %v510 = vld [vmem:[#allocation2 + $0x31a] sm:$0xff]
  %v511 = vld [vmem:[#allocation2 + $0x322] sm:$0xff]
  %v512 = vld [vmem:[%s255] sm:$0xff]
  %v513 = vld [vmem:[%s255 + $0x8] sm:$0xff]
  %v514 = vld [vmem:[%s255 + $0x18] sm:$0xff]
  %v515 = vld [vmem:[%s255 + $0x20] sm:$0xff]
  %v516 = vld [vmem:[%s255 + $0x30] sm:$0xff]
  %v517 = vld [vmem:[%s255 + $0x38] sm:$0xff]
  %v518 = vld [vmem:[%s255 + $0x48] sm:$0xff]
  %v519 = vld [vmem:[%s255 + $0x50] sm:$0xff]
  %v520 = vld [vmem:[%s255 + $0x60] sm:$0xff]
  %v521 = vld [vmem:[%s255 + $0x68] sm:$0xff]
  %v522 = vld [vmem:[%s255 + $0x78] sm:$0xff]
  %v523 = vld [vmem:[%s255 + $0x80] sm:$0xff]
  %v524 = vld [vmem:[%s255 + $0x90] sm:$0xff]
  %v525 = vld [vmem:[%s255 + $0x98] sm:$0xff]
  %v526 = vld [vmem:[%s255 + $0xa8] sm:$0xff]
  %v527 = vld [vmem:[%s255 + $0xb0] sm:$0xff]
  %v528 = vld [vmem:[%s255 + $0xc0] sm:$0xff]
  %v529 = vld [vmem:[%s255 + $0xc8] sm:$0xff]
  %v530 = vld [vmem:[%s255 + $0xd8] sm:$0xff]
  %v531 = vld [vmem:[%s255 + $0xe0] sm:$0xff]
  %v532 = vld [vmem:[%s255 + $0xf0] sm:$0xff]
  %v533 = vld [vmem:[%s255 + $0xf8] sm:$0xff]
  %v534 = vld [vmem:[%s255 + $0x108] sm:$0xff]
  %v535 = vld [vmem:[%s255 + $0x110] sm:$0xff]
  %v536 = vld [vmem:[%s255 + $0x120] sm:$0xff]
  %v537 = vld [vmem:[%s255 + $0x128] sm:$0xff]
  %v538 = vld [vmem:[%s255 + $0x138] sm:$0xff]
  %v539 = vld [vmem:[%s255 + $0x140] sm:$0xff]
  %v540 = vld [vmem:[%s255 + $0x150] sm:$0xff]
  %v541 = vld [vmem:[%s255 + $0x158] sm:$0xff]
  %v542 = vld [vmem:[%s255 + $0x168] sm:$0xff]
  %v543 = vld [vmem:[%s255 + $0x170] sm:$0xff]
  %v544 = vld [vmem:[%s255 + $0x1b0] sm:$0xff]
  %v545 = vld [vmem:[%s255 + $0x1b8] sm:$0xff]
  %v546 = vld [vmem:[%s255 + $0x1c8] sm:$0xff]
  %v547 = vld [vmem:[%s255 + $0x1d0] sm:$0xff]
  %v548 = vld [vmem:[%s255 + $0x1e0] sm:$0xff]
  %v549 = vld [vmem:[%s255 + $0x1e8] sm:$0xff]
  %v550 = vld [vmem:[%s255 + $0x1f8] sm:$0xff]
  %v551 = vld [vmem:[%s255 + $0x200] sm:$0xff]
  %v552 = vld [vmem:[%s255 + $0x210] sm:$0xff]
  %v553 = vld [vmem:[%s255 + $0x218] sm:$0xff]
  %v554 = vld [vmem:[%s255 + $0x228] sm:$0xff]
  %v555 = vld [vmem:[%s255 + $0x230] sm:$0xff]
  %v556 = vld [vmem:[%s255 + $0x240] sm:$0xff]
  %v557 = vld [vmem:[%s255 + $0x248] sm:$0xff]
  %v558 = vld [vmem:[%s255 + $0x258] sm:$0xff]
  %v559 = vld [vmem:[%s255 + $0x260] sm:$0xff]
  %v560 = vld [vmem:[%s255 + $0x270] sm:$0xff]
  %v561 = vld [vmem:[%s255 + $0x278] sm:$0xff]
  %v562 = vld [vmem:[%s255 + $0x288] sm:$0xff]
  %v563 = vld [vmem:[%s255 + $0x290] sm:$0xff]
  %v564 = vld [vmem:[%s255 + $0x2a0] sm:$0xff]
  %v565 = vld [vmem:[%s255 + $0x2a8] sm:$0xff]
  %v566 = vld [vmem:[%s255 + $0x2b8] sm:$0xff]
  %v567 = vld [vmem:[%s255 + $0x2c0] sm:$0xff]
  %v568 = vld [vmem:[%s255 + $0x2d0] sm:$0xff]
  %v569 = vld [vmem:[%s255 + $0x2d8] sm:$0xff]
  %v570 = vld [vmem:[%s255 + $0x2e8] sm:$0xff]
  %v571 = vld [vmem:[%s255 + $0x2f0] sm:$0xff]
  %v572 = vld [vmem:[%s255 + $0x300] sm:$0xff]
  %v573 = vld [vmem:[%s255 + $0x308] sm:$0xff]
  %v574 = vld [vmem:[%s255 + $0x318] sm:$0xff]
  %v575 = vld [vmem:[%s255 + $0x320] sm:$0xff]
  %v576 = vld [vmem:[%s255 + $0x1] sm:$0xff]
  %v577 = vld [vmem:[%s255 + $0x9] sm:$0xff]
  %v578 = vld [vmem:[%s255 + $0x19] sm:$0xff]
  %v579 = vld [vmem:[%s255 + $0x21] sm:$0xff]
  %v580 = vld [vmem:[%s255 + $0x31] sm:$0xff]
  %v581 = vld [vmem:[%s255 + $0x39] sm:$0xff]
  %v582 = vld [vmem:[%s255 + $0x49] sm:$0xff]
  %v583 = vld [vmem:[%s255 + $0x51] sm:$0xff]
  %v584 = vld [vmem:[%s255 + $0x61] sm:$0xff]
  %v585 = vld [vmem:[%s255 + $0x69] sm:$0xff]
  %v586 = vld [vmem:[%s255 + $0x79] sm:$0xff]
  %v587 = vld [vmem:[%s255 + $0x81] sm:$0xff]
  %v588 = vld [vmem:[%s255 + $0x91] sm:$0xff]
  %v589 = vld [vmem:[%s255 + $0x99] sm:$0xff]
  %v590 = vld [vmem:[%s255 + $0xa9] sm:$0xff]
  %v591 = vld [vmem:[%s255 + $0xb1] sm:$0xff]
  %v592 = vld [vmem:[%s255 + $0xc1] sm:$0xff]
  %v593 = vld [vmem:[%s255 + $0xc9] sm:$0xff]
  %v594 = vld [vmem:[%s255 + $0xd9] sm:$0xff]
  %v595 = vld [vmem:[%s255 + $0xe1] sm:$0xff]
  %v596 = vld [vmem:[%s255 + $0xf1] sm:$0xff]
  %v597 = vld [vmem:[%s255 + $0xf9] sm:$0xff]
  %v598 = vld [vmem:[%s255 + $0x109] sm:$0xff]
  %v599 = vld [vmem:[%s255 + $0x111] sm:$0xff]
  %v600 = vld [vmem:[%s255 + $0x121] sm:$0xff]
  %v601 = vld [vmem:[%s255 + $0x129] sm:$0xff]
  %v602 = vld [vmem:[%s255 + $0x139] sm:$0xff]
  %v603 = vld [vmem:[%s255 + $0x141] sm:$0xff]
  %v604 = vld [vmem:[%s255 + $0x151] sm:$0xff]
  %v605 = vld [vmem:[%s255 + $0x159] sm:$0xff]
  %v606 = vld [vmem:[%s255 + $0x169] sm:$0xff]
  %v607 = vld [vmem:[%s255 + $0x171] sm:$0xff]
  %v608 = vld [vmem:[%s255 + $0x1b1] sm:$0xff]
  %v609 = vld [vmem:[%s255 + $0x1b9] sm:$0xff]
  %v610 = vld [vmem:[%s255 + $0x1c9] sm:$0xff]
  %v611 = vld [vmem:[%s255 + $0x1d1] sm:$0xff]
  %v612 = vld [vmem:[%s255 + $0x1e1] sm:$0xff]
  %v613 = vld [vmem:[%s255 + $0x1e9] sm:$0xff]
  %v614 = vld [vmem:[%s255 + $0x1f9] sm:$0xff]
  %v615 = vld [vmem:[%s255 + $0x201] sm:$0xff]
  %v616 = vld [vmem:[%s255 + $0x211] sm:$0xff]
  %v617 = vld [vmem:[%s255 + $0x219] sm:$0xff]
  %v618 = vld [vmem:[%s255 + $0x229] sm:$0xff]
  %v619 = vld [vmem:[%s255 + $0x231] sm:$0xff]
  %v620 = vld [vmem:[%s255 + $0x241] sm:$0xff]
  %v621 = vld [vmem:[%s255 + $0x249] sm:$0xff]
  %v622 = vld [vmem:[%s255 + $0x259] sm:$0xff]
  %v623 = vld [vmem:[%s255 + $0x261] sm:$0xff]
  %v624 = vld [vmem:[%s255 + $0x271] sm:$0xff]
  %v625 = vld [vmem:[%s255 + $0x279] sm:$0xff]
  %v626 = vld [vmem:[%s255 + $0x289] sm:$0xff]
  %v627 = vld [vmem:[%s255 + $0x291] sm:$0xff]
  %v628 = vld [vmem:[%s255 + $0x2a1] sm:$0xff]
  %v629 = vld [vmem:[%s255 + $0x2a9] sm:$0xff]
  %v630 = vld [vmem:[%s255 + $0x2b9] sm:$0xff]
  %v631 = vld [vmem:[%s255 + $0x2c1] sm:$0xff]
  %v632 = vld [vmem:[%s255 + $0x2d1] sm:$0xff]
  %v633 = vld [vmem:[%s255 + $0x2d9] sm:$0xff]
  %v634 = vld [vmem:[%s255 + $0x2e9] sm:$0xff]
  %v635 = vld [vmem:[%s255 + $0x2f1] sm:$0xff]
  %v636 = vld [vmem:[%s255 + $0x301] sm:$0xff]
  %v637 = vld [vmem:[%s255 + $0x309] sm:$0xff]
  %v638 = vld [vmem:[%s255 + $0x319] sm:$0xff]
  %v639 = vld [vmem:[%s255 + $0x321] sm:$0xff]
  %v640 = vld [vmem:[%s255 + $0x2] sm:$0xff]
  %v641 = vld [vmem:[%s255 + $0xa] sm:$0xff]
  %v642 = vld [vmem:[%s255 + $0x1a] sm:$0xff]
  %v643 = vld [vmem:[%s255 + $0x22] sm:$0xff]
  %v644 = vld [vmem:[%s255 + $0x32] sm:$0xff]
  %v645 = vld [vmem:[%s255 + $0x3a] sm:$0xff]
  %v646 = vld [vmem:[%s255 + $0x4a] sm:$0xff]
  %v647 = vld [vmem:[%s255 + $0x52] sm:$0xff]
  %v648 = vld [vmem:[%s255 + $0x62] sm:$0xff]
  %v649 = vld [vmem:[%s255 + $0x6a] sm:$0xff]
  %v650 = vld [vmem:[%s255 + $0x7a] sm:$0xff]
  %v651 = vld [vmem:[%s255 + $0x82] sm:$0xff]
  %v652 = vld [vmem:[%s255 + $0x92] sm:$0xff]
  %v653 = vld [vmem:[%s255 + $0x9a] sm:$0xff]
  %v654 = vld [vmem:[%s255 + $0xaa] sm:$0xff]
  %v655 = vld [vmem:[%s255 + $0xb2] sm:$0xff]
  %v656 = vld [vmem:[%s255 + $0xc2] sm:$0xff]
  %v657 = vld [vmem:[%s255 + $0xca] sm:$0xff]
  %v658 = vld [vmem:[%s255 + $0xda] sm:$0xff]
  %v659 = vld [vmem:[%s255 + $0xe2] sm:$0xff]
  %v660 = vld [vmem:[%s255 + $0xf2] sm:$0xff]
  %v661 = vld [vmem:[%s255 + $0xfa] sm:$0xff]
  %v662 = vld [vmem:[%s255 + $0x10a] sm:$0xff]
  %v663 = vld [vmem:[%s255 + $0x112] sm:$0xff]
  %v664 = vld [vmem:[%s255 + $0x122] sm:$0xff]
  %v665 = vld [vmem:[%s255 + $0x12a] sm:$0xff]
  %v666 = vld [vmem:[%s255 + $0x13a] sm:$0xff]
  %v667 = vld [vmem:[%s255 + $0x142] sm:$0xff]
  %v668 = vld [vmem:[%s255 + $0x152] sm:$0xff]
  %v669 = vld [vmem:[%s255 + $0x15a] sm:$0xff]
  %v670 = vld [vmem:[%s255 + $0x16a] sm:$0xff]
  %v671 = vld [vmem:[%s255 + $0x172] sm:$0xff]
  %v672 = vld [vmem:[%s255 + $0x1b2] sm:$0xff]
  %v673 = vld [vmem:[%s255 + $0x1ba] sm:$0xff]
  %v674 = vld [vmem:[%s255 + $0x1ca] sm:$0xff]
  %v675 = vld [vmem:[%s255 + $0x1d2] sm:$0xff]
  %v676 = vld [vmem:[%s255 + $0x1e2] sm:$0xff]
  %v677 = vld [vmem:[%s255 + $0x1ea] sm:$0xff]
  %v678 = vld [vmem:[%s255 + $0x1fa] sm:$0xff]
  %v679 = vld [vmem:[%s255 + $0x202] sm:$0xff]
  %v680 = vld [vmem:[%s255 + $0x212] sm:$0xff]
  %v681 = vld [vmem:[%s255 + $0x21a] sm:$0xff]
  %v682 = vld [vmem:[%s255 + $0x22a] sm:$0xff]
  %v683 = vld [vmem:[%s255 + $0x232] sm:$0xff]
  %v684 = vld [vmem:[%s255 + $0x242] sm:$0xff]
  %v685 = vld [vmem:[%s255 + $0x24a] sm:$0xff]
  %v686 = vld [vmem:[%s255 + $0x25a] sm:$0xff]
  %v687 = vld [vmem:[%s255 + $0x262] sm:$0xff]
  %v688 = vld [vmem:[%s255 + $0x272] sm:$0xff]
  %v689 = vld [vmem:[%s255 + $0x27a] sm:$0xff]
  %v690 = vld [vmem:[%s255 + $0x28a] sm:$0xff]
  %v691 = vld [vmem:[%s255 + $0x292] sm:$0xff]
  %v692 = vld [vmem:[%s255 + $0x2a2] sm:$0xff]
  %v693 = vld [vmem:[%s255 + $0x2aa] sm:$0xff]
  %v694 = vld [vmem:[%s255 + $0x2ba] sm:$0xff]
  %v695 = vld [vmem:[%s255 + $0x2c2] sm:$0xff]
  %v696 = vld [vmem:[%s255 + $0x2d2] sm:$0xff]
  %v697 = vld [vmem:[%s255 + $0x2da] sm:$0xff]
  %v698 = vld [vmem:[%s255 + $0x2ea] sm:$0xff]
  %v699 = vld [vmem:[%s255 + $0x2f2] sm:$0xff]
  %v700 = vld [vmem:[%s255 + $0x302] sm:$0xff]
  %v701 = vld [vmem:[%s255 + $0x30a] sm:$0xff]
  %v702 = vld [vmem:[%s255 + $0x31a] sm:$0xff]
  %v703 = vld [vmem:[%s255 + $0x322] sm:$0xff]
  %s704 = scalar_lea.vmem [#allocation2], 48
  %v705 = vld [vmem:[%s704] sm:$0xff]
  %v706 = vld [vmem:[%s704 + $0x8] sm:$0xff]
  %v707 = vld [vmem:[%s704 + $0x18] sm:$0xff]
  %v708 = vld [vmem:[%s704 + $0x20] sm:$0xff]
  %v709 = vld [vmem:[%s704 + $0x30] sm:$0xff]
  %v710 = vld [vmem:[%s704 + $0x38] sm:$0xff]
  %v711 = vld [vmem:[%s704 + $0x48] sm:$0xff]
  %v712 = vld [vmem:[%s704 + $0x50] sm:$0xff]
  %v713 = vld [vmem:[%s704 + $0x60] sm:$0xff]
  %v714 = vld [vmem:[%s704 + $0x68] sm:$0xff]
  %v715 = vld [vmem:[%s704 + $0x78] sm:$0xff]
  %v716 = vld [vmem:[%s704 + $0x80] sm:$0xff]
  %v717 = vld [vmem:[%s704 + $0x90] sm:$0xff]
  %v718 = vld [vmem:[%s704 + $0x98] sm:$0xff]
  %v719 = vld [vmem:[%s704 + $0xa8] sm:$0xff]
  %v720 = vld [vmem:[%s704 + $0xb0] sm:$0xff]
  %v721 = vld [vmem:[%s704 + $0xc0] sm:$0xff]
  %v722 = vld [vmem:[%s704 + $0xc8] sm:$0xff]
  %v723 = vld [vmem:[%s704 + $0xd8] sm:$0xff]
  %v724 = vld [vmem:[%s704 + $0xe0] sm:$0xff]
  %v725 = vld [vmem:[%s704 + $0xf0] sm:$0xff]
  %v726 = vld [vmem:[%s704 + $0xf8] sm:$0xff]
  %v727 = vld [vmem:[%s704 + $0x108] sm:$0xff]
  %v728 = vld [vmem:[%s704 + $0x110] sm:$0xff]
  %v729 = vld [vmem:[%s704 + $0x120] sm:$0xff]
  %v730 = vld [vmem:[%s704 + $0x128] sm:$0xff]
  %v731 = vld [vmem:[%s704 + $0x138] sm:$0xff]
  %v732 = vld [vmem:[%s704 + $0x140] sm:$0xff]
  %v733 = vld [vmem:[%s704 + $0x150] sm:$0xff]
  %v734 = vld [vmem:[%s704 + $0x158] sm:$0xff]
  %v735 = vld [vmem:[%s704 + $0x168] sm:$0xff]
  %v736 = vld [vmem:[%s704 + $0x170] sm:$0xff]
  %v737 = vld [vmem:[%s704 + $0x1b0] sm:$0xff]
  %v738 = vld [vmem:[%s704 + $0x1b8] sm:$0xff]
  %v739 = vld [vmem:[%s704 + $0x1c8] sm:$0xff]
  %v740 = vld [vmem:[%s704 + $0x1d0] sm:$0xff]
  %v741 = vld [vmem:[%s704 + $0x1e0] sm:$0xff]
  %v742 = vld [vmem:[%s704 + $0x1e8] sm:$0xff]
  %v743 = vld [vmem:[%s704 + $0x1f8] sm:$0xff]
  %v744 = vld [vmem:[%s704 + $0x200] sm:$0xff]
  %v745 = vld [vmem:[%s704 + $0x210] sm:$0xff]
  %v746 = vld [vmem:[%s704 + $0x218] sm:$0xff]
  %v747 = vld [vmem:[%s704 + $0x228] sm:$0xff]
  %v748 = vld [vmem:[%s704 + $0x230] sm:$0xff]
  %v749 = vld [vmem:[%s704 + $0x240] sm:$0xff]
  %v750 = vld [vmem:[%s704 + $0x248] sm:$0xff]
  %v751 = vld [vmem:[%s704 + $0x258] sm:$0xff]
  %v752 = vld [vmem:[%s704 + $0x260] sm:$0xff]
  %v753 = vld [vmem:[%s704 + $0x270] sm:$0xff]
  %v754 = vld [vmem:[%s704 + $0x278] sm:$0xff]
  %v755 = vld [vmem:[%s704 + $0x288] sm:$0xff]
  %v756 = vld [vmem:[%s704 + $0x290] sm:$0xff]
  %v757 = vld [vmem:[%s704 + $0x2a0] sm:$0xff]
  %v758 = vld [vmem:[%s704 + $0x2a8] sm:$0xff]
  %v759 = vld [vmem:[%s704 + $0x2b8] sm:$0xff]
  %v760 = vld [vmem:[%s704 + $0x2c0] sm:$0xff]
  %v761 = vld [vmem:[%s704 + $0x2d0] sm:$0xff]
  %v762 = vld [vmem:[%s704 + $0x2d8] sm:$0xff]
  %v763 = vld [vmem:[%s704 + $0x2e8] sm:$0xff]
  %v764 = vld [vmem:[%s704 + $0x2f0] sm:$0xff]
  %v765 = vld [vmem:[%s704 + $0x300] sm:$0xff]
  %v766 = vld [vmem:[%s704 + $0x308] sm:$0xff]
  %v767 = vld [vmem:[%s704 + $0x318] sm:$0xff]
  %v768 = vld [vmem:[%s704 + $0x320] sm:$0xff]
  %v769 = vld [vmem:[%s704 + $0x1] sm:$0xff]
  %v770 = vld [vmem:[%s704 + $0x9] sm:$0xff]
  %v771 = vld [vmem:[%s704 + $0x19] sm:$0xff]
  %v772 = vld [vmem:[%s704 + $0x21] sm:$0xff]
  %v773 = vld [vmem:[%s704 + $0x31] sm:$0xff]
  %v774 = vld [vmem:[%s704 + $0x39] sm:$0xff]
  %v775 = vld [vmem:[%s704 + $0x49] sm:$0xff]
  %v776 = vld [vmem:[%s704 + $0x51] sm:$0xff]
  %v777 = vld [vmem:[%s704 + $0x61] sm:$0xff]
  %v778 = vld [vmem:[%s704 + $0x69] sm:$0xff]
  %v779 = vld [vmem:[%s704 + $0x79] sm:$0xff]
  %v780 = vld [vmem:[%s704 + $0x81] sm:$0xff]
  %v781 = vld [vmem:[%s704 + $0x91] sm:$0xff]
  %v782 = vld [vmem:[%s704 + $0x99] sm:$0xff]
  %v783 = vld [vmem:[%s704 + $0xa9] sm:$0xff]
  %v784 = vld [vmem:[%s704 + $0xb1] sm:$0xff]
  %v785 = vld [vmem:[%s704 + $0xc1] sm:$0xff]
  %v786 = vld [vmem:[%s704 + $0xc9] sm:$0xff]
  %v787 = vld [vmem:[%s704 + $0xd9] sm:$0xff]
  %v788 = vld [vmem:[%s704 + $0xe1] sm:$0xff]
  %v789 = vld [vmem:[%s704 + $0xf1] sm:$0xff]
  %v790 = vld [vmem:[%s704 + $0xf9] sm:$0xff]
  %v791 = vld [vmem:[%s704 + $0x109] sm:$0xff]
  %v792 = vld [vmem:[%s704 + $0x111] sm:$0xff]
  %v793 = vld [vmem:[%s704 + $0x121] sm:$0xff]
  %v794 = vld [vmem:[%s704 + $0x129] sm:$0xff]
  %v795 = vld [vmem:[%s704 + $0x139] sm:$0xff]
  %v796 = vld [vmem:[%s704 + $0x141] sm:$0xff]
  %v797 = vld [vmem:[%s704 + $0x151] sm:$0xff]
  %v798 = vld [vmem:[%s704 + $0x159] sm:$0xff]
  %v799 = vld [vmem:[%s704 + $0x169] sm:$0xff]
  %v800 = vld [vmem:[%s704 + $0x171] sm:$0xff]
  %v801 = vld [vmem:[%s704 + $0x1b1] sm:$0xff]
  %v802 = vld [vmem:[%s704 + $0x1b9] sm:$0xff]
  %v803 = vld [vmem:[%s704 + $0x1c9] sm:$0xff]
  %v804 = vld [vmem:[%s704 + $0x1d1] sm:$0xff]
  %v805 = vld [vmem:[%s704 + $0x1e1] sm:$0xff]
  %v806 = vld [vmem:[%s704 + $0x1e9] sm:$0xff]
  %v807 = vld [vmem:[%s704 + $0x1f9] sm:$0xff]
  %v808 = vld [vmem:[%s704 + $0x201] sm:$0xff]
  %v809 = vld [vmem:[%s704 + $0x211] sm:$0xff]
  %v810 = vld [vmem:[%s704 + $0x219] sm:$0xff]
  %v811 = vld [vmem:[%s704 + $0x229] sm:$0xff]
  %v812 = vld [vmem:[%s704 + $0x231] sm:$0xff]
  %v813 = vld [vmem:[%s704 + $0x241] sm:$0xff]
  %v814 = vld [vmem:[%s704 + $0x249] sm:$0xff]
  %v815 = vld [vmem:[%s704 + $0x259] sm:$0xff]
  %v816 = vld [vmem:[%s704 + $0x261] sm:$0xff]
  %v817 = vld [vmem:[%s704 + $0x271] sm:$0xff]
  %v818 = vld [vmem:[%s704 + $0x279] sm:$0xff]
  %v819 = vld [vmem:[%s704 + $0x289] sm:$0xff]
  %v820 = vld [vmem:[%s704 + $0x291] sm:$0xff]
  %v821 = vld [vmem:[%s704 + $0x2a1] sm:$0xff]
  %v822 = vld [vmem:[%s704 + $0x2a9] sm:$0xff]
  %v823 = vld [vmem:[%s704 + $0x2b9] sm:$0xff]
  %v824 = vld [vmem:[%s704 + $0x2c1] sm:$0xff]
  %v825 = vld [vmem:[%s704 + $0x2d1] sm:$0xff]
  %v826 = vld [vmem:[%s704 + $0x2d9] sm:$0xff]
  %v827 = vld [vmem:[%s704 + $0x2e9] sm:$0xff]
  %v828 = vld [vmem:[%s704 + $0x2f1] sm:$0xff]
  %v829 = vld [vmem:[%s704 + $0x301] sm:$0xff]
  %v830 = vld [vmem:[%s704 + $0x309] sm:$0xff]
  %v831 = vld [vmem:[%s704 + $0x319] sm:$0xff]
  %v832 = vld [vmem:[%s704 + $0x321] sm:$0xff]
  %v833 = vld [vmem:[%s704 + $0x2] sm:$0xff]
  %v834 = vld [vmem:[%s704 + $0xa] sm:$0xff]
  %v835 = vld [vmem:[%s704 + $0x1a] sm:$0xff]
  %v836 = vld [vmem:[%s704 + $0x22] sm:$0xff]
  %v837 = vld [vmem:[%s704 + $0x32] sm:$0xff]
  %v838 = vld [vmem:[%s704 + $0x3a] sm:$0xff]
  %v839 = vld [vmem:[%s704 + $0x4a] sm:$0xff]
  %v840 = vld [vmem:[%s704 + $0x52] sm:$0xff]
  %v841 = vld [vmem:[%s704 + $0x62] sm:$0xff]
  %v842 = vld [vmem:[%s704 + $0x6a] sm:$0xff]
  %v843 = vld [vmem:[%s704 + $0x7a] sm:$0xff]
  %v844 = vld [vmem:[%s704 + $0x82] sm:$0xff]
  %v845 = vld [vmem:[%s704 + $0x92] sm:$0xff]
  %v846 = vld [vmem:[%s704 + $0x9a] sm:$0xff]
  %v847 = vld [vmem:[%s704 + $0xaa] sm:$0xff]
  %v848 = vld [vmem:[%s704 + $0xb2] sm:$0xff]
  %v849 = vld [vmem:[%s704 + $0xc2] sm:$0xff]
  %v850 = vld [vmem:[%s704 + $0xca] sm:$0xff]
  %v851 = vld [vmem:[%s704 + $0xda] sm:$0xff]
  %v852 = vld [vmem:[%s704 + $0xe2] sm:$0xff]
  %v853 = vld [vmem:[%s704 + $0xf2] sm:$0xff]
  %v854 = vld [vmem:[%s704 + $0xfa] sm:$0xff]
  %v855 = vld [vmem:[%s704 + $0x10a] sm:$0xff]
  %v856 = vld [vmem:[%s704 + $0x112] sm:$0xff]
  %v857 = vld [vmem:[%s704 + $0x122] sm:$0xff]
  %v858 = vld [vmem:[%s704 + $0x12a] sm:$0xff]
  %v859 = vld [vmem:[%s704 + $0x13a] sm:$0xff]
  %v860 = vld [vmem:[%s704 + $0x142] sm:$0xff]
  %v861 = vld [vmem:[%s704 + $0x152] sm:$0xff]
  %v862 = vld [vmem:[%s704 + $0x15a] sm:$0xff]
  %v863 = vld [vmem:[%s704 + $0x16a] sm:$0xff]
  %v864 = vld [vmem:[%s704 + $0x172] sm:$0xff]
  %v865 = vld [vmem:[%s704 + $0x1b2] sm:$0xff]
  %v866 = vld [vmem:[%s704 + $0x1ba] sm:$0xff]
  %v867 = vld [vmem:[%s704 + $0x1ca] sm:$0xff]
  %v868 = vld [vmem:[%s704 + $0x1d2] sm:$0xff]
  %v869 = vld [vmem:[%s704 + $0x1e2] sm:$0xff]
  %v870 = vld [vmem:[%s704 + $0x1ea] sm:$0xff]
  %v871 = vld [vmem:[%s704 + $0x1fa] sm:$0xff]
  %v872 = vld [vmem:[%s704 + $0x202] sm:$0xff]
  %v873 = vld [vmem:[%s704 + $0x212] sm:$0xff]
  %v874 = vld [vmem:[%s704 + $0x21a] sm:$0xff]
  %v875 = vld [vmem:[%s704 + $0x22a] sm:$0xff]
  %v876 = vld [vmem:[%s704 + $0x232] sm:$0xff]
  %v877 = vld [vmem:[%s704 + $0x242] sm:$0xff]
  %v878 = vld [vmem:[%s704 + $0x24a] sm:$0xff]
  %v879 = vld [vmem:[%s704 + $0x25a] sm:$0xff]
  %v880 = vld [vmem:[%s704 + $0x262] sm:$0xff]
  %v881 = vld [vmem:[%s704 + $0x272] sm:$0xff]
  %v882 = vld [vmem:[%s704 + $0x27a] sm:$0xff]
  %v883 = vld [vmem:[%s704 + $0x28a] sm:$0xff]
  %v884 = vld [vmem:[%s704 + $0x292] sm:$0xff]
  %v885 = vld [vmem:[%s704 + $0x2a2] sm:$0xff]
  %v886 = vld [vmem:[%s704 + $0x2aa] sm:$0xff]
  %v887 = vld [vmem:[%s704 + $0x2ba] sm:$0xff]
  %v888 = vld [vmem:[%s704 + $0x2c2] sm:$0xff]
  %v889 = vld [vmem:[%s704 + $0x2d2] sm:$0xff]
  %v890 = vld [vmem:[%s704 + $0x2da] sm:$0xff]
  %v891 = vld [vmem:[%s704 + $0x2ea] sm:$0xff]
  %v892 = vld [vmem:[%s704 + $0x2f2] sm:$0xff]
  %v893 = vld [vmem:[%s704 + $0x302] sm:$0xff]
  %v894 = vld [vmem:[%s704 + $0x30a] sm:$0xff]
  %v895 = vld [vmem:[%s704 + $0x31a] sm:$0xff]
  %v896 = vld [vmem:[%s704 + $0x322] sm:$0xff]
  %961 = vrot.lane.b32.xlu0 %v384, 4
  %v962 = vpop.permute.xlu0 %961
  %963 = vrot.lane.b32.xlu0 %v385, 4
  %v964 = vpop.permute.xlu0 %963
  %965 = vrot.lane.b32.xlu0 %v386, 4
  %v966 = vpop.permute.xlu0 %965
  %967 = vrot.lane.b32.xlu0 %v387, 4
  %v968 = vpop.permute.xlu0 %967
  %969 = vrot.lane.b32.xlu0 %v388, 4
  %v970 = vpop.permute.xlu0 %969
  %971 = vrot.lane.b32.xlu0 %v389, 4
  %v972 = vpop.permute.xlu0 %971
  %973 = vrot.lane.b32.xlu0 %v390, 4
  %v974 = vpop.permute.xlu0 %973
  %975 = vrot.lane.b32.xlu0 %v391, 4
  %v976 = vpop.permute.xlu0 %975
  %977 = vrot.lane.b32.xlu0 %v392, 4
  %v978 = vpop.permute.xlu0 %977
  %979 = vrot.lane.b32.xlu0 %v393, 4
  %v980 = vpop.permute.xlu0 %979
  %981 = vrot.lane.b32.xlu0 %v394, 4
  %v982 = vpop.permute.xlu0 %981
  %983 = vrot.lane.b32.xlu0 %v395, 4
  %v984 = vpop.permute.xlu0 %983
  %985 = vrot.lane.b32.xlu0 %v396, 4
  %v986 = vpop.permute.xlu0 %985
  %987 = vrot.lane.b32.xlu0 %v397, 4
  %v988 = vpop.permute.xlu0 %987
  %989 = vrot.lane.b32.xlu0 %v398, 4
  %v990 = vpop.permute.xlu0 %989
  %991 = vrot.lane.b32.xlu0 %v399, 4
  %v992 = vpop.permute.xlu0 %991
  %993 = vrot.lane.b32.xlu0 %v400, 4
  %v994 = vpop.permute.xlu0 %993
  %995 = vrot.lane.b32.xlu0 %v401, 4
  %v996 = vpop.permute.xlu0 %995
  %997 = vrot.lane.b32.xlu0 %v402, 4
  %v998 = vpop.permute.xlu0 %997
  %999 = vrot.lane.b32.xlu0 %v403, 4
  %v1000 = vpop.permute.xlu0 %999
  %1001 = vrot.lane.b32.xlu0 %v404, 4
  %v1002 = vpop.permute.xlu0 %1001
  %1003 = vrot.lane.b32.xlu0 %v405, 4
  %v1004 = vpop.permute.xlu0 %1003
  %1005 = vrot.lane.b32.xlu0 %v406, 4
  %v1006 = vpop.permute.xlu0 %1005
  %1007 = vrot.lane.b32.xlu0 %v407, 4
  %v1008 = vpop.permute.xlu0 %1007
  %1009 = vrot.lane.b32.xlu0 %v408, 4
  %v1010 = vpop.permute.xlu0 %1009
  %1011 = vrot.lane.b32.xlu0 %v409, 4
  %v1012 = vpop.permute.xlu0 %1011
  %1013 = vrot.lane.b32.xlu0 %v410, 4
  %v1014 = vpop.permute.xlu0 %1013
  %1015 = vrot.lane.b32.xlu0 %v411, 4
  %v1016 = vpop.permute.xlu0 %1015
  %1017 = vrot.lane.b32.xlu0 %v412, 4
  %v1018 = vpop.permute.xlu0 %1017
  %1019 = vrot.lane.b32.xlu0 %v413, 4
  %v1020 = vpop.permute.xlu0 %1019
  %1021 = vrot.lane.b32.xlu0 %v414, 4
  %v1022 = vpop.permute.xlu0 %1021
  %1023 = vrot.lane.b32.xlu0 %v415, 4
  %v1024 = vpop.permute.xlu0 %1023
  %1025 = vrot.lane.b32.xlu0 %v416, 4
  %v1026 = vpop.permute.xlu0 %1025
  %1027 = vrot.lane.b32.xlu0 %v417, 4
  %v1028 = vpop.permute.xlu0 %1027
  %1029 = vrot.lane.b32.xlu0 %v418, 4
  %v1030 = vpop.permute.xlu0 %1029
  %1031 = vrot.lane.b32.xlu0 %v419, 4
  %v1032 = vpop.permute.xlu0 %1031
  %1033 = vrot.lane.b32.xlu0 %v420, 4
  %v1034 = vpop.permute.xlu0 %1033
  %1035 = vrot.lane.b32.xlu0 %v421, 4
  %v1036 = vpop.permute.xlu0 %1035
  %1037 = vrot.lane.b32.xlu0 %v422, 4
  %v1038 = vpop.permute.xlu0 %1037
  %1039 = vrot.lane.b32.xlu0 %v423, 4
  %v1040 = vpop.permute.xlu0 %1039
  %1041 = vrot.lane.b32.xlu0 %v424, 4
  %v1042 = vpop.permute.xlu0 %1041
  %1043 = vrot.lane.b32.xlu0 %v425, 4
  %v1044 = vpop.permute.xlu0 %1043
  %1045 = vrot.lane.b32.xlu0 %v426, 4
  %v1046 = vpop.permute.xlu0 %1045
  %1047 = vrot.lane.b32.xlu0 %v427, 4
  %v1048 = vpop.permute.xlu0 %1047
  %1049 = vrot.lane.b32.xlu0 %v428, 4
  %v1050 = vpop.permute.xlu0 %1049
  %1051 = vrot.lane.b32.xlu0 %v429, 4
  %v1052 = vpop.permute.xlu0 %1051
  %1053 = vrot.lane.b32.xlu0 %v430, 4
  %v1054 = vpop.permute.xlu0 %1053
  %1055 = vrot.lane.b32.xlu0 %v431, 4
  %v1056 = vpop.permute.xlu0 %1055
  %1057 = vrot.lane.b32.xlu0 %v432, 4
  %v1058 = vpop.permute.xlu0 %1057
  %1059 = vrot.lane.b32.xlu0 %v433, 4
  %v1060 = vpop.permute.xlu0 %1059
  %1061 = vrot.lane.b32.xlu0 %v434, 4
  %v1062 = vpop.permute.xlu0 %1061
  %1063 = vrot.lane.b32.xlu0 %v435, 4
  %v1064 = vpop.permute.xlu0 %1063
  %1065 = vrot.lane.b32.xlu0 %v436, 4
  %v1066 = vpop.permute.xlu0 %1065
  %1067 = vrot.lane.b32.xlu0 %v437, 4
  %v1068 = vpop.permute.xlu0 %1067
  %1069 = vrot.lane.b32.xlu0 %v438, 4
  %v1070 = vpop.permute.xlu0 %1069
  %1071 = vrot.lane.b32.xlu0 %v439, 4
  %v1072 = vpop.permute.xlu0 %1071
  %1073 = vrot.lane.b32.xlu0 %v440, 4
  %v1074 = vpop.permute.xlu0 %1073
  %1075 = vrot.lane.b32.xlu0 %v441, 4
  %v1076 = vpop.permute.xlu0 %1075
  %1077 = vrot.lane.b32.xlu0 %v442, 4
  %v1078 = vpop.permute.xlu0 %1077
  %1079 = vrot.lane.b32.xlu0 %v443, 4
  %v1080 = vpop.permute.xlu0 %1079
  %1081 = vrot.lane.b32.xlu0 %v444, 4
  %v1082 = vpop.permute.xlu0 %1081
  %1083 = vrot.lane.b32.xlu0 %v445, 4
  %v1084 = vpop.permute.xlu0 %1083
  %1085 = vrot.lane.b32.xlu0 %v446, 4
  %v1086 = vpop.permute.xlu0 %1085
  %1087 = vrot.lane.b32.xlu0 %v447, 4
  %v1088 = vpop.permute.xlu0 %1087
  %1217 = vrot.lane.b32.xlu0 %v448, 8
  %v1218 = vpop.permute.xlu0 %1217
  %1219 = vrot.lane.b32.xlu0 %v449, 8
  %v1220 = vpop.permute.xlu0 %1219
  %1221 = vrot.lane.b32.xlu0 %v450, 8
  %v1222 = vpop.permute.xlu0 %1221
  %1223 = vrot.lane.b32.xlu0 %v451, 8
  %v1224 = vpop.permute.xlu0 %1223
  %1225 = vrot.lane.b32.xlu0 %v452, 8
  %v1226 = vpop.permute.xlu0 %1225
  %1227 = vrot.lane.b32.xlu0 %v453, 8
  %v1228 = vpop.permute.xlu0 %1227
  %1229 = vrot.lane.b32.xlu0 %v454, 8
  %v1230 = vpop.permute.xlu0 %1229
  %1231 = vrot.lane.b32.xlu0 %v455, 8
  %v1232 = vpop.permute.xlu0 %1231
  %1233 = vrot.lane.b32.xlu0 %v456, 8
  %v1234 = vpop.permute.xlu0 %1233
  %1235 = vrot.lane.b32.xlu0 %v457, 8
  %v1236 = vpop.permute.xlu0 %1235
  %1237 = vrot.lane.b32.xlu0 %v458, 8
  %v1238 = vpop.permute.xlu0 %1237
  %1239 = vrot.lane.b32.xlu0 %v459, 8
  %v1240 = vpop.permute.xlu0 %1239
  %1241 = vrot.lane.b32.xlu0 %v460, 8
  %v1242 = vpop.permute.xlu0 %1241
  %1243 = vrot.lane.b32.xlu0 %v461, 8
  %v1244 = vpop.permute.xlu0 %1243
  %1245 = vrot.lane.b32.xlu0 %v462, 8
  %v1246 = vpop.permute.xlu0 %1245
  %1247 = vrot.lane.b32.xlu0 %v463, 8
  %v1248 = vpop.permute.xlu0 %1247
  %1249 = vrot.lane.b32.xlu0 %v464, 8
  %v1250 = vpop.permute.xlu0 %1249
  %1251 = vrot.lane.b32.xlu0 %v465, 8
  %v1252 = vpop.permute.xlu0 %1251
  %1253 = vrot.lane.b32.xlu0 %v466, 8
  %v1254 = vpop.permute.xlu0 %1253
  %1255 = vrot.lane.b32.xlu0 %v467, 8
  %v1256 = vpop.permute.xlu0 %1255
  %1257 = vrot.lane.b32.xlu0 %v468, 8
  %v1258 = vpop.permute.xlu0 %1257
  %1259 = vrot.lane.b32.xlu0 %v469, 8
  %v1260 = vpop.permute.xlu0 %1259
  %1261 = vrot.lane.b32.xlu0 %v470, 8
  %v1262 = vpop.permute.xlu0 %1261
  %1263 = vrot.lane.b32.xlu0 %v471, 8
  %v1264 = vpop.permute.xlu0 %1263
  %1265 = vrot.lane.b32.xlu0 %v472, 8
  %v1266 = vpop.permute.xlu0 %1265
  %1267 = vrot.lane.b32.xlu0 %v473, 8
  %v1268 = vpop.permute.xlu0 %1267
  %1269 = vrot.lane.b32.xlu0 %v474, 8
  %v1270 = vpop.permute.xlu0 %1269
  %1271 = vrot.lane.b32.xlu0 %v475, 8
  %v1272 = vpop.permute.xlu0 %1271
  %1273 = vrot.lane.b32.xlu0 %v476, 8
  %v1274 = vpop.permute.xlu0 %1273
  %1275 = vrot.lane.b32.xlu0 %v477, 8
  %v1276 = vpop.permute.xlu0 %1275
  %1277 = vrot.lane.b32.xlu0 %v478, 8
  %v1278 = vpop.permute.xlu0 %1277
  %1279 = vrot.lane.b32.xlu0 %v479, 8
  %v1280 = vpop.permute.xlu0 %1279
  %1281 = vrot.lane.b32.xlu0 %v480, 8
  %v1282 = vpop.permute.xlu0 %1281
  %1283 = vrot.lane.b32.xlu0 %v481, 8
  %v1284 = vpop.permute.xlu0 %1283
  %1285 = vrot.lane.b32.xlu0 %v482, 8
  %v1286 = vpop.permute.xlu0 %1285
  %1287 = vrot.lane.b32.xlu0 %v483, 8
  %v1288 = vpop.permute.xlu0 %1287
  %1289 = vrot.lane.b32.xlu0 %v484, 8
  %v1290 = vpop.permute.xlu0 %1289
  %1291 = vrot.lane.b32.xlu0 %v485, 8
  %v1292 = vpop.permute.xlu0 %1291
  %1293 = vrot.lane.b32.xlu0 %v486, 8
  %v1294 = vpop.permute.xlu0 %1293
  %1295 = vrot.lane.b32.xlu0 %v487, 8
  %v1296 = vpop.permute.xlu0 %1295
  %1297 = vrot.lane.b32.xlu0 %v488, 8
  %v1298 = vpop.permute.xlu0 %1297
  %1299 = vrot.lane.b32.xlu0 %v489, 8
  %v1300 = vpop.permute.xlu0 %1299
  %1301 = vrot.lane.b32.xlu0 %v490, 8
  %v1302 = vpop.permute.xlu0 %1301
  %1303 = vrot.lane.b32.xlu0 %v491, 8
  %v1304 = vpop.permute.xlu0 %1303
  %1305 = vrot.lane.b32.xlu0 %v492, 8
  %v1306 = vpop.permute.xlu0 %1305
  %1307 = vrot.lane.b32.xlu0 %v493, 8
  %v1308 = vpop.permute.xlu0 %1307
  %1309 = vrot.lane.b32.xlu0 %v494, 8
  %v1310 = vpop.permute.xlu0 %1309
  %1311 = vrot.lane.b32.xlu0 %v495, 8
  %v1312 = vpop.permute.xlu0 %1311
  %1313 = vrot.lane.b32.xlu0 %v496, 8
  %v1314 = vpop.permute.xlu0 %1313
  %1315 = vrot.lane.b32.xlu0 %v497, 8
  %v1316 = vpop.permute.xlu0 %1315
  %1317 = vrot.lane.b32.xlu0 %v498, 8
  %v1318 = vpop.permute.xlu0 %1317
  %1319 = vrot.lane.b32.xlu0 %v499, 8
  %v1320 = vpop.permute.xlu0 %1319
  %1321 = vrot.lane.b32.xlu0 %v500, 8
  %v1322 = vpop.permute.xlu0 %1321
  %1323 = vrot.lane.b32.xlu0 %v501, 8
  %v1324 = vpop.permute.xlu0 %1323
  %1325 = vrot.lane.b32.xlu0 %v502, 8
  %v1326 = vpop.permute.xlu0 %1325
  %1327 = vrot.lane.b32.xlu0 %v503, 8
  %v1328 = vpop.permute.xlu0 %1327
  %1329 = vrot.lane.b32.xlu0 %v504, 8
  %v1330 = vpop.permute.xlu0 %1329
  %1331 = vrot.lane.b32.xlu0 %v505, 8
  %v1332 = vpop.permute.xlu0 %1331
  %1333 = vrot.lane.b32.xlu0 %v506, 8
  %v1334 = vpop.permute.xlu0 %1333
  %1335 = vrot.lane.b32.xlu0 %v507, 8
  %v1336 = vpop.permute.xlu0 %1335
  %1337 = vrot.lane.b32.xlu0 %v508, 8
  %v1338 = vpop.permute.xlu0 %1337
  %1339 = vrot.lane.b32.xlu0 %v509, 8
  %v1340 = vpop.permute.xlu0 %1339
  %1341 = vrot.lane.b32.xlu0 %v510, 8
  %v1342 = vpop.permute.xlu0 %1341
  %1343 = vrot.lane.b32.xlu0 %v511, 8
  %v1344 = vpop.permute.xlu0 %1343
  %1473 = vrot.lane.b32.xlu0 %v512, 12
  %v1474 = vpop.permute.xlu0 %1473
  %1475 = vrot.lane.b32.xlu0 %v513, 12
  %v1476 = vpop.permute.xlu0 %1475
  %1477 = vrot.lane.b32.xlu0 %v514, 12
  %v1478 = vpop.permute.xlu0 %1477
  %1479 = vrot.lane.b32.xlu0 %v515, 12
  %v1480 = vpop.permute.xlu0 %1479
  %1481 = vrot.lane.b32.xlu0 %v516, 12
  %v1482 = vpop.permute.xlu0 %1481
  %1483 = vrot.lane.b32.xlu0 %v517, 12
  %v1484 = vpop.permute.xlu0 %1483
  %1485 = vrot.lane.b32.xlu0 %v518, 12
  %v1486 = vpop.permute.xlu0 %1485
  %1487 = vrot.lane.b32.xlu0 %v519, 12
  %v1488 = vpop.permute.xlu0 %1487
  %1489 = vrot.lane.b32.xlu0 %v520, 12
  %v1490 = vpop.permute.xlu0 %1489
  %1491 = vrot.lane.b32.xlu0 %v521, 12
  %v1492 = vpop.permute.xlu0 %1491
  %1493 = vrot.lane.b32.xlu0 %v522, 12
  %v1494 = vpop.permute.xlu0 %1493
  %1495 = vrot.lane.b32.xlu0 %v523, 12
  %v1496 = vpop.permute.xlu0 %1495
  %1497 = vrot.lane.b32.xlu0 %v524, 12
  %v1498 = vpop.permute.xlu0 %1497
  %1499 = vrot.lane.b32.xlu0 %v525, 12
  %v1500 = vpop.permute.xlu0 %1499
  %1501 = vrot.lane.b32.xlu0 %v526, 12
  %v1502 = vpop.permute.xlu0 %1501
  %1503 = vrot.lane.b32.xlu0 %v527, 12
  %v1504 = vpop.permute.xlu0 %1503
  %1505 = vrot.lane.b32.xlu0 %v528, 12
  %v1506 = vpop.permute.xlu0 %1505
  %1507 = vrot.lane.b32.xlu0 %v529, 12
  %v1508 = vpop.permute.xlu0 %1507
  %1509 = vrot.lane.b32.xlu0 %v530, 12
  %v1510 = vpop.permute.xlu0 %1509
  %1511 = vrot.lane.b32.xlu0 %v531, 12
  %v1512 = vpop.permute.xlu0 %1511
  %1513 = vrot.lane.b32.xlu0 %v532, 12
  %v1514 = vpop.permute.xlu0 %1513
  %1515 = vrot.lane.b32.xlu0 %v533, 12
  %v1516 = vpop.permute.xlu0 %1515
  %1517 = vrot.lane.b32.xlu0 %v534, 12
  %v1518 = vpop.permute.xlu0 %1517
  %1519 = vrot.lane.b32.xlu0 %v535, 12
  %v1520 = vpop.permute.xlu0 %1519
  %1521 = vrot.lane.b32.xlu0 %v536, 12
  %v1522 = vpop.permute.xlu0 %1521
  %1523 = vrot.lane.b32.xlu0 %v537, 12
  %v1524 = vpop.permute.xlu0 %1523
  %1525 = vrot.lane.b32.xlu0 %v538, 12
  %v1526 = vpop.permute.xlu0 %1525
  %1527 = vrot.lane.b32.xlu0 %v539, 12
  %v1528 = vpop.permute.xlu0 %1527
  %1529 = vrot.lane.b32.xlu0 %v540, 12
  %v1530 = vpop.permute.xlu0 %1529
  %1531 = vrot.lane.b32.xlu0 %v541, 12
  %v1532 = vpop.permute.xlu0 %1531
  %1533 = vrot.lane.b32.xlu0 %v542, 12
  %v1534 = vpop.permute.xlu0 %1533
  %1535 = vrot.lane.b32.xlu0 %v543, 12
  %v1536 = vpop.permute.xlu0 %1535
  %1537 = vrot.lane.b32.xlu0 %v544, 12
  %v1538 = vpop.permute.xlu0 %1537
  %1539 = vrot.lane.b32.xlu0 %v545, 12
  %v1540 = vpop.permute.xlu0 %1539
  %1541 = vrot.lane.b32.xlu0 %v546, 12
  %v1542 = vpop.permute.xlu0 %1541
  %1543 = vrot.lane.b32.xlu0 %v547, 12
  %v1544 = vpop.permute.xlu0 %1543
  %1545 = vrot.lane.b32.xlu0 %v548, 12
  %v1546 = vpop.permute.xlu0 %1545
  %1547 = vrot.lane.b32.xlu0 %v549, 12
  %v1548 = vpop.permute.xlu0 %1547
  %1549 = vrot.lane.b32.xlu0 %v550, 12
  %v1550 = vpop.permute.xlu0 %1549
  %1551 = vrot.lane.b32.xlu0 %v551, 12
  %v1552 = vpop.permute.xlu0 %1551
  %1553 = vrot.lane.b32.xlu0 %v552, 12
  %v1554 = vpop.permute.xlu0 %1553
  %1555 = vrot.lane.b32.xlu0 %v553, 12
  %v1556 = vpop.permute.xlu0 %1555
  %1557 = vrot.lane.b32.xlu0 %v554, 12
  %v1558 = vpop.permute.xlu0 %1557
  %1559 = vrot.lane.b32.xlu0 %v555, 12
  %v1560 = vpop.permute.xlu0 %1559
  %1561 = vrot.lane.b32.xlu0 %v556, 12
  %v1562 = vpop.permute.xlu0 %1561
  %1563 = vrot.lane.b32.xlu0 %v557, 12
  %v1564 = vpop.permute.xlu0 %1563
  %1565 = vrot.lane.b32.xlu0 %v558, 12
  %v1566 = vpop.permute.xlu0 %1565
  %1567 = vrot.lane.b32.xlu0 %v559, 12
  %v1568 = vpop.permute.xlu0 %1567
  %1569 = vrot.lane.b32.xlu0 %v560, 12
  %v1570 = vpop.permute.xlu0 %1569
  %1571 = vrot.lane.b32.xlu0 %v561, 12
  %v1572 = vpop.permute.xlu0 %1571
  %1573 = vrot.lane.b32.xlu0 %v562, 12
  %v1574 = vpop.permute.xlu0 %1573
  %1575 = vrot.lane.b32.xlu0 %v563, 12
  %v1576 = vpop.permute.xlu0 %1575
  %1577 = vrot.lane.b32.xlu0 %v564, 12
  %v1578 = vpop.permute.xlu0 %1577
  %1579 = vrot.lane.b32.xlu0 %v565, 12
  %v1580 = vpop.permute.xlu0 %1579
  %1581 = vrot.lane.b32.xlu0 %v566, 12
  %v1582 = vpop.permute.xlu0 %1581
  %1583 = vrot.lane.b32.xlu0 %v567, 12
  %v1584 = vpop.permute.xlu0 %1583
  %1585 = vrot.lane.b32.xlu0 %v568, 12
  %v1586 = vpop.permute.xlu0 %1585
  %1587 = vrot.lane.b32.xlu0 %v569, 12
  %v1588 = vpop.permute.xlu0 %1587
  %1589 = vrot.lane.b32.xlu0 %v570, 12
  %v1590 = vpop.permute.xlu0 %1589
  %1591 = vrot.lane.b32.xlu0 %v571, 12
  %v1592 = vpop.permute.xlu0 %1591
  %1593 = vrot.lane.b32.xlu0 %v572, 12
  %v1594 = vpop.permute.xlu0 %1593
  %1595 = vrot.lane.b32.xlu0 %v573, 12
  %v1596 = vpop.permute.xlu0 %1595
  %1597 = vrot.lane.b32.xlu0 %v574, 12
  %v1598 = vpop.permute.xlu0 %1597
  %1599 = vrot.lane.b32.xlu0 %v575, 12
  %v1600 = vpop.permute.xlu0 %1599
  %1729 = vrot.lane.b32.xlu0 %v576, 16
  %v1730 = vpop.permute.xlu0 %1729
  %1731 = vrot.lane.b32.xlu0 %v577, 16
  %v1732 = vpop.permute.xlu0 %1731
  %1733 = vrot.lane.b32.xlu0 %v578, 16
  %v1734 = vpop.permute.xlu0 %1733
  %1735 = vrot.lane.b32.xlu0 %v579, 16
  %v1736 = vpop.permute.xlu0 %1735
  %1737 = vrot.lane.b32.xlu0 %v580, 16
  %v1738 = vpop.permute.xlu0 %1737
  %1739 = vrot.lane.b32.xlu0 %v581, 16
  %v1740 = vpop.permute.xlu0 %1739
  %1741 = vrot.lane.b32.xlu0 %v582, 16
  %v1742 = vpop.permute.xlu0 %1741
  %1743 = vrot.lane.b32.xlu0 %v583, 16
  %v1744 = vpop.permute.xlu0 %1743
  %1745 = vrot.lane.b32.xlu0 %v584, 16
  %v1746 = vpop.permute.xlu0 %1745
  %1747 = vrot.lane.b32.xlu0 %v585, 16
  %v1748 = vpop.permute.xlu0 %1747
  %1749 = vrot.lane.b32.xlu0 %v586, 16
  %v1750 = vpop.permute.xlu0 %1749
  %1751 = vrot.lane.b32.xlu0 %v587, 16
  %v1752 = vpop.permute.xlu0 %1751
  %1753 = vrot.lane.b32.xlu0 %v588, 16
  %v1754 = vpop.permute.xlu0 %1753
  %1755 = vrot.lane.b32.xlu0 %v589, 16
  %v1756 = vpop.permute.xlu0 %1755
  %1757 = vrot.lane.b32.xlu0 %v590, 16
  %v1758 = vpop.permute.xlu0 %1757
  %1759 = vrot.lane.b32.xlu0 %v591, 16
  %v1760 = vpop.permute.xlu0 %1759
  %1761 = vrot.lane.b32.xlu0 %v592, 16
  %v1762 = vpop.permute.xlu0 %1761
  %1763 = vrot.lane.b32.xlu0 %v593, 16
  %v1764 = vpop.permute.xlu0 %1763
  %1765 = vrot.lane.b32.xlu0 %v594, 16
  %v1766 = vpop.permute.xlu0 %1765
  %1767 = vrot.lane.b32.xlu0 %v595, 16
  %v1768 = vpop.permute.xlu0 %1767
  %1769 = vrot.lane.b32.xlu0 %v596, 16
  %v1770 = vpop.permute.xlu0 %1769
  %1771 = vrot.lane.b32.xlu0 %v597, 16
  %v1772 = vpop.permute.xlu0 %1771
  %1773 = vrot.lane.b32.xlu0 %v598, 16
  %v1774 = vpop.permute.xlu0 %1773
  %1775 = vrot.lane.b32.xlu0 %v599, 16
  %v1776 = vpop.permute.xlu0 %1775
  %1777 = vrot.lane.b32.xlu0 %v600, 16
  %v1778 = vpop.permute.xlu0 %1777
  %1779 = vrot.lane.b32.xlu0 %v601, 16
  %v1780 = vpop.permute.xlu0 %1779
  %1781 = vrot.lane.b32.xlu0 %v602, 16
  %v1782 = vpop.permute.xlu0 %1781
  %1783 = vrot.lane.b32.xlu0 %v603, 16
  %v1784 = vpop.permute.xlu0 %1783
  %1785 = vrot.lane.b32.xlu0 %v604, 16
  %v1786 = vpop.permute.xlu0 %1785
  %1787 = vrot.lane.b32.xlu0 %v605, 16
  %v1788 = vpop.permute.xlu0 %1787
  %1789 = vrot.lane.b32.xlu0 %v606, 16
  %v1790 = vpop.permute.xlu0 %1789
  %1791 = vrot.lane.b32.xlu0 %v607, 16
  %v1792 = vpop.permute.xlu0 %1791
  %1793 = vrot.lane.b32.xlu0 %v608, 16
  %v1794 = vpop.permute.xlu0 %1793
  %1795 = vrot.lane.b32.xlu0 %v609, 16
  %v1796 = vpop.permute.xlu0 %1795
  %1797 = vrot.lane.b32.xlu0 %v610, 16
  %v1798 = vpop.permute.xlu0 %1797
  %1799 = vrot.lane.b32.xlu0 %v611, 16
  %v1800 = vpop.permute.xlu0 %1799
  %1801 = vrot.lane.b32.xlu0 %v612, 16
  %v1802 = vpop.permute.xlu0 %1801
  %1803 = vrot.lane.b32.xlu0 %v613, 16
  %v1804 = vpop.permute.xlu0 %1803
  %1805 = vrot.lane.b32.xlu0 %v614, 16
  %v1806 = vpop.permute.xlu0 %1805
  %1807 = vrot.lane.b32.xlu0 %v615, 16
  %v1808 = vpop.permute.xlu0 %1807
  %1809 = vrot.lane.b32.xlu0 %v616, 16
  %v1810 = vpop.permute.xlu0 %1809
  %1811 = vrot.lane.b32.xlu0 %v617, 16
  %v1812 = vpop.permute.xlu0 %1811
  %1813 = vrot.lane.b32.xlu0 %v618, 16
  %v1814 = vpop.permute.xlu0 %1813
  %1815 = vrot.lane.b32.xlu0 %v619, 16
  %v1816 = vpop.permute.xlu0 %1815
  %1817 = vrot.lane.b32.xlu0 %v620, 16
  %v1818 = vpop.permute.xlu0 %1817
  %1819 = vrot.lane.b32.xlu0 %v621, 16
  %v1820 = vpop.permute.xlu0 %1819
  %1821 = vrot.lane.b32.xlu0 %v622, 16
  %v1822 = vpop.permute.xlu0 %1821
  %1823 = vrot.lane.b32.xlu0 %v623, 16
  %v1824 = vpop.permute.xlu0 %1823
  %1825 = vrot.lane.b32.xlu0 %v624, 16
  %v1826 = vpop.permute.xlu0 %1825
  %1827 = vrot.lane.b32.xlu0 %v625, 16
  %v1828 = vpop.permute.xlu0 %1827
  %1829 = vrot.lane.b32.xlu0 %v626, 16
  %v1830 = vpop.permute.xlu0 %1829
  %1831 = vrot.lane.b32.xlu0 %v627, 16
  %v1832 = vpop.permute.xlu0 %1831
  %1833 = vrot.lane.b32.xlu0 %v628, 16
  %v1834 = vpop.permute.xlu0 %1833
  %1835 = vrot.lane.b32.xlu0 %v629, 16
  %v1836 = vpop.permute.xlu0 %1835
  %1837 = vrot.lane.b32.xlu0 %v630, 16
  %v1838 = vpop.permute.xlu0 %1837
  %1839 = vrot.lane.b32.xlu0 %v631, 16
  %v1840 = vpop.permute.xlu0 %1839
  %1841 = vrot.lane.b32.xlu0 %v632, 16
  %v1842 = vpop.permute.xlu0 %1841
  %1843 = vrot.lane.b32.xlu0 %v633, 16
  %v1844 = vpop.permute.xlu0 %1843
  %1845 = vrot.lane.b32.xlu0 %v634, 16
  %v1846 = vpop.permute.xlu0 %1845
  %1847 = vrot.lane.b32.xlu0 %v635, 16
  %v1848 = vpop.permute.xlu0 %1847
  %1849 = vrot.lane.b32.xlu0 %v636, 16
  %v1850 = vpop.permute.xlu0 %1849
  %1851 = vrot.lane.b32.xlu0 %v637, 16
  %v1852 = vpop.permute.xlu0 %1851
  %1853 = vrot.lane.b32.xlu0 %v638, 16
  %v1854 = vpop.permute.xlu0 %1853
  %1855 = vrot.lane.b32.xlu0 %v639, 16
  %v1856 = vpop.permute.xlu0 %1855
  %1985 = vrot.lane.b32.xlu0 %v640, 20
  %v1986 = vpop.permute.xlu0 %1985
  %1987 = vrot.lane.b32.xlu0 %v641, 20
  %v1988 = vpop.permute.xlu0 %1987
  %1989 = vrot.lane.b32.xlu0 %v642, 20
  %v1990 = vpop.permute.xlu0 %1989
  %1991 = vrot.lane.b32.xlu0 %v643, 20
  %v1992 = vpop.permute.xlu0 %1991
  %1993 = vrot.lane.b32.xlu0 %v644, 20
  %v1994 = vpop.permute.xlu0 %1993
  %1995 = vrot.lane.b32.xlu0 %v645, 20
  %v1996 = vpop.permute.xlu0 %1995
  %1997 = vrot.lane.b32.xlu0 %v646, 20
  %v1998 = vpop.permute.xlu0 %1997
  %1999 = vrot.lane.b32.xlu0 %v647, 20
  %v2000 = vpop.permute.xlu0 %1999
  %2001 = vrot.lane.b32.xlu0 %v648, 20
  %v2002 = vpop.permute.xlu0 %2001
  %2003 = vrot.lane.b32.xlu0 %v649, 20
  %v2004 = vpop.permute.xlu0 %2003
  %2005 = vrot.lane.b32.xlu0 %v650, 20
  %v2006 = vpop.permute.xlu0 %2005
  %2007 = vrot.lane.b32.xlu0 %v651, 20
  %v2008 = vpop.permute.xlu0 %2007
  %2009 = vrot.lane.b32.xlu0 %v652, 20
  %v2010 = vpop.permute.xlu0 %2009
  %2011 = vrot.lane.b32.xlu0 %v653, 20
  %v2012 = vpop.permute.xlu0 %2011
  %2013 = vrot.lane.b32.xlu0 %v654, 20
  %v2014 = vpop.permute.xlu0 %2013
  %2015 = vrot.lane.b32.xlu0 %v655, 20
  %v2016 = vpop.permute.xlu0 %2015
  %2017 = vrot.lane.b32.xlu0 %v656, 20
  %v2018 = vpop.permute.xlu0 %2017
  %2019 = vrot.lane.b32.xlu0 %v657, 20
  %v2020 = vpop.permute.xlu0 %2019
  %2021 = vrot.lane.b32.xlu0 %v658, 20
  %v2022 = vpop.permute.xlu0 %2021
  %2023 = vrot.lane.b32.xlu0 %v659, 20
  %v2024 = vpop.permute.xlu0 %2023
  %2025 = vrot.lane.b32.xlu0 %v660, 20
  %v2026 = vpop.permute.xlu0 %2025
  %2027 = vrot.lane.b32.xlu0 %v661, 20
  %v2028 = vpop.permute.xlu0 %2027
  %2029 = vrot.lane.b32.xlu0 %v662, 20
  %v2030 = vpop.permute.xlu0 %2029
  %2031 = vrot.lane.b32.xlu0 %v663, 20
  %v2032 = vpop.permute.xlu0 %2031
  %2033 = vrot.lane.b32.xlu0 %v664, 20
  %v2034 = vpop.permute.xlu0 %2033
  %2035 = vrot.lane.b32.xlu0 %v665, 20
  %v2036 = vpop.permute.xlu0 %2035
  %2037 = vrot.lane.b32.xlu0 %v666, 20
  %v2038 = vpop.permute.xlu0 %2037
  %2039 = vrot.lane.b32.xlu0 %v667, 20
  %v2040 = vpop.permute.xlu0 %2039
  %2041 = vrot.lane.b32.xlu0 %v668, 20
  %v2042 = vpop.permute.xlu0 %2041
  %2043 = vrot.lane.b32.xlu0 %v669, 20
  %v2044 = vpop.permute.xlu0 %2043
  %2045 = vrot.lane.b32.xlu0 %v670, 20
  %v2046 = vpop.permute.xlu0 %2045
  %2047 = vrot.lane.b32.xlu0 %v671, 20
  %v2048 = vpop.permute.xlu0 %2047
  %2049 = vrot.lane.b32.xlu0 %v672, 20
  %v2050 = vpop.permute.xlu0 %2049
  %2051 = vrot.lane.b32.xlu0 %v673, 20
  %v2052 = vpop.permute.xlu0 %2051
  %2053 = vrot.lane.b32.xlu0 %v674, 20
  %v2054 = vpop.permute.xlu0 %2053
  %2055 = vrot.lane.b32.xlu0 %v675, 20
  %v2056 = vpop.permute.xlu0 %2055
  %2057 = vrot.lane.b32.xlu0 %v676, 20
  %v2058 = vpop.permute.xlu0 %2057
  %2059 = vrot.lane.b32.xlu0 %v677, 20
  %v2060 = vpop.permute.xlu0 %2059
  %2061 = vrot.lane.b32.xlu0 %v678, 20
  %v2062 = vpop.permute.xlu0 %2061
  %2063 = vrot.lane.b32.xlu0 %v679, 20
  %v2064 = vpop.permute.xlu0 %2063
  %2065 = vrot.lane.b32.xlu0 %v680, 20
  %v2066 = vpop.permute.xlu0 %2065
  %2067 = vrot.lane.b32.xlu0 %v681, 20
  %v2068 = vpop.permute.xlu0 %2067
  %2069 = vrot.lane.b32.xlu0 %v682, 20
  %v2070 = vpop.permute.xlu0 %2069
  %2071 = vrot.lane.b32.xlu0 %v683, 20
  %v2072 = vpop.permute.xlu0 %2071
  %2073 = vrot.lane.b32.xlu0 %v684, 20
  %v2074 = vpop.permute.xlu0 %2073
  %2075 = vrot.lane.b32.xlu0 %v685, 20
  %v2076 = vpop.permute.xlu0 %2075
  %2077 = vrot.lane.b32.xlu0 %v686, 20
  %v2078 = vpop.permute.xlu0 %2077
  %2079 = vrot.lane.b32.xlu0 %v687, 20
  %v2080 = vpop.permute.xlu0 %2079
  %2081 = vrot.lane.b32.xlu0 %v688, 20
  %v2082 = vpop.permute.xlu0 %2081
  %2083 = vrot.lane.b32.xlu0 %v689, 20
  %v2084 = vpop.permute.xlu0 %2083
  %2085 = vrot.lane.b32.xlu0 %v690, 20
  %v2086 = vpop.permute.xlu0 %2085
  %2087 = vrot.lane.b32.xlu0 %v691, 20
  %v2088 = vpop.permute.xlu0 %2087
  %2089 = vrot.lane.b32.xlu0 %v692, 20
  %v2090 = vpop.permute.xlu0 %2089
  %2091 = vrot.lane.b32.xlu0 %v693, 20
  %v2092 = vpop.permute.xlu0 %2091
  %2093 = vrot.lane.b32.xlu0 %v694, 20
  %v2094 = vpop.permute.xlu0 %2093
  %2095 = vrot.lane.b32.xlu0 %v695, 20
  %v2096 = vpop.permute.xlu0 %2095
  %2097 = vrot.lane.b32.xlu0 %v696, 20
  %v2098 = vpop.permute.xlu0 %2097
  %2099 = vrot.lane.b32.xlu0 %v697, 20
  %v2100 = vpop.permute.xlu0 %2099
  %2101 = vrot.lane.b32.xlu0 %v698, 20
  %v2102 = vpop.permute.xlu0 %2101
  %2103 = vrot.lane.b32.xlu0 %v699, 20
  %v2104 = vpop.permute.xlu0 %2103
  %2105 = vrot.lane.b32.xlu0 %v700, 20
  %v2106 = vpop.permute.xlu0 %2105
  %2107 = vrot.lane.b32.xlu0 %v701, 20
  %v2108 = vpop.permute.xlu0 %2107
  %2109 = vrot.lane.b32.xlu0 %v702, 20
  %v2110 = vpop.permute.xlu0 %2109
  %2111 = vrot.lane.b32.xlu0 %v703, 20
  %v2112 = vpop.permute.xlu0 %2111
  %2241 = vrot.lane.b32.xlu0 %v705, 24
  %v2242 = vpop.permute.xlu0 %2241
  %2243 = vrot.lane.b32.xlu0 %v706, 24
  %v2244 = vpop.permute.xlu0 %2243
  %2245 = vrot.lane.b32.xlu0 %v707, 24
  %v2246 = vpop.permute.xlu0 %2245
  %2247 = vrot.lane.b32.xlu0 %v708, 24
  %v2248 = vpop.permute.xlu0 %2247
  %2249 = vrot.lane.b32.xlu0 %v709, 24
  %v2250 = vpop.permute.xlu0 %2249
  %2251 = vrot.lane.b32.xlu0 %v710, 24
  %v2252 = vpop.permute.xlu0 %2251
  %2253 = vrot.lane.b32.xlu0 %v711, 24
  %v2254 = vpop.permute.xlu0 %2253
  %2255 = vrot.lane.b32.xlu0 %v712, 24
  %v2256 = vpop.permute.xlu0 %2255
  %2257 = vrot.lane.b32.xlu0 %v713, 24
  %v2258 = vpop.permute.xlu0 %2257
  %2259 = vrot.lane.b32.xlu0 %v714, 24
  %v2260 = vpop.permute.xlu0 %2259
  %2261 = vrot.lane.b32.xlu0 %v715, 24
  %v2262 = vpop.permute.xlu0 %2261
  %2263 = vrot.lane.b32.xlu0 %v716, 24
  %v2264 = vpop.permute.xlu0 %2263
  %2265 = vrot.lane.b32.xlu0 %v717, 24
  %v2266 = vpop.permute.xlu0 %2265
  %2267 = vrot.lane.b32.xlu0 %v718, 24
  %v2268 = vpop.permute.xlu0 %2267
  %2269 = vrot.lane.b32.xlu0 %v719, 24
  %v2270 = vpop.permute.xlu0 %2269
  %2271 = vrot.lane.b32.xlu0 %v720, 24
  %v2272 = vpop.permute.xlu0 %2271
  %2273 = vrot.lane.b32.xlu0 %v721, 24
  %v2274 = vpop.permute.xlu0 %2273
  %2275 = vrot.lane.b32.xlu0 %v722, 24
  %v2276 = vpop.permute.xlu0 %2275
  %2277 = vrot.lane.b32.xlu0 %v723, 24
  %v2278 = vpop.permute.xlu0 %2277
  %2279 = vrot.lane.b32.xlu0 %v724, 24
  %v2280 = vpop.permute.xlu0 %2279
  %2281 = vrot.lane.b32.xlu0 %v725, 24
  %v2282 = vpop.permute.xlu0 %2281
  %2283 = vrot.lane.b32.xlu0 %v726, 24
  %v2284 = vpop.permute.xlu0 %2283
  %2285 = vrot.lane.b32.xlu0 %v727, 24
  %v2286 = vpop.permute.xlu0 %2285
  %2287 = vrot.lane.b32.xlu0 %v728, 24
  %v2288 = vpop.permute.xlu0 %2287
  %2289 = vrot.lane.b32.xlu0 %v729, 24
  %v2290 = vpop.permute.xlu0 %2289
  %2291 = vrot.lane.b32.xlu0 %v730, 24
  %v2292 = vpop.permute.xlu0 %2291
  %2293 = vrot.lane.b32.xlu0 %v731, 24
  %v2294 = vpop.permute.xlu0 %2293
  %2295 = vrot.lane.b32.xlu0 %v732, 24
  %v2296 = vpop.permute.xlu0 %2295
  %2297 = vrot.lane.b32.xlu0 %v733, 24
  %v2298 = vpop.permute.xlu0 %2297
  %2299 = vrot.lane.b32.xlu0 %v734, 24
  %v2300 = vpop.permute.xlu0 %2299
  %2301 = vrot.lane.b32.xlu0 %v735, 24
  %v2302 = vpop.permute.xlu0 %2301
  %2303 = vrot.lane.b32.xlu0 %v736, 24
  %v2304 = vpop.permute.xlu0 %2303
  %2305 = vrot.lane.b32.xlu0 %v737, 24
  %v2306 = vpop.permute.xlu0 %2305
  %2307 = vrot.lane.b32.xlu0 %v738, 24
  %v2308 = vpop.permute.xlu0 %2307
  %2309 = vrot.lane.b32.xlu0 %v739, 24
  %v2310 = vpop.permute.xlu0 %2309
  %2311 = vrot.lane.b32.xlu0 %v740, 24
  %v2312 = vpop.permute.xlu0 %2311
  %2313 = vrot.lane.b32.xlu0 %v741, 24
  %v2314 = vpop.permute.xlu0 %2313
  %2315 = vrot.lane.b32.xlu0 %v742, 24
  %v2316 = vpop.permute.xlu0 %2315
  %2317 = vrot.lane.b32.xlu0 %v743, 24
  %v2318 = vpop.permute.xlu0 %2317
  %2319 = vrot.lane.b32.xlu0 %v744, 24
  %v2320 = vpop.permute.xlu0 %2319
  %2321 = vrot.lane.b32.xlu0 %v745, 24
  %v2322 = vpop.permute.xlu0 %2321
  %2323 = vrot.lane.b32.xlu0 %v746, 24
  %v2324 = vpop.permute.xlu0 %2323
  %2325 = vrot.lane.b32.xlu0 %v747, 24
  %v2326 = vpop.permute.xlu0 %2325
  %2327 = vrot.lane.b32.xlu0 %v748, 24
  %v2328 = vpop.permute.xlu0 %2327
  %2329 = vrot.lane.b32.xlu0 %v749, 24
  %v2330 = vpop.permute.xlu0 %2329
  %2331 = vrot.lane.b32.xlu0 %v750, 24
  %v2332 = vpop.permute.xlu0 %2331
  %2333 = vrot.lane.b32.xlu0 %v751, 24
  %v2334 = vpop.permute.xlu0 %2333
  %2335 = vrot.lane.b32.xlu0 %v752, 24
  %v2336 = vpop.permute.xlu0 %2335
  %2337 = vrot.lane.b32.xlu0 %v753, 24
  %v2338 = vpop.permute.xlu0 %2337
  %2339 = vrot.lane.b32.xlu0 %v754, 24
  %v2340 = vpop.permute.xlu0 %2339
  %2341 = vrot.lane.b32.xlu0 %v755, 24
  %v2342 = vpop.permute.xlu0 %2341
  %2343 = vrot.lane.b32.xlu0 %v756, 24
  %v2344 = vpop.permute.xlu0 %2343
  %2345 = vrot.lane.b32.xlu0 %v757, 24
  %v2346 = vpop.permute.xlu0 %2345
  %2347 = vrot.lane.b32.xlu0 %v758, 24
  %v2348 = vpop.permute.xlu0 %2347
  %2349 = vrot.lane.b32.xlu0 %v759, 24
  %v2350 = vpop.permute.xlu0 %2349
  %2351 = vrot.lane.b32.xlu0 %v760, 24
  %v2352 = vpop.permute.xlu0 %2351
  %2353 = vrot.lane.b32.xlu0 %v761, 24
  %v2354 = vpop.permute.xlu0 %2353
  %2355 = vrot.lane.b32.xlu0 %v762, 24
  %v2356 = vpop.permute.xlu0 %2355
  %2357 = vrot.lane.b32.xlu0 %v763, 24
  %v2358 = vpop.permute.xlu0 %2357
  %2359 = vrot.lane.b32.xlu0 %v764, 24
  %v2360 = vpop.permute.xlu0 %2359
  %2361 = vrot.lane.b32.xlu0 %v765, 24
  %v2362 = vpop.permute.xlu0 %2361
  %2363 = vrot.lane.b32.xlu0 %v766, 24
  %v2364 = vpop.permute.xlu0 %2363
  %2365 = vrot.lane.b32.xlu0 %v767, 24
  %v2366 = vpop.permute.xlu0 %2365
  %2367 = vrot.lane.b32.xlu0 %v768, 24
  %v2368 = vpop.permute.xlu0 %2367
  %2497 = vrot.lane.b32.xlu0 %v769, 28
  %v2498 = vpop.permute.xlu0 %2497
  %2499 = vrot.lane.b32.xlu0 %v770, 28
  %v2500 = vpop.permute.xlu0 %2499
  %2501 = vrot.lane.b32.xlu0 %v771, 28
  %v2502 = vpop.permute.xlu0 %2501
  %2503 = vrot.lane.b32.xlu0 %v772, 28
  %v2504 = vpop.permute.xlu0 %2503
  %2505 = vrot.lane.b32.xlu0 %v773, 28
  %v2506 = vpop.permute.xlu0 %2505
  %2507 = vrot.lane.b32.xlu0 %v774, 28
  %v2508 = vpop.permute.xlu0 %2507
  %2509 = vrot.lane.b32.xlu0 %v775, 28
  %v2510 = vpop.permute.xlu0 %2509
  %2511 = vrot.lane.b32.xlu0 %v776, 28
  %v2512 = vpop.permute.xlu0 %2511
  %2513 = vrot.lane.b32.xlu0 %v777, 28
  %v2514 = vpop.permute.xlu0 %2513
  %2515 = vrot.lane.b32.xlu0 %v778, 28
  %v2516 = vpop.permute.xlu0 %2515
  %2517 = vrot.lane.b32.xlu0 %v779, 28
  %v2518 = vpop.permute.xlu0 %2517
  %2519 = vrot.lane.b32.xlu0 %v780, 28
  %v2520 = vpop.permute.xlu0 %2519
  %2521 = vrot.lane.b32.xlu0 %v781, 28
  %v2522 = vpop.permute.xlu0 %2521
  %2523 = vrot.lane.b32.xlu0 %v782, 28
  %v2524 = vpop.permute.xlu0 %2523
  %2525 = vrot.lane.b32.xlu0 %v783, 28
  %v2526 = vpop.permute.xlu0 %2525
  %2527 = vrot.lane.b32.xlu0 %v784, 28
  %v2528 = vpop.permute.xlu0 %2527
  %2529 = vrot.lane.b32.xlu0 %v785, 28
  %v2530 = vpop.permute.xlu0 %2529
  %2531 = vrot.lane.b32.xlu0 %v786, 28
  %v2532 = vpop.permute.xlu0 %2531
  %2533 = vrot.lane.b32.xlu0 %v787, 28
  %v2534 = vpop.permute.xlu0 %2533
  %2535 = vrot.lane.b32.xlu0 %v788, 28
  %v2536 = vpop.permute.xlu0 %2535
  %2537 = vrot.lane.b32.xlu0 %v789, 28
  %v2538 = vpop.permute.xlu0 %2537
  %2539 = vrot.lane.b32.xlu0 %v790, 28
  %v2540 = vpop.permute.xlu0 %2539
  %2541 = vrot.lane.b32.xlu0 %v791, 28
  %v2542 = vpop.permute.xlu0 %2541
  %2543 = vrot.lane.b32.xlu0 %v792, 28
  %v2544 = vpop.permute.xlu0 %2543
  %2545 = vrot.lane.b32.xlu0 %v793, 28
  %v2546 = vpop.permute.xlu0 %2545
  %2547 = vrot.lane.b32.xlu0 %v794, 28
  %v2548 = vpop.permute.xlu0 %2547
  %2549 = vrot.lane.b32.xlu0 %v795, 28
  %v2550 = vpop.permute.xlu0 %2549
  %2551 = vrot.lane.b32.xlu0 %v796, 28
  %v2552 = vpop.permute.xlu0 %2551
  %2553 = vrot.lane.b32.xlu0 %v797, 28
  %v2554 = vpop.permute.xlu0 %2553
  %2555 = vrot.lane.b32.xlu0 %v798, 28
  %v2556 = vpop.permute.xlu0 %2555
  %2557 = vrot.lane.b32.xlu0 %v799, 28
  %v2558 = vpop.permute.xlu0 %2557
  %2559 = vrot.lane.b32.xlu0 %v800, 28
  %v2560 = vpop.permute.xlu0 %2559
  %2561 = vrot.lane.b32.xlu0 %v801, 28
  %v2562 = vpop.permute.xlu0 %2561
  %2563 = vrot.lane.b32.xlu0 %v802, 28
  %v2564 = vpop.permute.xlu0 %2563
  %2565 = vrot.lane.b32.xlu0 %v803, 28
  %v2566 = vpop.permute.xlu0 %2565
  %2567 = vrot.lane.b32.xlu0 %v804, 28
  %v2568 = vpop.permute.xlu0 %2567
  %2569 = vrot.lane.b32.xlu0 %v805, 28
  %v2570 = vpop.permute.xlu0 %2569
  %2571 = vrot.lane.b32.xlu0 %v806, 28
  %v2572 = vpop.permute.xlu0 %2571
  %2573 = vrot.lane.b32.xlu0 %v807, 28
  %v2574 = vpop.permute.xlu0 %2573
  %2575 = vrot.lane.b32.xlu0 %v808, 28
  %v2576 = vpop.permute.xlu0 %2575
  %2577 = vrot.lane.b32.xlu0 %v809, 28
  %v2578 = vpop.permute.xlu0 %2577
  %2579 = vrot.lane.b32.xlu0 %v810, 28
  %v2580 = vpop.permute.xlu0 %2579
  %2581 = vrot.lane.b32.xlu0 %v811, 28
  %v2582 = vpop.permute.xlu0 %2581
  %2583 = vrot.lane.b32.xlu0 %v812, 28
  %v2584 = vpop.permute.xlu0 %2583
  %2585 = vrot.lane.b32.xlu0 %v813, 28
  %v2586 = vpop.permute.xlu0 %2585
  %2587 = vrot.lane.b32.xlu0 %v814, 28
  %v2588 = vpop.permute.xlu0 %2587
  %2589 = vrot.lane.b32.xlu0 %v815, 28
  %v2590 = vpop.permute.xlu0 %2589
  %2591 = vrot.lane.b32.xlu0 %v816, 28
  %v2592 = vpop.permute.xlu0 %2591
  %2593 = vrot.lane.b32.xlu0 %v817, 28
  %v2594 = vpop.permute.xlu0 %2593
  %2595 = vrot.lane.b32.xlu0 %v818, 28
  %v2596 = vpop.permute.xlu0 %2595
  %2597 = vrot.lane.b32.xlu0 %v819, 28
  %v2598 = vpop.permute.xlu0 %2597
  %2599 = vrot.lane.b32.xlu0 %v820, 28
  %v2600 = vpop.permute.xlu0 %2599
  %2601 = vrot.lane.b32.xlu0 %v821, 28
  %v2602 = vpop.permute.xlu0 %2601
  %2603 = vrot.lane.b32.xlu0 %v822, 28
  %v2604 = vpop.permute.xlu0 %2603
  %2605 = vrot.lane.b32.xlu0 %v823, 28
  %v2606 = vpop.permute.xlu0 %2605
  %2607 = vrot.lane.b32.xlu0 %v824, 28
  %v2608 = vpop.permute.xlu0 %2607
  %2609 = vrot.lane.b32.xlu0 %v825, 28
  %v2610 = vpop.permute.xlu0 %2609
  %2611 = vrot.lane.b32.xlu0 %v826, 28
  %v2612 = vpop.permute.xlu0 %2611
  %2613 = vrot.lane.b32.xlu0 %v827, 28
  %v2614 = vpop.permute.xlu0 %2613
  %2615 = vrot.lane.b32.xlu0 %v828, 28
  %v2616 = vpop.permute.xlu0 %2615
  %2617 = vrot.lane.b32.xlu0 %v829, 28
  %v2618 = vpop.permute.xlu0 %2617
  %2619 = vrot.lane.b32.xlu0 %v830, 28
  %v2620 = vpop.permute.xlu0 %2619
  %2621 = vrot.lane.b32.xlu0 %v831, 28
  %v2622 = vpop.permute.xlu0 %2621
  %2623 = vrot.lane.b32.xlu0 %v832, 28
  %v2624 = vpop.permute.xlu0 %2623
  %2753 = vrot.lane.b32.xlu0 %v833, 32
  %v2754 = vpop.permute.xlu0 %2753
  %2755 = vrot.lane.b32.xlu0 %v834, 32
  %v2756 = vpop.permute.xlu0 %2755
  %2757 = vrot.lane.b32.xlu0 %v835, 32
  %v2758 = vpop.permute.xlu0 %2757
  %2759 = vrot.lane.b32.xlu0 %v836, 32
  %v2760 = vpop.permute.xlu0 %2759
  %2761 = vrot.lane.b32.xlu0 %v837, 32
  %v2762 = vpop.permute.xlu0 %2761
  %2763 = vrot.lane.b32.xlu0 %v838, 32
  %v2764 = vpop.permute.xlu0 %2763
  %2765 = vrot.lane.b32.xlu0 %v839, 32
  %v2766 = vpop.permute.xlu0 %2765
  %2767 = vrot.lane.b32.xlu0 %v840, 32
  %v2768 = vpop.permute.xlu0 %2767
  %2769 = vrot.lane.b32.xlu0 %v841, 32
  %v2770 = vpop.permute.xlu0 %2769
  %2771 = vrot.lane.b32.xlu0 %v842, 32
  %v2772 = vpop.permute.xlu0 %2771
  %2773 = vrot.lane.b32.xlu0 %v843, 32
  %v2774 = vpop.permute.xlu0 %2773
  %2775 = vrot.lane.b32.xlu0 %v844, 32
  %v2776 = vpop.permute.xlu0 %2775
  %2777 = vrot.lane.b32.xlu0 %v845, 32
  %v2778 = vpop.permute.xlu0 %2777
  %2779 = vrot.lane.b32.xlu0 %v846, 32
  %v2780 = vpop.permute.xlu0 %2779
  %2781 = vrot.lane.b32.xlu0 %v847, 32
  %v2782 = vpop.permute.xlu0 %2781
  %2783 = vrot.lane.b32.xlu0 %v848, 32
  %v2784 = vpop.permute.xlu0 %2783
  %2785 = vrot.lane.b32.xlu0 %v849, 32
  %v2786 = vpop.permute.xlu0 %2785
  %2787 = vrot.lane.b32.xlu0 %v850, 32
  %v2788 = vpop.permute.xlu0 %2787
  %2789 = vrot.lane.b32.xlu0 %v851, 32
  %v2790 = vpop.permute.xlu0 %2789
  %2791 = vrot.lane.b32.xlu0 %v852, 32
  %v2792 = vpop.permute.xlu0 %2791
  %2793 = vrot.lane.b32.xlu0 %v853, 32
  %v2794 = vpop.permute.xlu0 %2793
  %2795 = vrot.lane.b32.xlu0 %v854, 32
  %v2796 = vpop.permute.xlu0 %2795
  %2797 = vrot.lane.b32.xlu0 %v855, 32
  %v2798 = vpop.permute.xlu0 %2797
  %2799 = vrot.lane.b32.xlu0 %v856, 32
  %v2800 = vpop.permute.xlu0 %2799
  %2801 = vrot.lane.b32.xlu0 %v857, 32
  %v2802 = vpop.permute.xlu0 %2801
  %2803 = vrot.lane.b32.xlu0 %v858, 32
  %v2804 = vpop.permute.xlu0 %2803
  %2805 = vrot.lane.b32.xlu0 %v859, 32
  %v2806 = vpop.permute.xlu0 %2805
  %2807 = vrot.lane.b32.xlu0 %v860, 32
  %v2808 = vpop.permute.xlu0 %2807
  %2809 = vrot.lane.b32.xlu0 %v861, 32
  %v2810 = vpop.permute.xlu0 %2809
  %2811 = vrot.lane.b32.xlu0 %v862, 32
  %v2812 = vpop.permute.xlu0 %2811
  %2813 = vrot.lane.b32.xlu0 %v863, 32
  %v2814 = vpop.permute.xlu0 %2813
  %2815 = vrot.lane.b32.xlu0 %v864, 32
  %v2816 = vpop.permute.xlu0 %2815
  %2817 = vrot.lane.b32.xlu0 %v865, 32
  %v2818 = vpop.permute.xlu0 %2817
  %2819 = vrot.lane.b32.xlu0 %v866, 32
  %v2820 = vpop.permute.xlu0 %2819
  %2821 = vrot.lane.b32.xlu0 %v867, 32
  %v2822 = vpop.permute.xlu0 %2821
  %2823 = vrot.lane.b32.xlu0 %v868, 32
  %v2824 = vpop.permute.xlu0 %2823
  %2825 = vrot.lane.b32.xlu0 %v869, 32
  %v2826 = vpop.permute.xlu0 %2825
  %2827 = vrot.lane.b32.xlu0 %v870, 32
  %v2828 = vpop.permute.xlu0 %2827
  %2829 = vrot.lane.b32.xlu0 %v871, 32
  %v2830 = vpop.permute.xlu0 %2829
  %2831 = vrot.lane.b32.xlu0 %v872, 32
  %v2832 = vpop.permute.xlu0 %2831
  %2833 = vrot.lane.b32.xlu0 %v873, 32
  %v2834 = vpop.permute.xlu0 %2833
  %2835 = vrot.lane.b32.xlu0 %v874, 32
  %v2836 = vpop.permute.xlu0 %2835
  %2837 = vrot.lane.b32.xlu0 %v875, 32
  %v2838 = vpop.permute.xlu0 %2837
  %2839 = vrot.lane.b32.xlu0 %v876, 32
  %v2840 = vpop.permute.xlu0 %2839
  %2841 = vrot.lane.b32.xlu0 %v877, 32
  %v2842 = vpop.permute.xlu0 %2841
  %2843 = vrot.lane.b32.xlu0 %v878, 32
  %v2844 = vpop.permute.xlu0 %2843
  %2845 = vrot.lane.b32.xlu0 %v879, 32
  %v2846 = vpop.permute.xlu0 %2845
  %2847 = vrot.lane.b32.xlu0 %v880, 32
  %v2848 = vpop.permute.xlu0 %2847
  %2849 = vrot.lane.b32.xlu0 %v881, 32
  %v2850 = vpop.permute.xlu0 %2849
  %2851 = vrot.lane.b32.xlu0 %v882, 32
  %v2852 = vpop.permute.xlu0 %2851
  %2853 = vrot.lane.b32.xlu0 %v883, 32
  %v2854 = vpop.permute.xlu0 %2853
  %2855 = vrot.lane.b32.xlu0 %v884, 32
  %v2856 = vpop.permute.xlu0 %2855
  %2857 = vrot.lane.b32.xlu0 %v885, 32
  %v2858 = vpop.permute.xlu0 %2857
  %2859 = vrot.lane.b32.xlu0 %v886, 32
  %v2860 = vpop.permute.xlu0 %2859
  %2861 = vrot.lane.b32.xlu0 %v887, 32
  %v2862 = vpop.permute.xlu0 %2861
  %2863 = vrot.lane.b32.xlu0 %v888, 32
  %v2864 = vpop.permute.xlu0 %2863
  %2865 = vrot.lane.b32.xlu0 %v889, 32
  %v2866 = vpop.permute.xlu0 %2865
  %2867 = vrot.lane.b32.xlu0 %v890, 32
  %v2868 = vpop.permute.xlu0 %2867
  %2869 = vrot.lane.b32.xlu0 %v891, 32
  %v2870 = vpop.permute.xlu0 %2869
  %2871 = vrot.lane.b32.xlu0 %v892, 32
  %v2872 = vpop.permute.xlu0 %2871
  %2873 = vrot.lane.b32.xlu0 %v893, 32
  %v2874 = vpop.permute.xlu0 %2873
  %2875 = vrot.lane.b32.xlu0 %v894, 32
  %v2876 = vpop.permute.xlu0 %2875
  %2877 = vrot.lane.b32.xlu0 %v895, 32
  %v2878 = vpop.permute.xlu0 %2877
  %2879 = vrot.lane.b32.xlu0 %v896, 32
  %v2880 = vpop.permute.xlu0 %2879
  %v2945 = vsel %vm81, %v320, %v962
  %v2946 = vsel %vm81, %v321, %v964
  %v2947 = vsel %vm81, %v322, %v966
  %v2948 = vsel %vm81, %v323, %v968
  %v2949 = vsel %vm81, %v324, %v970
  %v2950 = vsel %vm81, %v325, %v972
  %v2951 = vsel %vm81, %v326, %v974
  %v2952 = vsel %vm81, %v327, %v976
  %v2953 = vsel %vm81, %v328, %v978
  %v2954 = vsel %vm81, %v329, %v980
  %v2955 = vsel %vm81, %v330, %v982
  %v2956 = vsel %vm81, %v331, %v984
  %v2957 = vsel %vm81, %v332, %v986
  %v2958 = vsel %vm81, %v333, %v988
  %v2959 = vsel %vm81, %v334, %v990
  %v2960 = vsel %vm81, %v335, %v992
  %v2961 = vsel %vm81, %v336, %v994
  %v2962 = vsel %vm81, %v337, %v996
  %v2963 = vsel %vm81, %v338, %v998
  %v2964 = vsel %vm81, %v339, %v1000
  %v2965 = vsel %vm81, %v340, %v1002
  %v2966 = vsel %vm81, %v341, %v1004
  %v2967 = vsel %vm81, %v342, %v1006
  %v2968 = vsel %vm81, %v343, %v1008
  %v2969 = vsel %vm81, %v344, %v1010
  %v2970 = vsel %vm81, %v345, %v1012
  %v2971 = vsel %vm81, %v346, %v1014
  %v2972 = vsel %vm81, %v347, %v1016
  %v2973 = vsel %vm81, %v348, %v1018
  %v2974 = vsel %vm81, %v349, %v1020
  %v2975 = vsel %vm81, %v350, %v1022
  %v2976 = vsel %vm81, %v351, %v1024
  %v2977 = vsel %vm81, %v352, %v1026
  %v2978 = vsel %vm81, %v353, %v1028
  %v2979 = vsel %vm81, %v354, %v1030
  %v2980 = vsel %vm81, %v355, %v1032
  %v2981 = vsel %vm81, %v356, %v1034
  %v2982 = vsel %vm81, %v357, %v1036
  %v2983 = vsel %vm81, %v358, %v1038
  %v2984 = vsel %vm81, %v359, %v1040
  %v2985 = vsel %vm81, %v360, %v1042
  %v2986 = vsel %vm81, %v361, %v1044
  %v2987 = vsel %vm81, %v362, %v1046
  %v2988 = vsel %vm81, %v363, %v1048
  %v2989 = vsel %vm81, %v364, %v1050
  %v2990 = vsel %vm81, %v365, %v1052
  %v2991 = vsel %vm81, %v366, %v1054
  %v2992 = vsel %vm81, %v367, %v1056
  %v2993 = vsel %vm81, %v368, %v1058
  %v2994 = vsel %vm81, %v369, %v1060
  %v2995 = vsel %vm81, %v370, %v1062
  %v2996 = vsel %vm81, %v371, %v1064
  %v2997 = vsel %vm81, %v372, %v1066
  %v2998 = vsel %vm81, %v373, %v1068
  %v2999 = vsel %vm81, %v374, %v1070
  %v3000 = vsel %vm81, %v375, %v1072
  %v3001 = vsel %vm81, %v376, %v1074
  %v3002 = vsel %vm81, %v377, %v1076
  %v3003 = vsel %vm81, %v378, %v1078
  %v3004 = vsel %vm81, %v379, %v1080
  %v3005 = vsel %vm81, %v380, %v1082
  %v3006 = vsel %vm81, %v381, %v1084
  %v3007 = vsel %vm81, %v382, %v1086
  %v3008 = vsel %vm81, %v383, %v1088
  %vm3009 = vcmask 64512
  %v3010 = vsel %vm3009, %v2945, %v1218
  %v3011 = vsel %vm3009, %v2946, %v1220
  %v3012 = vsel %vm3009, %v2947, %v1222
  %v3013 = vsel %vm3009, %v2948, %v1224
  %v3014 = vsel %vm3009, %v2949, %v1226
  %v3015 = vsel %vm3009, %v2950, %v1228
  %v3016 = vsel %vm3009, %v2951, %v1230
  %v3017 = vsel %vm3009, %v2952, %v1232
  %v3018 = vsel %vm3009, %v2953, %v1234
  %v3019 = vsel %vm3009, %v2954, %v1236
  %v3020 = vsel %vm3009, %v2955, %v1238
  %v3021 = vsel %vm3009, %v2956, %v1240
  %v3022 = vsel %vm3009, %v2957, %v1242
  %v3023 = vsel %vm3009, %v2958, %v1244
  %v3024 = vsel %vm3009, %v2959, %v1246
  %v3025 = vsel %vm3009, %v2960, %v1248
  %v3026 = vsel %vm3009, %v2961, %v1250
  %v3027 = vsel %vm3009, %v2962, %v1252
  %v3028 = vsel %vm3009, %v2963, %v1254
  %v3029 = vsel %vm3009, %v2964, %v1256
  %v3030 = vsel %vm3009, %v2965, %v1258
  %v3031 = vsel %vm3009, %v2966, %v1260
  %v3032 = vsel %vm3009, %v2967, %v1262
  %v3033 = vsel %vm3009, %v2968, %v1264
  %v3034 = vsel %vm3009, %v2969, %v1266
  %v3035 = vsel %vm3009, %v2970, %v1268
  %v3036 = vsel %vm3009, %v2971, %v1270
  %v3037 = vsel %vm3009, %v2972, %v1272
  %v3038 = vsel %vm3009, %v2973, %v1274
  %v3039 = vsel %vm3009, %v2974, %v1276
  %v3040 = vsel %vm3009, %v2975, %v1278
  %v3041 = vsel %vm3009, %v2976, %v1280
  %v3042 = vsel %vm3009, %v2977, %v1282
  %v3043 = vsel %vm3009, %v2978, %v1284
  %v3044 = vsel %vm3009, %v2979, %v1286
  %v3045 = vsel %vm3009, %v2980, %v1288
  %v3046 = vsel %vm3009, %v2981, %v1290
  %v3047 = vsel %vm3009, %v2982, %v1292
  %v3048 = vsel %vm3009, %v2983, %v1294
  %v3049 = vsel %vm3009, %v2984, %v1296
  %v3050 = vsel %vm3009, %v2985, %v1298
  %v3051 = vsel %vm3009, %v2986, %v1300
  %v3052 = vsel %vm3009, %v2987, %v1302
  %v3053 = vsel %vm3009, %v2988, %v1304
  %v3054 = vsel %vm3009, %v2989, %v1306
  %v3055 = vsel %vm3009, %v2990, %v1308
  %v3056 = vsel %vm3009, %v2991, %v1310
  %v3057 = vsel %vm3009, %v2992, %v1312
  %v3058 = vsel %vm3009, %v2993, %v1314
  %v3059 = vsel %vm3009, %v2994, %v1316
  %v3060 = vsel %vm3009, %v2995, %v1318
  %v3061 = vsel %vm3009, %v2996, %v1320
  %v3062 = vsel %vm3009, %v2997, %v1322
  %v3063 = vsel %vm3009, %v2998, %v1324
  %v3064 = vsel %vm3009, %v2999, %v1326
  %v3065 = vsel %vm3009, %v3000, %v1328
  %v3066 = vsel %vm3009, %v3001, %v1330
  %v3067 = vsel %vm3009, %v3002, %v1332
  %v3068 = vsel %vm3009, %v3003, %v1334
  %v3069 = vsel %vm3009, %v3004, %v1336
  %v3070 = vsel %vm3009, %v3005, %v1338
  %v3071 = vsel %vm3009, %v3006, %v1340
  %v3072 = vsel %vm3009, %v3007, %v1342
  %v3073 = vsel %vm3009, %v3008, %v1344
  %vm3074 = vcmask 97280
  %v3075 = vsel %vm3074, %v3010, %v1474
  %v3076 = vsel %vm3074, %v3011, %v1476
  %v3077 = vsel %vm3074, %v3012, %v1478
  %v3078 = vsel %vm3074, %v3013, %v1480
  %v3079 = vsel %vm3074, %v3014, %v1482
  %v3080 = vsel %vm3074, %v3015, %v1484
  %v3081 = vsel %vm3074, %v3016, %v1486
  %v3082 = vsel %vm3074, %v3017, %v1488
  %v3083 = vsel %vm3074, %v3018, %v1490
  %v3084 = vsel %vm3074, %v3019, %v1492
  %v3085 = vsel %vm3074, %v3020, %v1494
  %v3086 = vsel %vm3074, %v3021, %v1496
  %v3087 = vsel %vm3074, %v3022, %v1498
  %v3088 = vsel %vm3074, %v3023, %v1500
  %v3089 = vsel %vm3074, %v3024, %v1502
  %v3090 = vsel %vm3074, %v3025, %v1504
  %v3091 = vsel %vm3074, %v3026, %v1506
  %v3092 = vsel %vm3074, %v3027, %v1508
  %v3093 = vsel %vm3074, %v3028, %v1510
  %v3094 = vsel %vm3074, %v3029, %v1512
  %v3095 = vsel %vm3074, %v3030, %v1514
  %v3096 = vsel %vm3074, %v3031, %v1516
  %v3097 = vsel %vm3074, %v3032, %v1518
  %v3098 = vsel %vm3074, %v3033, %v1520
  %v3099 = vsel %vm3074, %v3034, %v1522
  %v3100 = vsel %vm3074, %v3035, %v1524
  %v3101 = vsel %vm3074, %v3036, %v1526
  %v3102 = vsel %vm3074, %v3037, %v1528
  %v3103 = vsel %vm3074, %v3038, %v1530
  %v3104 = vsel %vm3074, %v3039, %v1532
  %v3105 = vsel %vm3074, %v3040, %v1534
  %v3106 = vsel %vm3074, %v3041, %v1536
  %v3107 = vsel %vm3074, %v3042, %v1538
  %v3108 = vsel %vm3074, %v3043, %v1540
  %v3109 = vsel %vm3074, %v3044, %v1542
  %v3110 = vsel %vm3074, %v3045, %v1544
  %v3111 = vsel %vm3074, %v3046, %v1546
  %v3112 = vsel %vm3074, %v3047, %v1548
  %v3113 = vsel %vm3074, %v3048, %v1550
  %v3114 = vsel %vm3074, %v3049, %v1552
  %v3115 = vsel %vm3074, %v3050, %v1554
  %v3116 = vsel %vm3074, %v3051, %v1556
  %v3117 = vsel %vm3074, %v3052, %v1558
  %v3118 = vsel %vm3074, %v3053, %v1560
  %v3119 = vsel %vm3074, %v3054, %v1562
  %v3120 = vsel %vm3074, %v3055, %v1564
  %v3121 = vsel %vm3074, %v3056, %v1566
  %v3122 = vsel %vm3074, %v3057, %v1568
  %v3123 = vsel %vm3074, %v3058, %v1570
  %v3124 = vsel %vm3074, %v3059, %v1572
  %v3125 = vsel %vm3074, %v3060, %v1574
  %v3126 = vsel %vm3074, %v3061, %v1576
  %v3127 = vsel %vm3074, %v3062, %v1578
  %v3128 = vsel %vm3074, %v3063, %v1580
  %v3129 = vsel %vm3074, %v3064, %v1582
  %v3130 = vsel %vm3074, %v3065, %v1584
  %v3131 = vsel %vm3074, %v3066, %v1586
  %v3132 = vsel %vm3074, %v3067, %v1588
  %v3133 = vsel %vm3074, %v3068, %v1590
  %v3134 = vsel %vm3074, %v3069, %v1592
  %v3135 = vsel %vm3074, %v3070, %v1594
  %v3136 = vsel %vm3074, %v3071, %v1596
  %v3137 = vsel %vm3074, %v3072, %v1598
  %v3138 = vsel %vm3074, %v3073, %v1600
  %vm3139 = vcmask 130048
  %v3140 = vsel %vm3139, %v3075, %v1730
  %v3141 = vsel %vm3139, %v3076, %v1732
  %v3142 = vsel %vm3139, %v3077, %v1734
  %v3143 = vsel %vm3139, %v3078, %v1736
  %v3144 = vsel %vm3139, %v3079, %v1738
  %v3145 = vsel %vm3139, %v3080, %v1740
  %v3146 = vsel %vm3139, %v3081, %v1742
  %v3147 = vsel %vm3139, %v3082, %v1744
  %v3148 = vsel %vm3139, %v3083, %v1746
  %v3149 = vsel %vm3139, %v3084, %v1748
  %v3150 = vsel %vm3139, %v3085, %v1750
  %v3151 = vsel %vm3139, %v3086, %v1752
  %v3152 = vsel %vm3139, %v3087, %v1754
  %v3153 = vsel %vm3139, %v3088, %v1756
  %v3154 = vsel %vm3139, %v3089, %v1758
  %v3155 = vsel %vm3139, %v3090, %v1760
  %v3156 = vsel %vm3139, %v3091, %v1762
  %v3157 = vsel %vm3139, %v3092, %v1764
  %v3158 = vsel %vm3139, %v3093, %v1766
  %v3159 = vsel %vm3139, %v3094, %v1768
  %v3160 = vsel %vm3139, %v3095, %v1770
  %v3161 = vsel %vm3139, %v3096, %v1772
  %v3162 = vsel %vm3139, %v3097, %v1774
  %v3163 = vsel %vm3139, %v3098, %v1776
  %v3164 = vsel %vm3139, %v3099, %v1778
  %v3165 = vsel %vm3139, %v3100, %v1780
  %v3166 = vsel %vm3139, %v3101, %v1782
  %v3167 = vsel %vm3139, %v3102, %v1784
  %v3168 = vsel %vm3139, %v3103, %v1786
  %v3169 = vsel %vm3139, %v3104, %v1788
  %v3170 = vsel %vm3139, %v3105, %v1790
  %v3171 = vsel %vm3139, %v3106, %v1792
  %v3172 = vsel %vm3139, %v3107, %v1794
  %v3173 = vsel %vm3139, %v3108, %v1796
  %v3174 = vsel %vm3139, %v3109, %v1798
  %v3175 = vsel %vm3139, %v3110, %v1800
  %v3176 = vsel %vm3139, %v3111, %v1802
  %v3177 = vsel %vm3139, %v3112, %v1804
  %v3178 = vsel %vm3139, %v3113, %v1806
  %v3179 = vsel %vm3139, %v3114, %v1808
  %v3180 = vsel %vm3139, %v3115, %v1810
  %v3181 = vsel %vm3139, %v3116, %v1812
  %v3182 = vsel %vm3139, %v3117, %v1814
  %v3183 = vsel %vm3139, %v3118, %v1816
  %v3184 = vsel %vm3139, %v3119, %v1818
  %v3185 = vsel %vm3139, %v3120, %v1820
  %v3186 = vsel %vm3139, %v3121, %v1822
  %v3187 = vsel %vm3139, %v3122, %v1824
  %v3188 = vsel %vm3139, %v3123, %v1826
  %v3189 = vsel %vm3139, %v3124, %v1828
  %v3190 = vsel %vm3139, %v3125, %v1830
  %v3191 = vsel %vm3139, %v3126, %v1832
  %v3192 = vsel %vm3139, %v3127, %v1834
  %v3193 = vsel %vm3139, %v3128, %v1836
  %v3194 = vsel %vm3139, %v3129, %v1838
  %v3195 = vsel %vm3139, %v3130, %v1840
  %v3196 = vsel %vm3139, %v3131, %v1842
  %v3197 = vsel %vm3139, %v3132, %v1844
  %v3198 = vsel %vm3139, %v3133, %v1846
  %v3199 = vsel %vm3139, %v3134, %v1848
  %v3200 = vsel %vm3139, %v3135, %v1850
  %v3201 = vsel %vm3139, %v3136, %v1852
  %v3202 = vsel %vm3139, %v3137, %v1854
  %v3203 = vsel %vm3139, %v3138, %v1856
  %vm3204 = vcmask 162816
  %v3205 = vsel %vm3204, %v3140, %v1986
  %v3206 = vsel %vm3204, %v3141, %v1988
  %v3207 = vsel %vm3204, %v3142, %v1990
  %v3208 = vsel %vm3204, %v3143, %v1992
  %v3209 = vsel %vm3204, %v3144, %v1994
  %v3210 = vsel %vm3204, %v3145, %v1996
  %v3211 = vsel %vm3204, %v3146, %v1998
  %v3212 = vsel %vm3204, %v3147, %v2000
  %v3213 = vsel %vm3204, %v3148, %v2002
  %v3214 = vsel %vm3204, %v3149, %v2004
  %v3215 = vsel %vm3204, %v3150, %v2006
  %v3216 = vsel %vm3204, %v3151, %v2008
  %v3217 = vsel %vm3204, %v3152, %v2010
  %v3218 = vsel %vm3204, %v3153, %v2012
  %v3219 = vsel %vm3204, %v3154, %v2014
  %v3220 = vsel %vm3204, %v3155, %v2016
  %v3221 = vsel %vm3204, %v3156, %v2018
  %v3222 = vsel %vm3204, %v3157, %v2020
  %v3223 = vsel %vm3204, %v3158, %v2022
  %v3224 = vsel %vm3204, %v3159, %v2024
  %v3225 = vsel %vm3204, %v3160, %v2026
  %v3226 = vsel %vm3204, %v3161, %v2028
  %v3227 = vsel %vm3204, %v3162, %v2030
  %v3228 = vsel %vm3204, %v3163, %v2032
  %v3229 = vsel %vm3204, %v3164, %v2034
  %v3230 = vsel %vm3204, %v3165, %v2036
  %v3231 = vsel %vm3204, %v3166, %v2038
  %v3232 = vsel %vm3204, %v3167, %v2040
  %v3233 = vsel %vm3204, %v3168, %v2042
  %v3234 = vsel %vm3204, %v3169, %v2044
  %v3235 = vsel %vm3204, %v3170, %v2046
  %v3236 = vsel %vm3204, %v3171, %v2048
  %v3237 = vsel %vm3204, %v3172, %v2050
  %v3238 = vsel %vm3204, %v3173, %v2052
  %v3239 = vsel %vm3204, %v3174, %v2054
  %v3240 = vsel %vm3204, %v3175, %v2056
  %v3241 = vsel %vm3204, %v3176, %v2058
  %v3242 = vsel %vm3204, %v3177, %v2060
  %v3243 = vsel %vm3204, %v3178, %v2062
  %v3244 = vsel %vm3204, %v3179, %v2064
  %v3245 = vsel %vm3204, %v3180, %v2066
  %v3246 = vsel %vm3204, %v3181, %v2068
  %v3247 = vsel %vm3204, %v3182, %v2070
  %v3248 = vsel %vm3204, %v3183, %v2072
  %v3249 = vsel %vm3204, %v3184, %v2074
  %v3250 = vsel %vm3204, %v3185, %v2076
  %v3251 = vsel %vm3204, %v3186, %v2078
  %v3252 = vsel %vm3204, %v3187, %v2080
  %v3253 = vsel %vm3204, %v3188, %v2082
  %v3254 = vsel %vm3204, %v3189, %v2084
  %v3255 = vsel %vm3204, %v3190, %v2086
  %v3256 = vsel %vm3204, %v3191, %v2088
  %v3257 = vsel %vm3204, %v3192, %v2090
  %v3258 = vsel %vm3204, %v3193, %v2092
  %v3259 = vsel %vm3204, %v3194, %v2094
  %v3260 = vsel %vm3204, %v3195, %v2096
  %v3261 = vsel %vm3204, %v3196, %v2098
  %v3262 = vsel %vm3204, %v3197, %v2100
  %v3263 = vsel %vm3204, %v3198, %v2102
  %v3264 = vsel %vm3204, %v3199, %v2104
  %v3265 = vsel %vm3204, %v3200, %v2106
  %v3266 = vsel %vm3204, %v3201, %v2108
  %v3267 = vsel %vm3204, %v3202, %v2110
  %v3268 = vsel %vm3204, %v3203, %v2112
  %vm3269 = vcmask 195584
  %v3270 = vsel %vm3269, %v3205, %v2242
  %v3271 = vsel %vm3269, %v3206, %v2244
  %v3272 = vsel %vm3269, %v3207, %v2246
  %v3273 = vsel %vm3269, %v3208, %v2248
  %v3274 = vsel %vm3269, %v3209, %v2250
  %v3275 = vsel %vm3269, %v3210, %v2252
  %v3276 = vsel %vm3269, %v3211, %v2254
  %v3277 = vsel %vm3269, %v3212, %v2256
  %v3278 = vsel %vm3269, %v3213, %v2258
  %v3279 = vsel %vm3269, %v3214, %v2260
  %v3280 = vsel %vm3269, %v3215, %v2262
  %v3281 = vsel %vm3269, %v3216, %v2264
  %v3282 = vsel %vm3269, %v3217, %v2266
  %v3283 = vsel %vm3269, %v3218, %v2268
  %v3284 = vsel %vm3269, %v3219, %v2270
  %v3285 = vsel %vm3269, %v3220, %v2272
  %v3286 = vsel %vm3269, %v3221, %v2274
  %v3287 = vsel %vm3269, %v3222, %v2276
  %v3288 = vsel %vm3269, %v3223, %v2278
  %v3289 = vsel %vm3269, %v3224, %v2280
  %v3290 = vsel %vm3269, %v3225, %v2282
  %v3291 = vsel %vm3269, %v3226, %v2284
  %v3292 = vsel %vm3269, %v3227, %v2286
  %v3293 = vsel %vm3269, %v3228, %v2288
  %v3294 = vsel %vm3269, %v3229, %v2290
  %v3295 = vsel %vm3269, %v3230, %v2292
  %v3296 = vsel %vm3269, %v3231, %v2294
  %v3297 = vsel %vm3269, %v3232, %v2296
  %v3298 = vsel %vm3269, %v3233, %v2298
  %v3299 = vsel %vm3269, %v3234, %v2300
  %v3300 = vsel %vm3269, %v3235, %v2302
  %v3301 = vsel %vm3269, %v3236, %v2304
  %v3302 = vsel %vm3269, %v3237, %v2306
  %v3303 = vsel %vm3269, %v3238, %v2308
  %v3304 = vsel %vm3269, %v3239, %v2310
  %v3305 = vsel %vm3269, %v3240, %v2312
  %v3306 = vsel %vm3269, %v3241, %v2314
  %v3307 = vsel %vm3269, %v3242, %v2316
  %v3308 = vsel %vm3269, %v3243, %v2318
  %v3309 = vsel %vm3269, %v3244, %v2320
  %v3310 = vsel %vm3269, %v3245, %v2322
  %v3311 = vsel %vm3269, %v3246, %v2324
  %v3312 = vsel %vm3269, %v3247, %v2326
  %v3313 = vsel %vm3269, %v3248, %v2328
  %v3314 = vsel %vm3269, %v3249, %v2330
  %v3315 = vsel %vm3269, %v3250, %v2332
  %v3316 = vsel %vm3269, %v3251, %v2334
  %v3317 = vsel %vm3269, %v3252, %v2336
  %v3318 = vsel %vm3269, %v3253, %v2338
  %v3319 = vsel %vm3269, %v3254, %v2340
  %v3320 = vsel %vm3269, %v3255, %v2342
  %v3321 = vsel %vm3269, %v3256, %v2344
  %v3322 = vsel %vm3269, %v3257, %v2346
  %v3323 = vsel %vm3269, %v3258, %v2348
  %v3324 = vsel %vm3269, %v3259, %v2350
  %v3325 = vsel %vm3269, %v3260, %v2352
  %v3326 = vsel %vm3269, %v3261, %v2354
  %v3327 = vsel %vm3269, %v3262, %v2356
  %v3328 = vsel %vm3269, %v3263, %v2358
  %v3329 = vsel %vm3269, %v3264, %v2360
  %v3330 = vsel %vm3269, %v3265, %v2362
  %v3331 = vsel %vm3269, %v3266, %v2364
  %v3332 = vsel %vm3269, %v3267, %v2366
  %v3333 = vsel %vm3269, %v3268, %v2368
  %vm3334 = vcmask 228352
  %v3335 = vsel %vm3334, %v3270, %v2498
  %v3336 = vsel %vm3334, %v3271, %v2500
  %v3337 = vsel %vm3334, %v3272, %v2502
  %v3338 = vsel %vm3334, %v3273, %v2504
  %v3339 = vsel %vm3334, %v3274, %v2506
  %v3340 = vsel %vm3334, %v3275, %v2508
  %v3341 = vsel %vm3334, %v3276, %v2510
  %v3342 = vsel %vm3334, %v3277, %v2512
  %v3343 = vsel %vm3334, %v3278, %v2514
  %v3344 = vsel %vm3334, %v3279, %v2516
  %v3345 = vsel %vm3334, %v3280, %v2518
  %v3346 = vsel %vm3334, %v3281, %v2520
  %v3347 = vsel %vm3334, %v3282, %v2522
  %v3348 = vsel %vm3334, %v3283, %v2524
  %v3349 = vsel %vm3334, %v3284, %v2526
  %v3350 = vsel %vm3334, %v3285, %v2528
  %v3351 = vsel %vm3334, %v3286, %v2530
  %v3352 = vsel %vm3334, %v3287, %v2532
  %v3353 = vsel %vm3334, %v3288, %v2534
  %v3354 = vsel %vm3334, %v3289, %v2536
  %v3355 = vsel %vm3334, %v3290, %v2538
  %v3356 = vsel %vm3334, %v3291, %v2540
  %v3357 = vsel %vm3334, %v3292, %v2542
  %v3358 = vsel %vm3334, %v3293, %v2544
  %v3359 = vsel %vm3334, %v3294, %v2546
  %v3360 = vsel %vm3334, %v3295, %v2548
  %v3361 = vsel %vm3334, %v3296, %v2550
  %v3362 = vsel %vm3334, %v3297, %v2552
  %v3363 = vsel %vm3334, %v3298, %v2554
  %v3364 = vsel %vm3334, %v3299, %v2556
  %v3365 = vsel %vm3334, %v3300, %v2558
  %v3366 = vsel %vm3334, %v3301, %v2560
  %v3367 = vsel %vm3334, %v3302, %v2562
  %v3368 = vsel %vm3334, %v3303, %v2564
  %v3369 = vsel %vm3334, %v3304, %v2566
  %v3370 = vsel %vm3334, %v3305, %v2568
  %v3371 = vsel %vm3334, %v3306, %v2570
  %v3372 = vsel %vm3334, %v3307, %v2572
  %v3373 = vsel %vm3334, %v3308, %v2574
  %v3374 = vsel %vm3334, %v3309, %v2576
  %v3375 = vsel %vm3334, %v3310, %v2578
  %v3376 = vsel %vm3334, %v3311, %v2580
  %v3377 = vsel %vm3334, %v3312, %v2582
  %v3378 = vsel %vm3334, %v3313, %v2584
  %v3379 = vsel %vm3334, %v3314, %v2586
  %v3380 = vsel %vm3334, %v3315, %v2588
  %v3381 = vsel %vm3334, %v3316, %v2590
  %v3382 = vsel %vm3334, %v3317, %v2592
  %v3383 = vsel %vm3334, %v3318, %v2594
  %v3384 = vsel %vm3334, %v3319, %v2596
  %v3385 = vsel %vm3334, %v3320, %v2598
  %v3386 = vsel %vm3334, %v3321, %v2600
  %v3387 = vsel %vm3334, %v3322, %v2602
  %v3388 = vsel %vm3334, %v3323, %v2604
  %v3389 = vsel %vm3334, %v3324, %v2606
  %v3390 = vsel %vm3334, %v3325, %v2608
  %v3391 = vsel %vm3334, %v3326, %v2610
  %v3392 = vsel %vm3334, %v3327, %v2612
  %v3393 = vsel %vm3334, %v3328, %v2614
  %v3394 = vsel %vm3334, %v3329, %v2616
  %v3395 = vsel %vm3334, %v3330, %v2618
  %v3396 = vsel %vm3334, %v3331, %v2620
  %v3397 = vsel %vm3334, %v3332, %v2622
  %v3398 = vsel %vm3334, %v3333, %v2624
  %vm3399 = vcmask 261120
  %v3400 = vsel %vm3399, %v3335, %v2754
  %v3401 = vsel %vm3399, %v3336, %v2756
  %v3402 = vsel %vm3399, %v3337, %v2758
  %v3403 = vsel %vm3399, %v3338, %v2760
  %v3404 = vsel %vm3399, %v3339, %v2762
  %v3405 = vsel %vm3399, %v3340, %v2764
  %v3406 = vsel %vm3399, %v3341, %v2766
  %v3407 = vsel %vm3399, %v3342, %v2768
  %v3408 = vsel %vm3399, %v3343, %v2770
  %v3409 = vsel %vm3399, %v3344, %v2772
  %v3410 = vsel %vm3399, %v3345, %v2774
  %v3411 = vsel %vm3399, %v3346, %v2776
  %v3412 = vsel %vm3399, %v3347, %v2778
  %v3413 = vsel %vm3399, %v3348, %v2780
  %v3414 = vsel %vm3399, %v3349, %v2782
  %v3415 = vsel %vm3399, %v3350, %v2784
  %v3416 = vsel %vm3399, %v3351, %v2786
  %v3417 = vsel %vm3399, %v3352, %v2788
  %v3418 = vsel %vm3399, %v3353, %v2790
  %v3419 = vsel %vm3399, %v3354, %v2792
  %v3420 = vsel %vm3399, %v3355, %v2794
  %v3421 = vsel %vm3399, %v3356, %v2796
  %v3422 = vsel %vm3399, %v3357, %v2798
  %v3423 = vsel %vm3399, %v3358, %v2800
  %v3424 = vsel %vm3399, %v3359, %v2802
  %v3425 = vsel %vm3399, %v3360, %v2804
  %v3426 = vsel %vm3399, %v3361, %v2806
  %v3427 = vsel %vm3399, %v3362, %v2808
  %v3428 = vsel %vm3399, %v3363, %v2810
  %v3429 = vsel %vm3399, %v3364, %v2812
  %v3430 = vsel %vm3399, %v3365, %v2814
  %v3431 = vsel %vm3399, %v3366, %v2816
  %v3432 = vsel %vm3399, %v3367, %v2818
  %v3433 = vsel %vm3399, %v3368, %v2820
  %v3434 = vsel %vm3399, %v3369, %v2822
  %v3435 = vsel %vm3399, %v3370, %v2824
  %v3436 = vsel %vm3399, %v3371, %v2826
  %v3437 = vsel %vm3399, %v3372, %v2828
  %v3438 = vsel %vm3399, %v3373, %v2830
  %v3439 = vsel %vm3399, %v3374, %v2832
  %v3440 = vsel %vm3399, %v3375, %v2834
  %v3441 = vsel %vm3399, %v3376, %v2836
  %v3442 = vsel %vm3399, %v3377, %v2838
  %v3443 = vsel %vm3399, %v3378, %v2840
  %v3444 = vsel %vm3399, %v3379, %v2842
  %v3445 = vsel %vm3399, %v3380, %v2844
  %v3446 = vsel %vm3399, %v3381, %v2846
  %v3447 = vsel %vm3399, %v3382, %v2848
  %v3448 = vsel %vm3399, %v3383, %v2850
  %v3449 = vsel %vm3399, %v3384, %v2852
  %v3450 = vsel %vm3399, %v3385, %v2854
  %v3451 = vsel %vm3399, %v3386, %v2856
  %v3452 = vsel %vm3399, %v3387, %v2858
  %v3453 = vsel %vm3399, %v3388, %v2860
  %v3454 = vsel %vm3399, %v3389, %v2862
  %v3455 = vsel %vm3399, %v3390, %v2864
  %v3456 = vsel %vm3399, %v3391, %v2866
  %v3457 = vsel %vm3399, %v3392, %v2868
  %v3458 = vsel %vm3399, %v3393, %v2870
  %v3459 = vsel %vm3399, %v3394, %v2872
  %v3460 = vsel %vm3399, %v3395, %v2874
  %v3461 = vsel %vm3399, %v3396, %v2876
  %v3462 = vsel %vm3399, %v3397, %v2878
  %v3463 = vsel %vm3399, %v3398, %v2880
  %v3464 = vld [vmem:[%s1] sm:$0xff]
  %v3465 = vld [vmem:[%s1 + $0x8] sm:$0xff]
  %v3466 = vld [vmem:[%s1 + $0x10] sm:$0xff]
  %v3467 = vld [vmem:[%s1 + $0x18] sm:$0xff]
  %v3468 = vld [vmem:[%s1 + $0x20] sm:$0xf]
  %vm3469 = vcmask 293888
  %v3471 = vsel %vm3469, %v3400, 0
  %v3474 = vsel %vm3469, %v3401, 0
  %v3477 = vsel %vm3469, %v3402, 0
  %v3480 = vsel %vm3469, %v3403, 0
  %v3483 = vsel %vm3469, %v3404, 0
  %v3486 = vsel %vm3469, %v3405, 0
  %v3489 = vsel %vm3469, %v3406, 0
  %v3492 = vsel %vm3469, %v3407, 0
  %v3495 = vsel %vm3469, %v3408, 0
  %v3498 = vsel %vm3469, %v3409, 0
  %v3501 = vsel %vm3469, %v3410, 0
  %v3504 = vsel %vm3469, %v3411, 0
  %v3507 = vsel %vm3469, %v3412, 0
  %v3510 = vsel %vm3469, %v3413, 0
  %v3513 = vsel %vm3469, %v3414, 0
  %v3516 = vsel %vm3469, %v3415, 0
  %v3519 = vsel %vm3469, %v3416, 0
  %v3522 = vsel %vm3469, %v3417, 0
  %v3525 = vsel %vm3469, %v3418, 0
  %v3528 = vsel %vm3469, %v3419, 0
  %v3531 = vsel %vm3469, %v3420, 0
  %v3534 = vsel %vm3469, %v3421, 0
  %v3537 = vsel %vm3469, %v3422, 0
  %v3540 = vsel %vm3469, %v3423, 0
  %v3543 = vsel %vm3469, %v3424, 0
  %v3546 = vsel %vm3469, %v3425, 0
  %v3549 = vsel %vm3469, %v3426, 0
  %v3552 = vsel %vm3469, %v3427, 0
  %v3555 = vsel %vm3469, %v3428, 0
  %v3558 = vsel %vm3469, %v3429, 0
  %v3561 = vsel %vm3469, %v3430, 0
  %v3564 = vsel %vm3469, %v3431, 0
  %v3567 = vsel %vm3469, %v3432, 0
  %v3570 = vsel %vm3469, %v3433, 0
  %v3573 = vsel %vm3469, %v3434, 0
  %v3576 = vsel %vm3469, %v3435, 0
  %v3579 = vsel %vm3469, %v3436, 0
  %v3582 = vsel %vm3469, %v3437, 0
  %v3585 = vsel %vm3469, %v3438, 0
  %v3588 = vsel %vm3469, %v3439, 0
  %v3591 = vsel %vm3469, %v3440, 0
  %v3594 = vsel %vm3469, %v3441, 0
  %v3597 = vsel %vm3469, %v3442, 0
  %v3600 = vsel %vm3469, %v3443, 0
  %v3603 = vsel %vm3469, %v3444, 0
  %v3606 = vsel %vm3469, %v3445, 0
  %v3609 = vsel %vm3469, %v3446, 0
  %v3612 = vsel %vm3469, %v3447, 0
  %v3615 = vsel %vm3469, %v3448, 0
  %v3618 = vsel %vm3469, %v3449, 0
  %v3621 = vsel %vm3469, %v3450, 0
  %v3624 = vsel %vm3469, %v3451, 0
  %v3627 = vsel %vm3469, %v3452, 0
  %v3630 = vsel %vm3469, %v3453, 0
  %v3633 = vsel %vm3469, %v3454, 0
  %v3636 = vsel %vm3469, %v3455, 0
  %v3639 = vsel %vm3469, %v3456, 0
  %v3642 = vsel %vm3469, %v3457, 0
  %v3645 = vsel %vm3469, %v3458, 0
  %v3648 = vsel %vm3469, %v3459, 0
  %v3651 = vsel %vm3469, %v3460, 0
  %v3654 = vsel %vm3469, %v3461, 0
  %v3657 = vsel %vm3469, %v3462, 0
  %v3660 = vsel %vm3469, %v3463, 0
  %vm3662 = vcmask 1043456
  %v3664 = vsel %vm3662, %v3468, 0
  %3666 = vmatprep.subr.mxu0 0.0
  %3667 = vmatpush1.msra.mxu0 %v3464
  %3668 = vmatprep.subr.mxu0 0.0
  %3669 = vmatpush1.msra.mxu0 %v3465
  %3670 = vmatprep.subr.mxu0 0.0
  %3671 = vmatpush1.msra.mxu0 %v3466
  %3672 = vmatprep.subr.mxu0 0.0
  %3673 = vmatpush1.msra.mxu0 %v3467
  %3674 = vmatprep.subr.mxu0 0.0
  %3675 = vmatpush1.msra.mxu0 %v3664
  %3676 = vmatprep.subr.mxu0 0.0
  %3677 = vmatpush1.msra.mxu0 0.0
  %3678 = vmatprep.subr.mxu0 0.0
  %3679 = vmatpush1.msra.mxu0 0.0
  %3680 = vmatprep.subr.mxu0 0.0
  %3681 = vmatpush1.msra.mxu0 0.0
  %3682 = vmatprep.subr.mxu0 0.0
  %3683 = vmatpush1.msra.mxu0 0.0
  %3684 = vmatprep.subr.mxu0 0.0
  %3685 = vmatpush1.msra.mxu0 0.0
  %3686 = vmatprep.subr.mxu0 0.0
  %3687 = vmatpush1.msra.mxu0 0.0
  %3688 = vmatprep.subr.mxu0 0.0
  %3689 = vmatpush1.msra.mxu0 0.0
  %3690 = vmatprep.subr.mxu0 0.0
  %3691 = vmatpush1.msra.mxu0 0.0
  %3692 = vmatprep.subr.mxu0 0.0
  %3693 = vmatpush1.msra.mxu0 0.0
  %3694 = vmatprep.subr.mxu0 0.0
  %3695 = vmatpush1.msra.mxu0 0.0
  %3696 = vmatprep.subr.mxu0 0.0
  %3697 = vmatpush1.msra.mxu0 0.0
  %3698 = vmatprep.subr.mxu0 0.0
  %3699 = vmatpush1.msra.mxu0 0.0
  %3700 = vmatprep.subr.mxu0 0.0
  %3701 = vmatpush1.msra.mxu0 0.0
  %3702 = vmatprep.subr.mxu0 0.0
  %3703 = vmatpush1.msra.mxu0 0.0
  %3704 = vmatprep.subr.mxu0 0.0
  %3705 = vmatpush1.msra.mxu0 0.0
  %3706 = vmatprep.subr.mxu0 0.0
  %3707 = vmatpush1.msra.mxu0 0.0
  %3708 = vmatprep.subr.mxu0 0.0
  %3709 = vmatpush1.msra.mxu0 0.0
  %3710 = vmatprep.subr.mxu0 0.0
  %3711 = vmatpush1.msra.mxu0 0.0
  %3712 = vmatprep.subr.mxu0 0.0
  %3713 = vmatpush1.msra.mxu0 0.0
  %3714 = vmatprep.subr.mxu0 0.0
  %3715 = vmatpush1.msra.mxu0 0.0
  %3716 = vmatprep.subr.mxu0 0.0
  %3717 = vmatpush1.msra.mxu0 0.0
  %3718 = vmatprep.subr.mxu0 0.0
  %3719 = vmatpush1.msra.mxu0 0.0
  %3720 = vmatprep.subr.mxu0 0.0
  %3721 = vmatpush1.msra.mxu0 0.0
  %3722 = vmatprep.subr.mxu0 0.0
  %3723 = vmatpush1.msra.mxu0 0.0
  %3724 = vmatprep.subr.mxu0 0.0
  %3725 = vmatpush1.msra.mxu0 0.0
  %3726 = vmatprep.subr.mxu0 0.0
  %3727 = vmatpush1.msra.mxu0 0.0
  %3728 = vmatprep.subr.mxu0 0.0
  %3729 = vmatpush1.msra.mxu0 0.0
  %3730 = vmatprep.mubr.f32.mxu0 0.0
  %3731 = vmatmul.mubr.f32.gmra.mrb[0].mxu0 %v3471
  %v3732 = vpop.f32.mrb[0].mxu0
  %v3733 = vadd.f32 0.0, %v3732
  %v3734 = vpop.f32.mrb[0].mxu0
  %3735 = vmatprep.mubr.f32.mxu0 0.0
  %3736 = vmatmul.mubr.f32.gmra.mrb[0].mxu0 %v3474
  %v3737 = vpop.f32.mrb[0].mxu0
  %v3738 = vadd.f32 0.0, %v3737
  %v3739 = vpop.f32.mrb[0].mxu0
  %3740 = vmatprep.mubr.f32.mxu0 0.0
  %3741 = vmatmul.mubr.f32.gmra.mrb[0].mxu0 %v3477
  %v3742 = vpop.f32.mrb[0].mxu0
  %v3743 = vadd.f32 0.0, %v3742
  %v3744 = vpop.f32.mrb[0].mxu0
  %3745 = vmatprep.mubr.f32.mxu0 0.0
  %3746 = vmatmul.mubr.f32.gmra.mrb[0].mxu0 %v3480
  %v3747 = vpop.f32.mrb[0].mxu0
  %v3748 = vadd.f32 0.0, %v3747
  %v3749 = vpop.f32.mrb[0].mxu0
  %3750 = vmatprep.mubr.f32.mxu0 0.0
  %3751 = vmatmul.mubr.f32.gmra.mrb[0].mxu0 %v3483
  %v3752 = vpop.f32.mrb[0].mxu0
  %v3753 = vadd.f32 0.0, %v3752
  %v3754 = vpop.f32.mrb[0].mxu0
  %3755 = vmatprep.mubr.f32.mxu0 0.0
  %3756 = vmatmul.mubr.f32.gmra.mrb[0].mxu0 %v3486
  %v3757 = vpop.f32.mrb[0].mxu0
  %v3758 = vadd.f32 0.0, %v3757
  %v3759 = vpop.f32.mrb[0].mxu0
  %3760 = vmatprep.mubr.f32.mxu0 0.0
  %3761 = vmatmul.mubr.f32.gmra.mrb[0].mxu0 %v3489
  %v3762 = vpop.f32.mrb[0].mxu0
  %v3763 = vadd.f32 0.0, %v3762
  %v3764 = vpop.f32.mrb[0].mxu0
  %3765 = vmatprep.mubr.f32.mxu0 0.0
  %3766 = vmatmul.mubr.f32.gmra.mrb[0].mxu0 %v3492
  %v3767 = vpop.f32.mrb[0].mxu0
  %v3768 = vadd.f32 0.0, %v3767
  %v3769 = vpop.f32.mrb[0].mxu0
  %3770 = vmatprep.mubr.f32.mxu0 0.0
  %3771 = vmatmul.mubr.f32.gmra.mrb[0].mxu0 %v3495
  %v3772 = vpop.f32.mrb[0].mxu0
  %v3773 = vadd.f32 0.0, %v3772
  %v3774 = vpop.f32.mrb[0].mxu0
  %3775 = vmatprep.mubr.f32.mxu0 0.0
  %3776 = vmatmul.mubr.f32.gmra.mrb[0].mxu0 %v3498
  %v3777 = vpop.f32.mrb[0].mxu0
  %v3778 = vadd.f32 0.0, %v3777
  %v3779 = vpop.f32.mrb[0].mxu0
  %3780 = vmatprep.mubr.f32.mxu0 0.0
  %3781 = vmatmul.mubr.f32.gmra.mrb[0].mxu0 %v3501
  %v3782 = vpop.f32.mrb[0].mxu0
  %v3783 = vadd.f32 0.0, %v3782
  %v3784 = vpop.f32.mrb[0].mxu0
  %3785 = vmatprep.mubr.f32.mxu0 0.0
  %3786 = vmatmul.mubr.f32.gmra.mrb[0].mxu0 %v3504
  %v3787 = vpop.f32.mrb[0].mxu0
  %v3788 = vadd.f32 0.0, %v3787
  %v3789 = vpop.f32.mrb[0].mxu0
  %3790 = vmatprep.mubr.f32.mxu0 0.0
  %3791 = vmatmul.mubr.f32.gmra.mrb[0].mxu0 %v3507
  %v3792 = vpop.f32.mrb[0].mxu0
  %v3793 = vadd.f32 0.0, %v3792
  %v3794 = vpop.f32.mrb[0].mxu0
  %3795 = vmatprep.mubr.f32.mxu0 0.0
  %3796 = vmatmul.mubr.f32.gmra.mrb[0].mxu0 %v3510
  %v3797 = vpop.f32.mrb[0].mxu0
  %v3798 = vadd.f32 0.0, %v3797
  %v3799 = vpop.f32.mrb[0].mxu0
  %3800 = vmatprep.mubr.f32.mxu0 0.0
  %3801 = vmatmul.mubr.f32.gmra.mrb[0].mxu0 %v3513
  %v3802 = vpop.f32.mrb[0].mxu0
  %v3803 = vadd.f32 0.0, %v3802
  %v3804 = vpop.f32.mrb[0].mxu0
  %3805 = vmatprep.mubr.f32.mxu0 0.0
  %3806 = vmatmul.mubr.f32.gmra.mrb[0].mxu0 %v3516
  %v3807 = vpop.f32.mrb[0].mxu0
  %v3808 = vadd.f32 0.0, %v3807
  %v3809 = vpop.f32.mrb[0].mxu0
  %3810 = vmatprep.mubr.f32.mxu0 0.0
  %3811 = vmatmul.mubr.f32.gmra.mrb[0].mxu0 %v3519
  %v3812 = vpop.f32.mrb[0].mxu0
  %v3813 = vadd.f32 0.0, %v3812
  %v3814 = vpop.f32.mrb[0].mxu0
  %3815 = vmatprep.mubr.f32.mxu0 0.0
  %3816 = vmatmul.mubr.f32.gmra.mrb[0].mxu0 %v3522
  %v3817 = vpop.f32.mrb[0].mxu0
  %v3818 = vadd.f32 0.0, %v3817
  %v3819 = vpop.f32.mrb[0].mxu0
  %3820 = vmatprep.mubr.f32.mxu0 0.0
  %3821 = vmatmul.mubr.f32.gmra.mrb[0].mxu0 %v3525
  %v3822 = vpop.f32.mrb[0].mxu0
  %v3823 = vadd.f32 0.0, %v3822
  %v3824 = vpop.f32.mrb[0].mxu0
  %3825 = vmatprep.mubr.f32.mxu0 0.0
  %3826 = vmatmul.mubr.f32.gmra.mrb[0].mxu0 %v3528
  %v3827 = vpop.f32.mrb[0].mxu0
  %v3828 = vadd.f32 0.0, %v3827
  %v3829 = vpop.f32.mrb[0].mxu0
  %3830 = vmatprep.mubr.f32.mxu0 0.0
  %3831 = vmatmul.mubr.f32.gmra.mrb[0].mxu0 %v3531
  %v3832 = vpop.f32.mrb[0].mxu0
  %v3833 = vadd.f32 0.0, %v3832
  %v3834 = vpop.f32.mrb[0].mxu0
  %3835 = vmatprep.mubr.f32.mxu0 0.0
  %3836 = vmatmul.mubr.f32.gmra.mrb[0].mxu0 %v3534
  %v3837 = vpop.f32.mrb[0].mxu0
  %v3838 = vadd.f32 0.0, %v3837
  %v3839 = vpop.f32.mrb[0].mxu0
  %3840 = vmatprep.mubr.f32.mxu0 0.0
  %3841 = vmatmul.mubr.f32.gmra.mrb[0].mxu0 %v3537
  %v3842 = vpop.f32.mrb[0].mxu0
  %v3843 = vadd.f32 0.0, %v3842
  %v3844 = vpop.f32.mrb[0].mxu0
  %3845 = vmatprep.mubr.f32.mxu0 0.0
  %3846 = vmatmul.mubr.f32.gmra.mrb[0].mxu0 %v3540
  %v3847 = vpop.f32.mrb[0].mxu0
  %v3848 = vadd.f32 0.0, %v3847
  %v3849 = vpop.f32.mrb[0].mxu0
  %3850 = vmatprep.mubr.f32.mxu0 0.0
  %3851 = vmatmul.mubr.f32.gmra.mrb[0].mxu0 %v3543
  %v3852 = vpop.f32.mrb[0].mxu0
  %v3853 = vadd.f32 0.0, %v3852
  %v3854 = vpop.f32.mrb[0].mxu0
  %3855 = vmatprep.mubr.f32.mxu0 0.0
  %3856 = vmatmul.mubr.f32.gmra.mrb[0].mxu0 %v3546
  %v3857 = vpop.f32.mrb[0].mxu0
  %v3858 = vadd.f32 0.0, %v3857
  %v3859 = vpop.f32.mrb[0].mxu0
  %3860 = vmatprep.mubr.f32.mxu0 0.0
  %3861 = vmatmul.mubr.f32.gmra.mrb[0].mxu0 %v3549
  %v3862 = vpop.f32.mrb[0].mxu0
  %v3863 = vadd.f32 0.0, %v3862
  %v3864 = vpop.f32.mrb[0].mxu0
  %3865 = vmatprep.mubr.f32.mxu0 0.0
  %3866 = vmatmul.mubr.f32.gmra.mrb[0].mxu0 %v3552
  %v3867 = vpop.f32.mrb[0].mxu0
  %v3868 = vadd.f32 0.0, %v3867
  %v3869 = vpop.f32.mrb[0].mxu0
  %3870 = vmatprep.mubr.f32.mxu0 0.0
  %3871 = vmatmul.mubr.f32.gmra.mrb[0].mxu0 %v3555
  %v3872 = vpop.f32.mrb[0].mxu0
  %v3873 = vadd.f32 0.0, %v3872
  %v3874 = vpop.f32.mrb[0].mxu0
  %3875 = vmatprep.mubr.f32.mxu0 0.0
  %3876 = vmatmul.mubr.f32.gmra.mrb[0].mxu0 %v3558
  %v3877 = vpop.f32.mrb[0].mxu0
  %v3878 = vadd.f32 0.0, %v3877
  %v3879 = vpop.f32.mrb[0].mxu0
  %3880 = vmatprep.mubr.f32.mxu0 0.0
  %3881 = vmatmul.mubr.f32.gmra.mrb[0].mxu0 %v3561
  %v3882 = vpop.f32.mrb[0].mxu0
  %v3883 = vadd.f32 0.0, %v3882
  %v3884 = vpop.f32.mrb[0].mxu0
  %3885 = vmatprep.mubr.f32.mxu0 0.0
  %3886 = vmatmul.mubr.f32.gmra.mrb[0].mxu0 %v3564
  %v3887 = vpop.f32.mrb[0].mxu0
  %v3888 = vadd.f32 0.0, %v3887
  %v3889 = vpop.f32.mrb[0].mxu0
  %3890 = vmatprep.mubr.f32.mxu0 0.0
  %3891 = vmatmul.mubr.f32.gmra.mrb[0].mxu0 %v3567
  %v3892 = vpop.f32.mrb[0].mxu0
  %v3893 = vadd.f32 0.0, %v3892
  %v3894 = vpop.f32.mrb[0].mxu0
  %3895 = vmatprep.mubr.f32.mxu0 0.0
  %3896 = vmatmul.mubr.f32.gmra.mrb[0].mxu0 %v3570
  %v3897 = vpop.f32.mrb[0].mxu0
  %v3898 = vadd.f32 0.0, %v3897
  %v3899 = vpop.f32.mrb[0].mxu0
  %3900 = vmatprep.mubr.f32.mxu0 0.0
  %3901 = vmatmul.mubr.f32.gmra.mrb[0].mxu0 %v3573
  %v3902 = vpop.f32.mrb[0].mxu0
  %v3903 = vadd.f32 0.0, %v3902
  %v3904 = vpop.f32.mrb[0].mxu0
  %3905 = vmatprep.mubr.f32.mxu0 0.0
  %3906 = vmatmul.mubr.f32.gmra.mrb[0].mxu0 %v3576
  %v3907 = vpop.f32.mrb[0].mxu0
  %v3908 = vadd.f32 0.0, %v3907
  %v3909 = vpop.f32.mrb[0].mxu0
  %3910 = vmatprep.mubr.f32.mxu0 0.0
  %3911 = vmatmul.mubr.f32.gmra.mrb[0].mxu0 %v3579
  %v3912 = vpop.f32.mrb[0].mxu0
  %v3913 = vadd.f32 0.0, %v3912
  %v3914 = vpop.f32.mrb[0].mxu0
  %3915 = vmatprep.mubr.f32.mxu0 0.0
  %3916 = vmatmul.mubr.f32.gmra.mrb[0].mxu0 %v3582
  %v3917 = vpop.f32.mrb[0].mxu0
  %v3918 = vadd.f32 0.0, %v3917
  %v3919 = vpop.f32.mrb[0].mxu0
  %3920 = vmatprep.mubr.f32.mxu0 0.0
  %3921 = vmatmul.mubr.f32.gmra.mrb[0].mxu0 %v3585
  %v3922 = vpop.f32.mrb[0].mxu0
  %v3923 = vadd.f32 0.0, %v3922
  %v3924 = vpop.f32.mrb[0].mxu0
  %3925 = vmatprep.mubr.f32.mxu0 0.0
  %3926 = vmatmul.mubr.f32.gmra.mrb[0].mxu0 %v3588
  %v3927 = vpop.f32.mrb[0].mxu0
  %v3928 = vadd.f32 0.0, %v3927
  %v3929 = vpop.f32.mrb[0].mxu0
  %3930 = vmatprep.mubr.f32.mxu0 0.0
  %3931 = vmatmul.mubr.f32.gmra.mrb[0].mxu0 %v3591
  %v3932 = vpop.f32.mrb[0].mxu0
  %v3933 = vadd.f32 0.0, %v3932
  %v3934 = vpop.f32.mrb[0].mxu0
  %3935 = vmatprep.mubr.f32.mxu0 0.0
  %3936 = vmatmul.mubr.f32.gmra.mrb[0].mxu0 %v3594
  %v3937 = vpop.f32.mrb[0].mxu0
  %v3938 = vadd.f32 0.0, %v3937
  %v3939 = vpop.f32.mrb[0].mxu0
  %3940 = vmatprep.mubr.f32.mxu0 0.0
  %3941 = vmatmul.mubr.f32.gmra.mrb[0].mxu0 %v3597
  %v3942 = vpop.f32.mrb[0].mxu0
  %v3943 = vadd.f32 0.0, %v3942
  %v3944 = vpop.f32.mrb[0].mxu0
  %3945 = vmatprep.mubr.f32.mxu0 0.0
  %3946 = vmatmul.mubr.f32.gmra.mrb[0].mxu0 %v3600
  %v3947 = vpop.f32.mrb[0].mxu0
  %v3948 = vadd.f32 0.0, %v3947
  %v3949 = vpop.f32.mrb[0].mxu0
  %3950 = vmatprep.mubr.f32.mxu0 0.0
  %3951 = vmatmul.mubr.f32.gmra.mrb[0].mxu0 %v3603
  %v3952 = vpop.f32.mrb[0].mxu0
  %v3953 = vadd.f32 0.0, %v3952
  %v3954 = vpop.f32.mrb[0].mxu0
  %3955 = vmatprep.mubr.f32.mxu0 0.0
  %3956 = vmatmul.mubr.f32.gmra.mrb[0].mxu0 %v3606
  %v3957 = vpop.f32.mrb[0].mxu0
  %v3958 = vadd.f32 0.0, %v3957
  %v3959 = vpop.f32.mrb[0].mxu0
  %3960 = vmatprep.mubr.f32.mxu0 0.0
  %3961 = vmatmul.mubr.f32.gmra.mrb[0].mxu0 %v3609
  %v3962 = vpop.f32.mrb[0].mxu0
  %v3963 = vadd.f32 0.0, %v3962
  %v3964 = vpop.f32.mrb[0].mxu0
  %3965 = vmatprep.mubr.f32.mxu0 0.0
  %3966 = vmatmul.mubr.f32.gmra.mrb[0].mxu0 %v3612
  %v3967 = vpop.f32.mrb[0].mxu0
  %v3968 = vadd.f32 0.0, %v3967
  %v3969 = vpop.f32.mrb[0].mxu0
  %3970 = vmatprep.mubr.f32.mxu0 0.0
  %3971 = vmatmul.mubr.f32.gmra.mrb[0].mxu0 %v3615
  %v3972 = vpop.f32.mrb[0].mxu0
  %v3973 = vadd.f32 0.0, %v3972
  %v3974 = vpop.f32.mrb[0].mxu0
  %3975 = vmatprep.mubr.f32.mxu0 0.0
  %3976 = vmatmul.mubr.f32.gmra.mrb[0].mxu0 %v3618
  %v3977 = vpop.f32.mrb[0].mxu0
  %v3978 = vadd.f32 0.0, %v3977
  %v3979 = vpop.f32.mrb[0].mxu0
  %3980 = vmatprep.mubr.f32.mxu0 0.0
  %3981 = vmatmul.mubr.f32.gmra.mrb[0].mxu0 %v3621
  %v3982 = vpop.f32.mrb[0].mxu0
  %v3983 = vadd.f32 0.0, %v3982
  %v3984 = vpop.f32.mrb[0].mxu0
  %3985 = vmatprep.mubr.f32.mxu0 0.0
  %3986 = vmatmul.mubr.f32.gmra.mrb[0].mxu0 %v3624
  %v3987 = vpop.f32.mrb[0].mxu0
  %v3988 = vadd.f32 0.0, %v3987
  %v3989 = vpop.f32.mrb[0].mxu0
  %3990 = vmatprep.mubr.f32.mxu0 0.0
  %3991 = vmatmul.mubr.f32.gmra.mrb[0].mxu0 %v3627
  %v3992 = vpop.f32.mrb[0].mxu0
  %v3993 = vadd.f32 0.0, %v3992
  %v3994 = vpop.f32.mrb[0].mxu0
  %3995 = vmatprep.mubr.f32.mxu0 0.0
  %3996 = vmatmul.mubr.f32.gmra.mrb[0].mxu0 %v3630
  %v3997 = vpop.f32.mrb[0].mxu0
  %v3998 = vadd.f32 0.0, %v3997
  %v3999 = vpop.f32.mrb[0].mxu0
  %4000 = vmatprep.mubr.f32.mxu0 0.0
  %4001 = vmatmul.mubr.f32.gmra.mrb[0].mxu0 %v3633
  %v4002 = vpop.f32.mrb[0].mxu0
  %v4003 = vadd.f32 0.0, %v4002
  %v4004 = vpop.f32.mrb[0].mxu0
  %4005 = vmatprep.mubr.f32.mxu0 0.0
  %4006 = vmatmul.mubr.f32.gmra.mrb[0].mxu0 %v3636
  %v4007 = vpop.f32.mrb[0].mxu0
  %v4008 = vadd.f32 0.0, %v4007
  %v4009 = vpop.f32.mrb[0].mxu0
  %4010 = vmatprep.mubr.f32.mxu0 0.0
  %4011 = vmatmul.mubr.f32.gmra.mrb[0].mxu0 %v3639
  %v4012 = vpop.f32.mrb[0].mxu0
  %v4013 = vadd.f32 0.0, %v4012
  %v4014 = vpop.f32.mrb[0].mxu0
  %4015 = vmatprep.mubr.f32.mxu0 0.0
  %4016 = vmatmul.mubr.f32.gmra.mrb[0].mxu0 %v3642
  %v4017 = vpop.f32.mrb[0].mxu0
  %v4018 = vadd.f32 0.0, %v4017
  %v4019 = vpop.f32.mrb[0].mxu0
  %4020 = vmatprep.mubr.f32.mxu0 0.0
  %4021 = vmatmul.mubr.f32.gmra.mrb[0].mxu0 %v3645
  %v4022 = vpop.f32.mrb[0].mxu0
  %v4023 = vadd.f32 0.0, %v4022
  %v4024 = vpop.f32.mrb[0].mxu0
  %4025 = vmatprep.mubr.f32.mxu0 0.0
  %4026 = vmatmul.mubr.f32.gmra.mrb[0].mxu0 %v3648
  %v4027 = vpop.f32.mrb[0].mxu0
  %v4028 = vadd.f32 0.0, %v4027
  %v4029 = vpop.f32.mrb[0].mxu0
  %4030 = vmatprep.mubr.f32.mxu0 0.0
  %4031 = vmatmul.mubr.f32.gmra.mrb[0].mxu0 %v3651
  %v4032 = vpop.f32.mrb[0].mxu0
  %v4033 = vadd.f32 0.0, %v4032
  %v4034 = vpop.f32.mrb[0].mxu0
  %4035 = vmatprep.mubr.f32.mxu0 0.0
  %4036 = vmatmul.mubr.f32.gmra.mrb[0].mxu0 %v3654
  %v4037 = vpop.f32.mrb[0].mxu0
  %v4038 = vadd.f32 0.0, %v4037
  %v4039 = vpop.f32.mrb[0].mxu0
  %4040 = vmatprep.mubr.f32.mxu0 0.0
  %4041 = vmatmul.mubr.f32.gmra.mrb[0].mxu0 %v3657
  %v4042 = vpop.f32.mrb[0].mxu0
  %v4043 = vadd.f32 0.0, %v4042
  %v4044 = vpop.f32.mrb[0].mxu0
  %4045 = vmatprep.mubr.f32.mxu0 0.0
  %4046 = vmatmul.mubr.f32.gmra.mrb[0].mxu0 %v3660
  %v4047 = vpop.f32.mrb[0].mxu0
  %v4048 = vadd.f32 0.0, %v4047
  %v4049 = vpop.f32.mrb[0].mxu0
  %4050 = vdwg.mxu0
  %v4051 = vsel %vm81, %v3733, 0.0
  %v4052 = vsel %vm81, %v3738, 0.0
  %v4053 = vadd.f32 %v4051, %v4052
  %v4054 = vsel %vm81, %v3743, 0.0
  %v4055 = vadd.f32 %v4053, %v4054
  %v4056 = vsel %vm81, %v3748, 0.0
  %v4057 = vadd.f32 %v4055, %v4056
  %v4058 = vsel %vm81, %v3753, 0.0
  %v4059 = vadd.f32 %v4057, %v4058
  %v4060 = vsel %vm81, %v3758, 0.0
  %v4061 = vadd.f32 %v4059, %v4060
  %v4062 = vsel %vm81, %v3763, 0.0
  %v4063 = vadd.f32 %v4061, %v4062
  %v4064 = vsel %vm81, %v3768, 0.0
  %v4065 = vadd.f32 %v4063, %v4064
  %v4066 = vsel %vm81, %v3773, 0.0
  %v4067 = vadd.f32 %v4065, %v4066
  %v4068 = vsel %vm81, %v3778, 0.0
  %v4069 = vadd.f32 %v4067, %v4068
  %v4070 = vsel %vm81, %v3783, 0.0
  %v4071 = vadd.f32 %v4069, %v4070
  %v4072 = vsel %vm81, %v3788, 0.0
  %v4073 = vadd.f32 %v4071, %v4072
  %v4074 = vsel %vm81, %v3793, 0.0
  %v4075 = vadd.f32 %v4073, %v4074
  %v4076 = vsel %vm81, %v3798, 0.0
  %v4077 = vadd.f32 %v4075, %v4076
  %v4078 = vsel %vm81, %v3803, 0.0
  %v4079 = vadd.f32 %v4077, %v4078
  %v4080 = vsel %vm81, %v3808, 0.0
  %v4081 = vadd.f32 %v4079, %v4080
  %v4082 = vsel %vm81, %v3813, 0.0
  %v4083 = vadd.f32 %v4081, %v4082
  %v4084 = vsel %vm81, %v3818, 0.0
  %v4085 = vadd.f32 %v4083, %v4084
  %v4086 = vsel %vm81, %v3823, 0.0
  %v4087 = vadd.f32 %v4085, %v4086
  %v4088 = vsel %vm81, %v3828, 0.0
  %v4089 = vadd.f32 %v4087, %v4088
  %v4090 = vsel %vm81, %v3833, 0.0
  %v4091 = vadd.f32 %v4089, %v4090
  %v4092 = vsel %vm81, %v3838, 0.0
  %v4093 = vadd.f32 %v4091, %v4092
  %v4094 = vsel %vm81, %v3843, 0.0
  %v4095 = vadd.f32 %v4093, %v4094
  %v4096 = vsel %vm81, %v3848, 0.0
  %v4097 = vadd.f32 %v4095, %v4096
  %v4098 = vsel %vm81, %v3853, 0.0
  %v4099 = vadd.f32 %v4097, %v4098
  %v4100 = vsel %vm81, %v3858, 0.0
  %v4101 = vadd.f32 %v4099, %v4100
  %v4102 = vsel %vm81, %v3863, 0.0
  %v4103 = vadd.f32 %v4101, %v4102
  %v4104 = vsel %vm81, %v3868, 0.0
  %v4105 = vadd.f32 %v4103, %v4104
  %v4106 = vsel %vm81, %v3873, 0.0
  %v4107 = vadd.f32 %v4105, %v4106
  %v4108 = vsel %vm81, %v3878, 0.0
  %v4109 = vadd.f32 %v4107, %v4108
  %v4110 = vsel %vm81, %v3883, 0.0
  %v4111 = vadd.f32 %v4109, %v4110
  %v4112 = vsel %vm81, %v3888, 0.0
  %v4113 = vadd.f32 %v4111, %v4112
  %v4114 = vsel %vm81, %v3893, 0.0
  %v4115 = vadd.f32 %v4113, %v4114
  %v4116 = vsel %vm81, %v3898, 0.0
  %v4117 = vadd.f32 %v4115, %v4116
  %v4118 = vsel %vm81, %v3903, 0.0
  %v4119 = vadd.f32 %v4117, %v4118
  %v4120 = vsel %vm81, %v3908, 0.0
  %v4121 = vadd.f32 %v4119, %v4120
  %v4122 = vsel %vm81, %v3913, 0.0
  %v4123 = vadd.f32 %v4121, %v4122
  %v4124 = vsel %vm81, %v3918, 0.0
  %v4125 = vadd.f32 %v4123, %v4124
  %v4126 = vsel %vm81, %v3923, 0.0
  %v4127 = vadd.f32 %v4125, %v4126
  %v4128 = vsel %vm81, %v3928, 0.0
  %v4129 = vadd.f32 %v4127, %v4128
  %v4130 = vsel %vm81, %v3933, 0.0
  %v4131 = vadd.f32 %v4129, %v4130
  %v4132 = vsel %vm81, %v3938, 0.0
  %v4133 = vadd.f32 %v4131, %v4132
  %v4134 = vsel %vm81, %v3943, 0.0
  %v4135 = vadd.f32 %v4133, %v4134
  %v4136 = vsel %vm81, %v3948, 0.0
  %v4137 = vadd.f32 %v4135, %v4136
  %v4138 = vsel %vm81, %v3953, 0.0
  %v4139 = vadd.f32 %v4137, %v4138
  %v4140 = vsel %vm81, %v3958, 0.0
  %v4141 = vadd.f32 %v4139, %v4140
  %v4142 = vsel %vm81, %v3963, 0.0
  %v4143 = vadd.f32 %v4141, %v4142
  %v4144 = vsel %vm81, %v3968, 0.0
  %v4145 = vadd.f32 %v4143, %v4144
  %v4146 = vsel %vm81, %v3973, 0.0
  %v4147 = vadd.f32 %v4145, %v4146
  %v4148 = vsel %vm81, %v3978, 0.0
  %v4149 = vadd.f32 %v4147, %v4148
  %v4150 = vsel %vm81, %v3983, 0.0
  %v4151 = vadd.f32 %v4149, %v4150
  %v4152 = vsel %vm81, %v3988, 0.0
  %v4153 = vadd.f32 %v4151, %v4152
  %v4154 = vsel %vm81, %v3993, 0.0
  %v4155 = vadd.f32 %v4153, %v4154
  %v4156 = vsel %vm81, %v3998, 0.0
  %v4157 = vadd.f32 %v4155, %v4156
  %v4158 = vsel %vm81, %v4003, 0.0
  %v4159 = vadd.f32 %v4157, %v4158
  %v4160 = vsel %vm81, %v4008, 0.0
  %v4161 = vadd.f32 %v4159, %v4160
  %v4162 = vsel %vm81, %v4013, 0.0
  %v4163 = vadd.f32 %v4161, %v4162
  %v4164 = vsel %vm81, %v4018, 0.0
  %v4165 = vadd.f32 %v4163, %v4164
  %v4166 = vsel %vm81, %v4023, 0.0
  %v4167 = vadd.f32 %v4165, %v4166
  %v4168 = vsel %vm81, %v4028, 0.0
  %v4169 = vadd.f32 %v4167, %v4168
  %v4170 = vsel %vm81, %v4033, 0.0
  %v4171 = vadd.f32 %v4169, %v4170
  %v4172 = vsel %vm81, %v4038, 0.0
  %v4173 = vadd.f32 %v4171, %v4172
  %v4174 = vsel %vm81, %v4043, 0.0
  %v4175 = vadd.f32 %v4173, %v4174
  %v4176 = vsel %vm81, %v4048, 0.0
  %v4177 = vadd.f32 %v4175, %v4176
  %v4178 = vrot.slane %v4177, 4
  %v4179 = vadd.f32 %v4177, %v4178
  %v4180 = vrot.slane %v4179, 2
  %v4181 = vadd.f32 %v4179, %v4180
  %v4182 = vrot.slane %v4181, 1
  %v4183 = vadd.f32 %v4181, %v4182
  %v4184 = vrcp.pop 512.0
  %v4185 = vmul.f32 %v4183, %v4184
  %v4186 = vsub.f32 %v3733, %v4185
  %v4187 = vsub.f32 %v3738, %v4185
  %v4188 = vsub.f32 %v3743, %v4185
  %v4189 = vsub.f32 %v3748, %v4185
  %v4190 = vsub.f32 %v3753, %v4185
  %v4191 = vsub.f32 %v3758, %v4185
  %v4192 = vsub.f32 %v3763, %v4185
  %v4193 = vsub.f32 %v3768, %v4185
  %v4194 = vsub.f32 %v3773, %v4185
  %v4195 = vsub.f32 %v3778, %v4185
  %v4196 = vsub.f32 %v3783, %v4185
  %v4197 = vsub.f32 %v3788, %v4185
  %v4198 = vsub.f32 %v3793, %v4185
  %v4199 = vsub.f32 %v3798, %v4185
  %v4200 = vsub.f32 %v3803, %v4185
  %v4201 = vsub.f32 %v3808, %v4185
  %v4202 = vsub.f32 %v3813, %v4185
  %v4203 = vsub.f32 %v3818, %v4185
  %v4204 = vsub.f32 %v3823, %v4185
  %v4205 = vsub.f32 %v3828, %v4185
  %v4206 = vsub.f32 %v3833, %v4185
  %v4207 = vsub.f32 %v3838, %v4185
  %v4208 = vsub.f32 %v3843, %v4185
  %v4209 = vsub.f32 %v3848, %v4185
  %v4210 = vsub.f32 %v3853, %v4185
  %v4211 = vsub.f32 %v3858, %v4185
  %v4212 = vsub.f32 %v3863, %v4185
  %v4213 = vsub.f32 %v3868, %v4185
  %v4214 = vsub.f32 %v3873, %v4185
  %v4215 = vsub.f32 %v3878, %v4185
  %v4216 = vsub.f32 %v3883, %v4185
  %v4217 = vsub.f32 %v3888, %v4185
  %v4218 = vsub.f32 %v3893, %v4185
  %v4219 = vsub.f32 %v3898, %v4185
  %v4220 = vsub.f32 %v3903, %v4185
  %v4221 = vsub.f32 %v3908, %v4185
  %v4222 = vsub.f32 %v3913, %v4185
  %v4223 = vsub.f32 %v3918, %v4185
  %v4224 = vsub.f32 %v3923, %v4185
  %v4225 = vsub.f32 %v3928, %v4185
  %v4226 = vsub.f32 %v3933, %v4185
  %v4227 = vsub.f32 %v3938, %v4185
  %v4228 = vsub.f32 %v3943, %v4185
  %v4229 = vsub.f32 %v3948, %v4185
  %v4230 = vsub.f32 %v3953, %v4185
  %v4231 = vsub.f32 %v3958, %v4185
  %v4232 = vsub.f32 %v3963, %v4185
  %v4233 = vsub.f32 %v3968, %v4185
  %v4234 = vsub.f32 %v3973, %v4185
  %v4235 = vsub.f32 %v3978, %v4185
  %v4236 = vsub.f32 %v3983, %v4185
  %v4237 = vsub.f32 %v3988, %v4185
  %v4238 = vsub.f32 %v3993, %v4185
  %v4239 = vsub.f32 %v3998, %v4185
  %v4240 = vsub.f32 %v4003, %v4185
  %v4241 = vsub.f32 %v4008, %v4185
  %v4242 = vsub.f32 %v4013, %v4185
  %v4243 = vsub.f32 %v4018, %v4185
  %v4244 = vsub.f32 %v4023, %v4185
  %v4245 = vsub.f32 %v4028, %v4185
  %v4246 = vsub.f32 %v4033, %v4185
  %v4247 = vsub.f32 %v4038, %v4185
  %v4248 = vsub.f32 %v4043, %v4185
  %v4249 = vsub.f32 %v4048, %v4185
  %v4250 = vmul.f32 %v4186, %v4186
  %v4251 = vmul.f32 %v4187, %v4187
  %v4252 = vmul.f32 %v4188, %v4188
  %v4253 = vmul.f32 %v4189, %v4189
  %v4254 = vmul.f32 %v4190, %v4190
  %v4255 = vmul.f32 %v4191, %v4191
  %v4256 = vmul.f32 %v4192, %v4192
  %v4257 = vmul.f32 %v4193, %v4193
  %v4258 = vmul.f32 %v4194, %v4194
  %v4259 = vmul.f32 %v4195, %v4195
  %v4260 = vmul.f32 %v4196, %v4196
  %v4261 = vmul.f32 %v4197, %v4197
  %v4262 = vmul.f32 %v4198, %v4198
  %v4263 = vmul.f32 %v4199, %v4199
  %v4264 = vmul.f32 %v4200, %v4200
  %v4265 = vmul.f32 %v4201, %v4201
  %v4266 = vmul.f32 %v4202, %v4202
  %v4267 = vmul.f32 %v4203, %v4203
  %v4268 = vmul.f32 %v4204, %v4204
  %v4269 = vmul.f32 %v4205, %v4205
  %v4270 = vmul.f32 %v4206, %v4206
  %v4271 = vmul.f32 %v4207, %v4207
  %v4272 = vmul.f32 %v4208, %v4208
  %v4273 = vmul.f32 %v4209, %v4209
  %v4274 = vmul.f32 %v4210, %v4210
  %v4275 = vmul.f32 %v4211, %v4211
  %v4276 = vmul.f32 %v4212, %v4212
  %v4277 = vmul.f32 %v4213, %v4213
  %v4278 = vmul.f32 %v4214, %v4214
  %v4279 = vmul.f32 %v4215, %v4215
  %v4280 = vmul.f32 %v4216, %v4216
  %v4281 = vmul.f32 %v4217, %v4217
  %v4282 = vmul.f32 %v4218, %v4218
  %v4283 = vmul.f32 %v4219, %v4219
  %v4284 = vmul.f32 %v4220, %v4220
  %v4285 = vmul.f32 %v4221, %v4221
  %v4286 = vmul.f32 %v4222, %v4222
  %v4287 = vmul.f32 %v4223, %v4223
  %v4288 = vmul.f32 %v4224, %v4224
  %v4289 = vmul.f32 %v4225, %v4225
  %v4290 = vmul.f32 %v4226, %v4226
  %v4291 = vmul.f32 %v4227, %v4227
  %v4292 = vmul.f32 %v4228, %v4228
  %v4293 = vmul.f32 %v4229, %v4229
  %v4294 = vmul.f32 %v4230, %v4230
  %v4295 = vmul.f32 %v4231, %v4231
  %v4296 = vmul.f32 %v4232, %v4232
  %v4297 = vmul.f32 %v4233, %v4233
  %v4298 = vmul.f32 %v4234, %v4234
  %v4299 = vmul.f32 %v4235, %v4235
  %v4300 = vmul.f32 %v4236, %v4236
  %v4301 = vmul.f32 %v4237, %v4237
  %v4302 = vmul.f32 %v4238, %v4238
  %v4303 = vmul.f32 %v4239, %v4239
  %v4304 = vmul.f32 %v4240, %v4240
  %v4305 = vmul.f32 %v4241, %v4241
  %v4306 = vmul.f32 %v4242, %v4242
  %v4307 = vmul.f32 %v4243, %v4243
  %v4308 = vmul.f32 %v4244, %v4244
  %v4309 = vmul.f32 %v4245, %v4245
  %v4310 = vmul.f32 %v4246, %v4246
  %v4311 = vmul.f32 %v4247, %v4247
  %v4312 = vmul.f32 %v4248, %v4248
  %v4313 = vmul.f32 %v4249, %v4249
  %v4314 = vsel %vm81, %v4250, 0.0
  %v4315 = vsel %vm81, %v4251, 0.0
  %v4316 = vadd.f32 %v4314, %v4315
  %v4317 = vsel %vm81, %v4252, 0.0
  %v4318 = vadd.f32 %v4316, %v4317
  %v4319 = vsel %vm81, %v4253, 0.0
  %v4320 = vadd.f32 %v4318, %v4319
  %v4321 = vsel %vm81, %v4254, 0.0
  %v4322 = vadd.f32 %v4320, %v4321
  %v4323 = vsel %vm81, %v4255, 0.0
  %v4324 = vadd.f32 %v4322, %v4323
  %v4325 = vsel %vm81, %v4256, 0.0
  %v4326 = vadd.f32 %v4324, %v4325
  %v4327 = vsel %vm81, %v4257, 0.0
  %v4328 = vadd.f32 %v4326, %v4327
  %v4329 = vsel %vm81, %v4258, 0.0
  %v4330 = vadd.f32 %v4328, %v4329
  %v4331 = vsel %vm81, %v4259, 0.0
  %v4332 = vadd.f32 %v4330, %v4331
  %v4333 = vsel %vm81, %v4260, 0.0
  %v4334 = vadd.f32 %v4332, %v4333
  %v4335 = vsel %vm81, %v4261, 0.0
  %v4336 = vadd.f32 %v4334, %v4335
  %v4337 = vsel %vm81, %v4262, 0.0
  %v4338 = vadd.f32 %v4336, %v4337
  %v4339 = vsel %vm81, %v4263, 0.0
  %v4340 = vadd.f32 %v4338, %v4339
  %v4341 = vsel %vm81, %v4264, 0.0
  %v4342 = vadd.f32 %v4340, %v4341
  %v4343 = vsel %vm81, %v4265, 0.0
  %v4344 = vadd.f32 %v4342, %v4343
  %v4345 = vsel %vm81, %v4266, 0.0
  %v4346 = vadd.f32 %v4344, %v4345
  %v4347 = vsel %vm81, %v4267, 0.0
  %v4348 = vadd.f32 %v4346, %v4347
  %v4349 = vsel %vm81, %v4268, 0.0
  %v4350 = vadd.f32 %v4348, %v4349
  %v4351 = vsel %vm81, %v4269, 0.0
  %v4352 = vadd.f32 %v4350, %v4351
  %v4353 = vsel %vm81, %v4270, 0.0
  %v4354 = vadd.f32 %v4352, %v4353
  %v4355 = vsel %vm81, %v4271, 0.0
  %v4356 = vadd.f32 %v4354, %v4355
  %v4357 = vsel %vm81, %v4272, 0.0
  %v4358 = vadd.f32 %v4356, %v4357
  %v4359 = vsel %vm81, %v4273, 0.0
  %v4360 = vadd.f32 %v4358, %v4359
  %v4361 = vsel %vm81, %v4274, 0.0
  %v4362 = vadd.f32 %v4360, %v4361
  %v4363 = vsel %vm81, %v4275, 0.0
  %v4364 = vadd.f32 %v4362, %v4363
  %v4365 = vsel %vm81, %v4276, 0.0
  %v4366 = vadd.f32 %v4364, %v4365
  %v4367 = vsel %vm81, %v4277, 0.0
  %v4368 = vadd.f32 %v4366, %v4367
  %v4369 = vsel %vm81, %v4278, 0.0
  %v4370 = vadd.f32 %v4368, %v4369
  %v4371 = vsel %vm81, %v4279, 0.0
  %v4372 = vadd.f32 %v4370, %v4371
  %v4373 = vsel %vm81, %v4280, 0.0
  %v4374 = vadd.f32 %v4372, %v4373
  %v4375 = vsel %vm81, %v4281, 0.0
  %v4376 = vadd.f32 %v4374, %v4375
  %v4377 = vsel %vm81, %v4282, 0.0
  %v4378 = vadd.f32 %v4376, %v4377
  %v4379 = vsel %vm81, %v4283, 0.0
  %v4380 = vadd.f32 %v4378, %v4379
  %v4381 = vsel %vm81, %v4284, 0.0
  %v4382 = vadd.f32 %v4380, %v4381
  %v4383 = vsel %vm81, %v4285, 0.0
  %v4384 = vadd.f32 %v4382, %v4383
  %v4385 = vsel %vm81, %v4286, 0.0
  %v4386 = vadd.f32 %v4384, %v4385
  %v4387 = vsel %vm81, %v4287, 0.0
  %v4388 = vadd.f32 %v4386, %v4387
  %v4389 = vsel %vm81, %v4288, 0.0
  %v4390 = vadd.f32 %v4388, %v4389
  %v4391 = vsel %vm81, %v4289, 0.0
  %v4392 = vadd.f32 %v4390, %v4391
  %v4393 = vsel %vm81, %v4290, 0.0
  %v4394 = vadd.f32 %v4392, %v4393
  %v4395 = vsel %vm81, %v4291, 0.0
  %v4396 = vadd.f32 %v4394, %v4395
  %v4397 = vsel %vm81, %v4292, 0.0
  %v4398 = vadd.f32 %v4396, %v4397
  %v4399 = vsel %vm81, %v4293, 0.0
  %v4400 = vadd.f32 %v4398, %v4399
  %v4401 = vsel %vm81, %v4294, 0.0
  %v4402 = vadd.f32 %v4400, %v4401
  %v4403 = vsel %vm81, %v4295, 0.0
  %v4404 = vadd.f32 %v4402, %v4403
  %v4405 = vsel %vm81, %v4296, 0.0
  %v4406 = vadd.f32 %v4404, %v4405
  %v4407 = vsel %vm81, %v4297, 0.0
  %v4408 = vadd.f32 %v4406, %v4407
  %v4409 = vsel %vm81, %v4298, 0.0
  %v4410 = vadd.f32 %v4408, %v4409
  %v4411 = vsel %vm81, %v4299, 0.0
  %v4412 = vadd.f32 %v4410, %v4411
  %v4413 = vsel %vm81, %v4300, 0.0
  %v4414 = vadd.f32 %v4412, %v4413
  %v4415 = vsel %vm81, %v4301, 0.0
  %v4416 = vadd.f32 %v4414, %v4415
  %v4417 = vsel %vm81, %v4302, 0.0
  %v4418 = vadd.f32 %v4416, %v4417
  %v4419 = vsel %vm81, %v4303, 0.0
  %v4420 = vadd.f32 %v4418, %v4419
  %v4421 = vsel %vm81, %v4304, 0.0
  %v4422 = vadd.f32 %v4420, %v4421
  %v4423 = vsel %vm81, %v4305, 0.0
  %v4424 = vadd.f32 %v4422, %v4423
  %v4425 = vsel %vm81, %v4306, 0.0
  %v4426 = vadd.f32 %v4424, %v4425
  %v4427 = vsel %vm81, %v4307, 0.0
  %v4428 = vadd.f32 %v4426, %v4427
  %v4429 = vsel %vm81, %v4308, 0.0
  %v4430 = vadd.f32 %v4428, %v4429
  %v4431 = vsel %vm81, %v4309, 0.0
  %v4432 = vadd.f32 %v4430, %v4431
  %v4433 = vsel %vm81, %v4310, 0.0
  %v4434 = vadd.f32 %v4432, %v4433
  %v4435 = vsel %vm81, %v4311, 0.0
  %v4436 = vadd.f32 %v4434, %v4435
  %v4437 = vsel %vm81, %v4312, 0.0
  %v4438 = vadd.f32 %v4436, %v4437
  %v4439 = vsel %vm81, %v4313, 0.0
  %v4440 = vadd.f32 %v4438, %v4439
  %v4441 = vrot.slane %v4440, 4
  %v4442 = vadd.f32 %v4440, %v4441
  %v4443 = vrot.slane %v4442, 2
  %v4444 = vadd.f32 %v4442, %v4443
  %v4445 = vrot.slane %v4444, 1
  %v4446 = vadd.f32 %v4444, %v4445
  %v4447 = vmul.f32 %v4446, %v4184
  %v4448 = vadd.f32 %v4447, 1e-05
  %v4449 = vrsqrt.pop %v4448
  %v4450 = vmul.f32 %v4186, %v4449
  %v4451 = vmul.f32 %v4187, %v4449
  %v4452 = vmul.f32 %v4188, %v4449
  %v4453 = vmul.f32 %v4189, %v4449
  %v4454 = vmul.f32 %v4190, %v4449
  %v4455 = vmul.f32 %v4191, %v4449
  %v4456 = vmul.f32 %v4192, %v4449
  %v4457 = vmul.f32 %v4193, %v4449
  %v4458 = vmul.f32 %v4194, %v4449
  %v4459 = vmul.f32 %v4195, %v4449
  %v4460 = vmul.f32 %v4196, %v4449
  %v4461 = vmul.f32 %v4197, %v4449
  %v4462 = vmul.f32 %v4198, %v4449
  %v4463 = vmul.f32 %v4199, %v4449
  %v4464 = vmul.f32 %v4200, %v4449
  %v4465 = vmul.f32 %v4201, %v4449
  %v4466 = vmul.f32 %v4202, %v4449
  %v4467 = vmul.f32 %v4203, %v4449
  %v4468 = vmul.f32 %v4204, %v4449
  %v4469 = vmul.f32 %v4205, %v4449
  %v4470 = vmul.f32 %v4206, %v4449
  %v4471 = vmul.f32 %v4207, %v4449
  %v4472 = vmul.f32 %v4208, %v4449
  %v4473 = vmul.f32 %v4209, %v4449
  %v4474 = vmul.f32 %v4210, %v4449
  %v4475 = vmul.f32 %v4211, %v4449
  %v4476 = vmul.f32 %v4212, %v4449
  %v4477 = vmul.f32 %v4213, %v4449
  %v4478 = vmul.f32 %v4214, %v4449
  %v4479 = vmul.f32 %v4215, %v4449
  %v4480 = vmul.f32 %v4216, %v4449
  %v4481 = vmul.f32 %v4217, %v4449
  %v4482 = vmul.f32 %v4218, %v4449
  %v4483 = vmul.f32 %v4219, %v4449
  %v4484 = vmul.f32 %v4220, %v4449
  %v4485 = vmul.f32 %v4221, %v4449
  %v4486 = vmul.f32 %v4222, %v4449
  %v4487 = vmul.f32 %v4223, %v4449
  %v4488 = vmul.f32 %v4224, %v4449
  %v4489 = vmul.f32 %v4225, %v4449
  %v4490 = vmul.f32 %v4226, %v4449
  %v4491 = vmul.f32 %v4227, %v4449
  %v4492 = vmul.f32 %v4228, %v4449
  %v4493 = vmul.f32 %v4229, %v4449
  %v4494 = vmul.f32 %v4230, %v4449
  %v4495 = vmul.f32 %v4231, %v4449
  %v4496 = vmul.f32 %v4232, %v4449
  %v4497 = vmul.f32 %v4233, %v4449
  %v4498 = vmul.f32 %v4234, %v4449
  %v4499 = vmul.f32 %v4235, %v4449
  %v4500 = vmul.f32 %v4236, %v4449
  %v4501 = vmul.f32 %v4237, %v4449
  %v4502 = vmul.f32 %v4238, %v4449
  %v4503 = vmul.f32 %v4239, %v4449
  %v4504 = vmul.f32 %v4240, %v4449
  %v4505 = vmul.f32 %v4241, %v4449
  %v4506 = vmul.f32 %v4242, %v4449
  %v4507 = vmul.f32 %v4243, %v4449
  %v4508 = vmul.f32 %v4244, %v4449
  %v4509 = vmul.f32 %v4245, %v4449
  %v4510 = vmul.f32 %v4246, %v4449
  %v4511 = vmul.f32 %v4247, %v4449
  %v4512 = vmul.f32 %v4248, %v4449
  %v4513 = vmul.f32 %v4249, %v4449
  %v4514 = vmax.f32 %v4450, 0.0
  %v4515 = vmax.f32 %v4451, 0.0
  %v4516 = vmax.f32 %v4452, 0.0
  %v4517 = vmax.f32 %v4453, 0.0
  %v4518 = vmax.f32 %v4454, 0.0
  %v4519 = vmax.f32 %v4455, 0.0
  %v4520 = vmax.f32 %v4456, 0.0
  %v4521 = vmax.f32 %v4457, 0.0
  %v4522 = vmax.f32 %v4458, 0.0
  %v4523 = vmax.f32 %v4459, 0.0
  %v4524 = vmax.f32 %v4460, 0.0
  %v4525 = vmax.f32 %v4461, 0.0
  %v4526 = vmax.f32 %v4462, 0.0
  %v4527 = vmax.f32 %v4463, 0.0
  %v4528 = vmax.f32 %v4464, 0.0
  %v4529 = vmax.f32 %v4465, 0.0
  %v4530 = vmax.f32 %v4466, 0.0
  %v4531 = vmax.f32 %v4467, 0.0
  %v4532 = vmax.f32 %v4468, 0.0
  %v4533 = vmax.f32 %v4469, 0.0
  %v4534 = vmax.f32 %v4470, 0.0
  %v4535 = vmax.f32 %v4471, 0.0
  %v4536 = vmax.f32 %v4472, 0.0
  %v4537 = vmax.f32 %v4473, 0.0
  %v4538 = vmax.f32 %v4474, 0.0
  %v4539 = vmax.f32 %v4475, 0.0
  %v4540 = vmax.f32 %v4476, 0.0
  %v4541 = vmax.f32 %v4477, 0.0
  %v4542 = vmax.f32 %v4478, 0.0
  %v4543 = vmax.f32 %v4479, 0.0
  %v4544 = vmax.f32 %v4480, 0.0
  %v4545 = vmax.f32 %v4481, 0.0
  %v4546 = vmax.f32 %v4482, 0.0
  %v4547 = vmax.f32 %v4483, 0.0
  %v4548 = vmax.f32 %v4484, 0.0
  %v4549 = vmax.f32 %v4485, 0.0
  %v4550 = vmax.f32 %v4486, 0.0
  %v4551 = vmax.f32 %v4487, 0.0
  %v4552 = vmax.f32 %v4488, 0.0
  %v4553 = vmax.f32 %v4489, 0.0
  %v4554 = vmax.f32 %v4490, 0.0
  %v4555 = vmax.f32 %v4491, 0.0
  %v4556 = vmax.f32 %v4492, 0.0
  %v4557 = vmax.f32 %v4493, 0.0
  %v4558 = vmax.f32 %v4494, 0.0
  %v4559 = vmax.f32 %v4495, 0.0
  %v4560 = vmax.f32 %v4496, 0.0
  %v4561 = vmax.f32 %v4497, 0.0
  %v4562 = vmax.f32 %v4498, 0.0
  %v4563 = vmax.f32 %v4499, 0.0
  %v4564 = vmax.f32 %v4500, 0.0
  %v4565 = vmax.f32 %v4501, 0.0
  %v4566 = vmax.f32 %v4502, 0.0
  %v4567 = vmax.f32 %v4503, 0.0
  %v4568 = vmax.f32 %v4504, 0.0
  %v4569 = vmax.f32 %v4505, 0.0
  %v4570 = vmax.f32 %v4506, 0.0
  %v4571 = vmax.f32 %v4507, 0.0
  %v4572 = vmax.f32 %v4508, 0.0
  %v4573 = vmax.f32 %v4509, 0.0
  %v4574 = vmax.f32 %v4510, 0.0
  %v4575 = vmax.f32 %v4511, 0.0
  %v4576 = vmax.f32 %v4512, 0.0
  %v4577 = vmax.f32 %v4513, 0.0
  %v4578 = vld [vmem:[%s2] sm:$0xf]
  %v4580 = vsel %vm81, %v4514, 0
  %v4583 = vsel %vm81, %v4515, 0
  %v4586 = vsel %vm81, %v4516, 0
  %v4589 = vsel %vm81, %v4517, 0
  %v4592 = vsel %vm81, %v4518, 0
  %v4595 = vsel %vm81, %v4519, 0
  %v4598 = vsel %vm81, %v4520, 0
  %v4601 = vsel %vm81, %v4521, 0
  %v4604 = vsel %vm81, %v4522, 0
  %v4607 = vsel %vm81, %v4523, 0
  %v4610 = vsel %vm81, %v4524, 0
  %v4613 = vsel %vm81, %v4525, 0
  %v4616 = vsel %vm81, %v4526, 0
  %v4619 = vsel %vm81, %v4527, 0
  %v4622 = vsel %vm81, %v4528, 0
  %v4625 = vsel %vm81, %v4529, 0
  %v4628 = vsel %vm81, %v4530, 0
  %v4631 = vsel %vm81, %v4531, 0
  %v4634 = vsel %vm81, %v4532, 0
  %v4637 = vsel %vm81, %v4533, 0
  %v4640 = vsel %vm81, %v4534, 0
  %v4643 = vsel %vm81, %v4535, 0
  %v4646 = vsel %vm81, %v4536, 0
  %v4649 = vsel %vm81, %v4537, 0
  %v4652 = vsel %vm81, %v4538, 0
  %v4655 = vsel %vm81, %v4539, 0
  %v4658 = vsel %vm81, %v4540, 0
  %v4661 = vsel %vm81, %v4541, 0
  %v4664 = vsel %vm81, %v4542, 0
  %v4667 = vsel %vm81, %v4543, 0
  %v4670 = vsel %vm81, %v4544, 0
  %v4673 = vsel %vm81, %v4545, 0
  %v4676 = vsel %vm81, %v4546, 0
  %v4679 = vsel %vm81, %v4547, 0
  %v4682 = vsel %vm81, %v4548, 0
  %v4685 = vsel %vm81, %v4549, 0
  %v4688 = vsel %vm81, %v4550, 0
  %v4691 = vsel %vm81, %v4551, 0
  %v4694 = vsel %vm81, %v4552, 0
  %v4697 = vsel %vm81, %v4553, 0
  %v4700 = vsel %vm81, %v4554, 0
  %v4703 = vsel %vm81, %v4555, 0
  %v4706 = vsel %vm81, %v4556, 0
  %v4709 = vsel %vm81, %v4557, 0
  %v4712 = vsel %vm81, %v4558, 0
  %v4715 = vsel %vm81, %v4559, 0
  %v4718 = vsel %vm81, %v4560, 0
  %v4721 = vsel %vm81, %v4561, 0
  %v4724 = vsel %vm81, %v4562, 0
  %v4727 = vsel %vm81, %v4563, 0
  %v4730 = vsel %vm81, %v4564, 0
  %v4733 = vsel %vm81, %v4565, 0
  %v4736 = vsel %vm81, %v4566, 0
  %v4739 = vsel %vm81, %v4567, 0
  %v4742 = vsel %vm81, %v4568, 0
  %v4745 = vsel %vm81, %v4569, 0
  %v4748 = vsel %vm81, %v4570, 0
  %v4751 = vsel %vm81, %v4571, 0
  %v4754 = vsel %vm81, %v4572, 0
  %v4757 = vsel %vm81, %v4573, 0
  %v4760 = vsel %vm81, %v4574, 0
  %v4763 = vsel %vm81, %v4575, 0
  %v4766 = vsel %vm81, %v4576, 0
  %v4769 = vsel %vm81, %v4577, 0
  %v4772 = vsel %vm3662, %v4578, 0
  %4774 = vmatprep.subr.mxu0 0.0
  %4775 = vmatpush1.msra.mxu0 %v4772
  %4776 = vmatprep.subr.mxu0 0.0
  %4777 = vmatpush1.msra.mxu0 0.0
  %4778 = vmatprep.subr.mxu0 0.0
  %4779 = vmatpush1.msra.mxu0 0.0
  %4780 = vmatprep.subr.mxu0 0.0
  %4781 = vmatpush1.msra.mxu0 0.0
  %4782 = vmatprep.subr.mxu0 0.0
  %4783 = vmatpush1.msra.mxu0 0.0
  %4784 = vmatprep.subr.mxu0 0.0
  %4785 = vmatpush1.msra.mxu0 0.0
  %4786 = vmatprep.subr.mxu0 0.0
  %4787 = vmatpush1.msra.mxu0 0.0
  %4788 = vmatprep.subr.mxu0 0.0
  %4789 = vmatpush1.msra.mxu0 0.0
  %4790 = vmatprep.subr.mxu0 0.0
  %4791 = vmatpush1.msra.mxu0 0.0
  %4792 = vmatprep.subr.mxu0 0.0
  %4793 = vmatpush1.msra.mxu0 0.0
  %4794 = vmatprep.subr.mxu0 0.0
  %4795 = vmatpush1.msra.mxu0 0.0
  %4796 = vmatprep.subr.mxu0 0.0
  %4797 = vmatpush1.msra.mxu0 0.0
  %4798 = vmatprep.subr.mxu0 0.0
  %4799 = vmatpush1.msra.mxu0 0.0
  %4800 = vmatprep.subr.mxu0 0.0
  %4801 = vmatpush1.msra.mxu0 0.0
  %4802 = vmatprep.subr.mxu0 0.0
  %4803 = vmatpush1.msra.mxu0 0.0
  %4804 = vmatprep.subr.mxu0 0.0
  %4805 = vmatpush1.msra.mxu0 0.0
  %4806 = vmatprep.subr.mxu0 0.0
  %4807 = vmatpush1.msra.mxu0 0.0
  %4808 = vmatprep.subr.mxu0 0.0
  %4809 = vmatpush1.msra.mxu0 0.0
  %4810 = vmatprep.subr.mxu0 0.0
  %4811 = vmatpush1.msra.mxu0 0.0
  %4812 = vmatprep.subr.mxu0 0.0
  %4813 = vmatpush1.msra.mxu0 0.0
  %4814 = vmatprep.subr.mxu0 0.0
  %4815 = vmatpush1.msra.mxu0 0.0
  %4816 = vmatprep.subr.mxu0 0.0
  %4817 = vmatpush1.msra.mxu0 0.0
  %4818 = vmatprep.subr.mxu0 0.0
  %4819 = vmatpush1.msra.mxu0 0.0
  %4820 = vmatprep.subr.mxu0 0.0
  %4821 = vmatpush1.msra.mxu0 0.0
  %4822 = vmatprep.subr.mxu0 0.0
  %4823 = vmatpush1.msra.mxu0 0.0
  %4824 = vmatprep.subr.mxu0 0.0
  %4825 = vmatpush1.msra.mxu0 0.0
  %4826 = vmatprep.subr.mxu0 0.0
  %4827 = vmatpush1.msra.mxu0 0.0
  %4828 = vmatprep.subr.mxu0 0.0
  %4829 = vmatpush1.msra.mxu0 0.0
  %4830 = vmatprep.subr.mxu0 0.0
  %4831 = vmatpush1.msra.mxu0 0.0
  %4832 = vmatprep.subr.mxu0 0.0
  %4833 = vmatpush1.msra.mxu0 0.0
  %4834 = vmatprep.subr.mxu0 0.0
  %4835 = vmatpush1.msra.mxu0 0.0
  %4836 = vmatprep.subr.mxu0 0.0
  %4837 = vmatpush1.msra.mxu0 0.0
  %4838 = vmatprep.mubr.f32.mxu0 0.0
  %4839 = vmatmul.mubr.f32.gmra.mrb[0].mxu0 %v4580
  %v4840 = vpop.f32.mrb[0].mxu0
  %v4841 = vadd.f32 0.0, %v4840
  %v4842 = vpop.f32.mrb[0].mxu0
  %4843 = vmatprep.mubr.f32.mxu0 0.0
  %4844 = vmatmul.mubr.f32.gmra.mrb[0].mxu0 %v4583
  %v4845 = vpop.f32.mrb[0].mxu0
  %v4846 = vadd.f32 0.0, %v4845
  %v4847 = vpop.f32.mrb[0].mxu0
  %4848 = vmatprep.mubr.f32.mxu0 0.0
  %4849 = vmatmul.mubr.f32.gmra.mrb[0].mxu0 %v4586
  %v4850 = vpop.f32.mrb[0].mxu0
  %v4851 = vadd.f32 0.0, %v4850
  %v4852 = vpop.f32.mrb[0].mxu0
  %4853 = vmatprep.mubr.f32.mxu0 0.0
  %4854 = vmatmul.mubr.f32.gmra.mrb[0].mxu0 %v4589
  %v4855 = vpop.f32.mrb[0].mxu0
  %v4856 = vadd.f32 0.0, %v4855
  %v4857 = vpop.f32.mrb[0].mxu0
  %4858 = vmatprep.mubr.f32.mxu0 0.0
  %4859 = vmatmul.mubr.f32.gmra.mrb[0].mxu0 %v4592
  %v4860 = vpop.f32.mrb[0].mxu0
  %v4861 = vadd.f32 0.0, %v4860
  %v4862 = vpop.f32.mrb[0].mxu0
  %4863 = vmatprep.mubr.f32.mxu0 0.0
  %4864 = vmatmul.mubr.f32.gmra.mrb[0].mxu0 %v4595
  %v4865 = vpop.f32.mrb[0].mxu0
  %v4866 = vadd.f32 0.0, %v4865
  %v4867 = vpop.f32.mrb[0].mxu0
  %4868 = vmatprep.mubr.f32.mxu0 0.0
  %4869 = vmatmul.mubr.f32.gmra.mrb[0].mxu0 %v4598
  %v4870 = vpop.f32.mrb[0].mxu0
  %v4871 = vadd.f32 0.0, %v4870
  %v4872 = vpop.f32.mrb[0].mxu0
  %4873 = vmatprep.mubr.f32.mxu0 0.0
  %4874 = vmatmul.mubr.f32.gmra.mrb[0].mxu0 %v4601
  %v4875 = vpop.f32.mrb[0].mxu0
  %v4876 = vadd.f32 0.0, %v4875
  %v4877 = vpop.f32.mrb[0].mxu0
  %4878 = vmatprep.mubr.f32.mxu0 0.0
  %4879 = vmatmul.mubr.f32.gmra.mrb[0].mxu0 %v4604
  %v4880 = vpop.f32.mrb[0].mxu0
  %v4881 = vadd.f32 0.0, %v4880
  %v4882 = vpop.f32.mrb[0].mxu0
  %4883 = vmatprep.mubr.f32.mxu0 0.0
  %4884 = vmatmul.mubr.f32.gmra.mrb[0].mxu0 %v4607
  %v4885 = vpop.f32.mrb[0].mxu0
  %v4886 = vadd.f32 0.0, %v4885
  %v4887 = vpop.f32.mrb[0].mxu0
  %4888 = vmatprep.mubr.f32.mxu0 0.0
  %4889 = vmatmul.mubr.f32.gmra.mrb[0].mxu0 %v4610
  %v4890 = vpop.f32.mrb[0].mxu0
  %v4891 = vadd.f32 0.0, %v4890
  %v4892 = vpop.f32.mrb[0].mxu0
  %4893 = vmatprep.mubr.f32.mxu0 0.0
  %4894 = vmatmul.mubr.f32.gmra.mrb[0].mxu0 %v4613
  %v4895 = vpop.f32.mrb[0].mxu0
  %v4896 = vadd.f32 0.0, %v4895
  %v4897 = vpop.f32.mrb[0].mxu0
  %4898 = vmatprep.mubr.f32.mxu0 0.0
  %4899 = vmatmul.mubr.f32.gmra.mrb[0].mxu0 %v4616
  %v4900 = vpop.f32.mrb[0].mxu0
  %v4901 = vadd.f32 0.0, %v4900
  %v4902 = vpop.f32.mrb[0].mxu0
  %4903 = vmatprep.mubr.f32.mxu0 0.0
  %4904 = vmatmul.mubr.f32.gmra.mrb[0].mxu0 %v4619
  %v4905 = vpop.f32.mrb[0].mxu0
  %v4906 = vadd.f32 0.0, %v4905
  %v4907 = vpop.f32.mrb[0].mxu0
  %4908 = vmatprep.mubr.f32.mxu0 0.0
  %4909 = vmatmul.mubr.f32.gmra.mrb[0].mxu0 %v4622
  %v4910 = vpop.f32.mrb[0].mxu0
  %v4911 = vadd.f32 0.0, %v4910
  %v4912 = vpop.f32.mrb[0].mxu0
  %4913 = vmatprep.mubr.f32.mxu0 0.0
  %4914 = vmatmul.mubr.f32.gmra.mrb[0].mxu0 %v4625
  %v4915 = vpop.f32.mrb[0].mxu0
  %v4916 = vadd.f32 0.0, %v4915
  %v4917 = vpop.f32.mrb[0].mxu0
  %4918 = vmatprep.mubr.f32.mxu0 0.0
  %4919 = vmatmul.mubr.f32.gmra.mrb[0].mxu0 %v4628
  %v4920 = vpop.f32.mrb[0].mxu0
  %v4921 = vadd.f32 0.0, %v4920
  %v4922 = vpop.f32.mrb[0].mxu0
  %4923 = vmatprep.mubr.f32.mxu0 0.0
  %4924 = vmatmul.mubr.f32.gmra.mrb[0].mxu0 %v4631
  %v4925 = vpop.f32.mrb[0].mxu0
  %v4926 = vadd.f32 0.0, %v4925
  %v4927 = vpop.f32.mrb[0].mxu0
  %4928 = vmatprep.mubr.f32.mxu0 0.0
  %4929 = vmatmul.mubr.f32.gmra.mrb[0].mxu0 %v4634
  %v4930 = vpop.f32.mrb[0].mxu0
  %v4931 = vadd.f32 0.0, %v4930
  %v4932 = vpop.f32.mrb[0].mxu0
  %4933 = vmatprep.mubr.f32.mxu0 0.0
  %4934 = vmatmul.mubr.f32.gmra.mrb[0].mxu0 %v4637
  %v4935 = vpop.f32.mrb[0].mxu0
  %v4936 = vadd.f32 0.0, %v4935
  %v4937 = vpop.f32.mrb[0].mxu0
  %4938 = vmatprep.mubr.f32.mxu0 0.0
  %4939 = vmatmul.mubr.f32.gmra.mrb[0].mxu0 %v4640
  %v4940 = vpop.f32.mrb[0].mxu0
  %v4941 = vadd.f32 0.0, %v4940
  %v4942 = vpop.f32.mrb[0].mxu0
  %4943 = vmatprep.mubr.f32.mxu0 0.0
  %4944 = vmatmul.mubr.f32.gmra.mrb[0].mxu0 %v4643
  %v4945 = vpop.f32.mrb[0].mxu0
  %v4946 = vadd.f32 0.0, %v4945
  %v4947 = vpop.f32.mrb[0].mxu0
  %4948 = vmatprep.mubr.f32.mxu0 0.0
  %4949 = vmatmul.mubr.f32.gmra.mrb[0].mxu0 %v4646
  %v4950 = vpop.f32.mrb[0].mxu0
  %v4951 = vadd.f32 0.0, %v4950
  %v4952 = vpop.f32.mrb[0].mxu0
  %4953 = vmatprep.mubr.f32.mxu0 0.0
  %4954 = vmatmul.mubr.f32.gmra.mrb[0].mxu0 %v4649
  %v4955 = vpop.f32.mrb[0].mxu0
  %v4956 = vadd.f32 0.0, %v4955
  %v4957 = vpop.f32.mrb[0].mxu0
  %4958 = vmatprep.mubr.f32.mxu0 0.0
  %4959 = vmatmul.mubr.f32.gmra.mrb[0].mxu0 %v4652
  %v4960 = vpop.f32.mrb[0].mxu0
  %v4961 = vadd.f32 0.0, %v4960
  %v4962 = vpop.f32.mrb[0].mxu0
  %4963 = vmatprep.mubr.f32.mxu0 0.0
  %4964 = vmatmul.mubr.f32.gmra.mrb[0].mxu0 %v4655
  %v4965 = vpop.f32.mrb[0].mxu0
  %v4966 = vadd.f32 0.0, %v4965
  %v4967 = vpop.f32.mrb[0].mxu0
  %4968 = vmatprep.mubr.f32.mxu0 0.0
  %4969 = vmatmul.mubr.f32.gmra.mrb[0].mxu0 %v4658
  %v4970 = vpop.f32.mrb[0].mxu0
  %v4971 = vadd.f32 0.0, %v4970
  %v4972 = vpop.f32.mrb[0].mxu0
  %4973 = vmatprep.mubr.f32.mxu0 0.0
  %4974 = vmatmul.mubr.f32.gmra.mrb[0].mxu0 %v4661
  %v4975 = vpop.f32.mrb[0].mxu0
  %v4976 = vadd.f32 0.0, %v4975
  %v4977 = vpop.f32.mrb[0].mxu0
  %4978 = vmatprep.mubr.f32.mxu0 0.0
  %4979 = vmatmul.mubr.f32.gmra.mrb[0].mxu0 %v4664
  %v4980 = vpop.f32.mrb[0].mxu0
  %v4981 = vadd.f32 0.0, %v4980
  %v4982 = vpop.f32.mrb[0].mxu0
  %4983 = vmatprep.mubr.f32.mxu0 0.0
  %4984 = vmatmul.mubr.f32.gmra.mrb[0].mxu0 %v4667
  %v4985 = vpop.f32.mrb[0].mxu0
  %v4986 = vadd.f32 0.0, %v4985
  %v4987 = vpop.f32.mrb[0].mxu0
  %4988 = vmatprep.mubr.f32.mxu0 0.0
  %4989 = vmatmul.mubr.f32.gmra.mrb[0].mxu0 %v4670
  %v4990 = vpop.f32.mrb[0].mxu0
  %v4991 = vadd.f32 0.0, %v4990
  %v4992 = vpop.f32.mrb[0].mxu0
  %4993 = vmatprep.mubr.f32.mxu0 0.0
  %4994 = vmatmul.mubr.f32.gmra.mrb[0].mxu0 %v4673
  %v4995 = vpop.f32.mrb[0].mxu0
  %v4996 = vadd.f32 0.0, %v4995
  %v4997 = vpop.f32.mrb[0].mxu0
  %4998 = vmatprep.mubr.f32.mxu0 0.0
  %4999 = vmatmul.mubr.f32.gmra.mrb[0].mxu0 %v4676
  %v5000 = vpop.f32.mrb[0].mxu0
  %v5001 = vadd.f32 0.0, %v5000
  %v5002 = vpop.f32.mrb[0].mxu0
  %5003 = vmatprep.mubr.f32.mxu0 0.0
  %5004 = vmatmul.mubr.f32.gmra.mrb[0].mxu0 %v4679
  %v5005 = vpop.f32.mrb[0].mxu0
  %v5006 = vadd.f32 0.0, %v5005
  %v5007 = vpop.f32.mrb[0].mxu0
  %5008 = vmatprep.mubr.f32.mxu0 0.0
  %5009 = vmatmul.mubr.f32.gmra.mrb[0].mxu0 %v4682
  %v5010 = vpop.f32.mrb[0].mxu0
  %v5011 = vadd.f32 0.0, %v5010
  %v5012 = vpop.f32.mrb[0].mxu0
  %5013 = vmatprep.mubr.f32.mxu0 0.0
  %5014 = vmatmul.mubr.f32.gmra.mrb[0].mxu0 %v4685
  %v5015 = vpop.f32.mrb[0].mxu0
  %v5016 = vadd.f32 0.0, %v5015
  %v5017 = vpop.f32.mrb[0].mxu0
  %5018 = vmatprep.mubr.f32.mxu0 0.0
  %5019 = vmatmul.mubr.f32.gmra.mrb[0].mxu0 %v4688
  %v5020 = vpop.f32.mrb[0].mxu0
  %v5021 = vadd.f32 0.0, %v5020
  %v5022 = vpop.f32.mrb[0].mxu0
  %5023 = vmatprep.mubr.f32.mxu0 0.0
  %5024 = vmatmul.mubr.f32.gmra.mrb[0].mxu0 %v4691
  %v5025 = vpop.f32.mrb[0].mxu0
  %v5026 = vadd.f32 0.0, %v5025
  %v5027 = vpop.f32.mrb[0].mxu0
  %5028 = vmatprep.mubr.f32.mxu0 0.0
  %5029 = vmatmul.mubr.f32.gmra.mrb[0].mxu0 %v4694
  %v5030 = vpop.f32.mrb[0].mxu0
  %v5031 = vadd.f32 0.0, %v5030
  %v5032 = vpop.f32.mrb[0].mxu0
  %5033 = vmatprep.mubr.f32.mxu0 0.0
  %5034 = vmatmul.mubr.f32.gmra.mrb[0].mxu0 %v4697
  %v5035 = vpop.f32.mrb[0].mxu0
  %v5036 = vadd.f32 0.0, %v5035
  %v5037 = vpop.f32.mrb[0].mxu0
  %5038 = vmatprep.mubr.f32.mxu0 0.0
  %5039 = vmatmul.mubr.f32.gmra.mrb[0].mxu0 %v4700
  %v5040 = vpop.f32.mrb[0].mxu0
  %v5041 = vadd.f32 0.0, %v5040
  %v5042 = vpop.f32.mrb[0].mxu0
  %5043 = vmatprep.mubr.f32.mxu0 0.0
  %5044 = vmatmul.mubr.f32.gmra.mrb[0].mxu0 %v4703
  %v5045 = vpop.f32.mrb[0].mxu0
  %v5046 = vadd.f32 0.0, %v5045
  %v5047 = vpop.f32.mrb[0].mxu0
  %5048 = vmatprep.mubr.f32.mxu0 0.0
  %5049 = vmatmul.mubr.f32.gmra.mrb[0].mxu0 %v4706
  %v5050 = vpop.f32.mrb[0].mxu0
  %v5051 = vadd.f32 0.0, %v5050
  %v5052 = vpop.f32.mrb[0].mxu0
  %5053 = vmatprep.mubr.f32.mxu0 0.0
  %5054 = vmatmul.mubr.f32.gmra.mrb[0].mxu0 %v4709
  %v5055 = vpop.f32.mrb[0].mxu0
  %v5056 = vadd.f32 0.0, %v5055
  %v5057 = vpop.f32.mrb[0].mxu0
  %5058 = vmatprep.mubr.f32.mxu0 0.0
  %5059 = vmatmul.mubr.f32.gmra.mrb[0].mxu0 %v4712
  %v5060 = vpop.f32.mrb[0].mxu0
  %v5061 = vadd.f32 0.0, %v5060
  %v5062 = vpop.f32.mrb[0].mxu0
  %5063 = vmatprep.mubr.f32.mxu0 0.0
  %5064 = vmatmul.mubr.f32.gmra.mrb[0].mxu0 %v4715
  %v5065 = vpop.f32.mrb[0].mxu0
  %v5066 = vadd.f32 0.0, %v5065
  %v5067 = vpop.f32.mrb[0].mxu0
  %5068 = vmatprep.mubr.f32.mxu0 0.0
  %5069 = vmatmul.mubr.f32.gmra.mrb[0].mxu0 %v4718
  %v5070 = vpop.f32.mrb[0].mxu0
  %v5071 = vadd.f32 0.0, %v5070
  %v5072 = vpop.f32.mrb[0].mxu0
  %5073 = vmatprep.mubr.f32.mxu0 0.0
  %5074 = vmatmul.mubr.f32.gmra.mrb[0].mxu0 %v4721
  %v5075 = vpop.f32.mrb[0].mxu0
  %v5076 = vadd.f32 0.0, %v5075
  %v5077 = vpop.f32.mrb[0].mxu0
  %5078 = vmatprep.mubr.f32.mxu0 0.0
  %5079 = vmatmul.mubr.f32.gmra.mrb[0].mxu0 %v4724
  %v5080 = vpop.f32.mrb[0].mxu0
  %v5081 = vadd.f32 0.0, %v5080
  %v5082 = vpop.f32.mrb[0].mxu0
  %5083 = vmatprep.mubr.f32.mxu0 0.0
  %5084 = vmatmul.mubr.f32.gmra.mrb[0].mxu0 %v4727
  %v5085 = vpop.f32.mrb[0].mxu0
  %v5086 = vadd.f32 0.0, %v5085
  %v5087 = vpop.f32.mrb[0].mxu0
  %5088 = vmatprep.mubr.f32.mxu0 0.0
  %5089 = vmatmul.mubr.f32.gmra.mrb[0].mxu0 %v4730
  %v5090 = vpop.f32.mrb[0].mxu0
  %v5091 = vadd.f32 0.0, %v5090
  %v5092 = vpop.f32.mrb[0].mxu0
  %5093 = vmatprep.mubr.f32.mxu0 0.0
  %5094 = vmatmul.mubr.f32.gmra.mrb[0].mxu0 %v4733
  %v5095 = vpop.f32.mrb[0].mxu0
  %v5096 = vadd.f32 0.0, %v5095
  %v5097 = vpop.f32.mrb[0].mxu0
  %5098 = vmatprep.mubr.f32.mxu0 0.0
  %5099 = vmatmul.mubr.f32.gmra.mrb[0].mxu0 %v4736
  %v5100 = vpop.f32.mrb[0].mxu0
  %v5101 = vadd.f32 0.0, %v5100
  %v5102 = vpop.f32.mrb[0].mxu0
  %5103 = vmatprep.mubr.f32.mxu0 0.0
  %5104 = vmatmul.mubr.f32.gmra.mrb[0].mxu0 %v4739
  %v5105 = vpop.f32.mrb[0].mxu0
  %v5106 = vadd.f32 0.0, %v5105
  %v5107 = vpop.f32.mrb[0].mxu0
  %5108 = vmatprep.mubr.f32.mxu0 0.0
  %5109 = vmatmul.mubr.f32.gmra.mrb[0].mxu0 %v4742
  %v5110 = vpop.f32.mrb[0].mxu0
  %v5111 = vadd.f32 0.0, %v5110
  %v5112 = vpop.f32.mrb[0].mxu0
  %5113 = vmatprep.mubr.f32.mxu0 0.0
  %5114 = vmatmul.mubr.f32.gmra.mrb[0].mxu0 %v4745
  %v5115 = vpop.f32.mrb[0].mxu0
  %v5116 = vadd.f32 0.0, %v5115
  %v5117 = vpop.f32.mrb[0].mxu0
  %5118 = vmatprep.mubr.f32.mxu0 0.0
  %5119 = vmatmul.mubr.f32.gmra.mrb[0].mxu0 %v4748
  %v5120 = vpop.f32.mrb[0].mxu0
  %v5121 = vadd.f32 0.0, %v5120
  %v5122 = vpop.f32.mrb[0].mxu0
  %5123 = vmatprep.mubr.f32.mxu0 0.0
  %5124 = vmatmul.mubr.f32.gmra.mrb[0].mxu0 %v4751
  %v5125 = vpop.f32.mrb[0].mxu0
  %v5126 = vadd.f32 0.0, %v5125
  %v5127 = vpop.f32.mrb[0].mxu0
  %5128 = vmatprep.mubr.f32.mxu0 0.0
  %5129 = vmatmul.mubr.f32.gmra.mrb[0].mxu0 %v4754
  %v5130 = vpop.f32.mrb[0].mxu0
  %v5131 = vadd.f32 0.0, %v5130
  %v5132 = vpop.f32.mrb[0].mxu0
  %5133 = vmatprep.mubr.f32.mxu0 0.0
  %5134 = vmatmul.mubr.f32.gmra.mrb[0].mxu0 %v4757
  %v5135 = vpop.f32.mrb[0].mxu0
  %v5136 = vadd.f32 0.0, %v5135
  %v5137 = vpop.f32.mrb[0].mxu0
  %5138 = vmatprep.mubr.f32.mxu0 0.0
  %5139 = vmatmul.mubr.f32.gmra.mrb[0].mxu0 %v4760
  %v5140 = vpop.f32.mrb[0].mxu0
  %v5141 = vadd.f32 0.0, %v5140
  %v5142 = vpop.f32.mrb[0].mxu0
  %5143 = vmatprep.mubr.f32.mxu0 0.0
  %5144 = vmatmul.mubr.f32.gmra.mrb[0].mxu0 %v4763
  %v5145 = vpop.f32.mrb[0].mxu0
  %v5146 = vadd.f32 0.0, %v5145
  %v5147 = vpop.f32.mrb[0].mxu0
  %5148 = vmatprep.mubr.f32.mxu0 0.0
  %5149 = vmatmul.mubr.f32.gmra.mrb[0].mxu0 %v4766
  %v5150 = vpop.f32.mrb[0].mxu0
  %v5151 = vadd.f32 0.0, %v5150
  %v5152 = vpop.f32.mrb[0].mxu0
  %5153 = vmatprep.mubr.f32.mxu0 0.0
  %5154 = vmatmul.mubr.f32.gmra.mrb[0].mxu0 %v4769
  %v5155 = vpop.f32.mrb[0].mxu0
  %v5156 = vadd.f32 0.0, %v5155
  %v5157 = vpop.f32.mrb[0].mxu0
  %5158 = vdwg.mxu0
  %v5159 = vsel %vm81, %v4841, 0.0
  %v5160 = vsel %vm81, %v4846, 0.0
  %v5161 = vadd.f32 %v5159, %v5160
  %v5162 = vsel %vm81, %v4851, 0.0
  %v5163 = vadd.f32 %v5161, %v5162
  %v5164 = vsel %vm81, %v4856, 0.0
  %v5165 = vadd.f32 %v5163, %v5164
  %v5166 = vsel %vm81, %v4861, 0.0
  %v5167 = vadd.f32 %v5165, %v5166
  %v5168 = vsel %vm81, %v4866, 0.0
  %v5169 = vadd.f32 %v5167, %v5168
  %v5170 = vsel %vm81, %v4871, 0.0
  %v5171 = vadd.f32 %v5169, %v5170
  %v5172 = vsel %vm81, %v4876, 0.0
  %v5173 = vadd.f32 %v5171, %v5172
  %v5174 = vsel %vm81, %v4881, 0.0
  %v5175 = vadd.f32 %v5173, %v5174
  %v5176 = vsel %vm81, %v4886, 0.0
  %v5177 = vadd.f32 %v5175, %v5176
  %v5178 = vsel %vm81, %v4891, 0.0
  %v5179 = vadd.f32 %v5177, %v5178
  %v5180 = vsel %vm81, %v4896, 0.0
  %v5181 = vadd.f32 %v5179, %v5180
  %v5182 = vsel %vm81, %v4901, 0.0
  %v5183 = vadd.f32 %v5181, %v5182
  %v5184 = vsel %vm81, %v4906, 0.0
  %v5185 = vadd.f32 %v5183, %v5184
  %v5186 = vsel %vm81, %v4911, 0.0
  %v5187 = vadd.f32 %v5185, %v5186
  %v5188 = vsel %vm81, %v4916, 0.0
  %v5189 = vadd.f32 %v5187, %v5188
  %v5190 = vsel %vm81, %v4921, 0.0
  %v5191 = vadd.f32 %v5189, %v5190
  %v5192 = vsel %vm81, %v4926, 0.0
  %v5193 = vadd.f32 %v5191, %v5192
  %v5194 = vsel %vm81, %v4931, 0.0
  %v5195 = vadd.f32 %v5193, %v5194
  %v5196 = vsel %vm81, %v4936, 0.0
  %v5197 = vadd.f32 %v5195, %v5196
  %v5198 = vsel %vm81, %v4941, 0.0
  %v5199 = vadd.f32 %v5197, %v5198
  %v5200 = vsel %vm81, %v4946, 0.0
  %v5201 = vadd.f32 %v5199, %v5200
  %v5202 = vsel %vm81, %v4951, 0.0
  %v5203 = vadd.f32 %v5201, %v5202
  %v5204 = vsel %vm81, %v4956, 0.0
  %v5205 = vadd.f32 %v5203, %v5204
  %v5206 = vsel %vm81, %v4961, 0.0
  %v5207 = vadd.f32 %v5205, %v5206
  %v5208 = vsel %vm81, %v4966, 0.0
  %v5209 = vadd.f32 %v5207, %v5208
  %v5210 = vsel %vm81, %v4971, 0.0
  %v5211 = vadd.f32 %v5209, %v5210
  %v5212 = vsel %vm81, %v4976, 0.0
  %v5213 = vadd.f32 %v5211, %v5212
  %v5214 = vsel %vm81, %v4981, 0.0
  %v5215 = vadd.f32 %v5213, %v5214
  %v5216 = vsel %vm81, %v4986, 0.0
  %v5217 = vadd.f32 %v5215, %v5216
  %v5218 = vsel %vm81, %v4991, 0.0
  %v5219 = vadd.f32 %v5217, %v5218
  %v5220 = vsel %vm81, %v4996, 0.0
  %v5221 = vadd.f32 %v5219, %v5220
  %v5222 = vsel %vm81, %v5001, 0.0
  %v5223 = vadd.f32 %v5221, %v5222
  %v5224 = vsel %vm81, %v5006, 0.0
  %v5225 = vadd.f32 %v5223, %v5224
  %v5226 = vsel %vm81, %v5011, 0.0
  %v5227 = vadd.f32 %v5225, %v5226
  %v5228 = vsel %vm81, %v5016, 0.0
  %v5229 = vadd.f32 %v5227, %v5228
  %v5230 = vsel %vm81, %v5021, 0.0
  %v5231 = vadd.f32 %v5229, %v5230
  %v5232 = vsel %vm81, %v5026, 0.0
  %v5233 = vadd.f32 %v5231, %v5232
  %v5234 = vsel %vm81, %v5031, 0.0
  %v5235 = vadd.f32 %v5233, %v5234
  %v5236 = vsel %vm81, %v5036, 0.0
  %v5237 = vadd.f32 %v5235, %v5236
  %v5238 = vsel %vm81, %v5041, 0.0
  %v5239 = vadd.f32 %v5237, %v5238
  %v5240 = vsel %vm81, %v5046, 0.0
  %v5241 = vadd.f32 %v5239, %v5240
  %v5242 = vsel %vm81, %v5051, 0.0
  %v5243 = vadd.f32 %v5241, %v5242
  %v5244 = vsel %vm81, %v5056, 0.0
  %v5245 = vadd.f32 %v5243, %v5244
  %v5246 = vsel %vm81, %v5061, 0.0
  %v5247 = vadd.f32 %v5245, %v5246
  %v5248 = vsel %vm81, %v5066, 0.0
  %v5249 = vadd.f32 %v5247, %v5248
  %v5250 = vsel %vm81, %v5071, 0.0
  %v5251 = vadd.f32 %v5249, %v5250
  %v5252 = vsel %vm81, %v5076, 0.0
  %v5253 = vadd.f32 %v5251, %v5252
  %v5254 = vsel %vm81, %v5081, 0.0
  %v5255 = vadd.f32 %v5253, %v5254
  %v5256 = vsel %vm81, %v5086, 0.0
  %v5257 = vadd.f32 %v5255, %v5256
  %v5258 = vsel %vm81, %v5091, 0.0
  %v5259 = vadd.f32 %v5257, %v5258
  %v5260 = vsel %vm81, %v5096, 0.0
  %v5261 = vadd.f32 %v5259, %v5260
  %v5262 = vsel %vm81, %v5101, 0.0
  %v5263 = vadd.f32 %v5261, %v5262
  %v5264 = vsel %vm81, %v5106, 0.0
  %v5265 = vadd.f32 %v5263, %v5264
  %v5266 = vsel %vm81, %v5111, 0.0
  %v5267 = vadd.f32 %v5265, %v5266
  %v5268 = vsel %vm81, %v5116, 0.0
  %v5269 = vadd.f32 %v5267, %v5268
  %v5270 = vsel %vm81, %v5121, 0.0
  %v5271 = vadd.f32 %v5269, %v5270
  %v5272 = vsel %vm81, %v5126, 0.0
  %v5273 = vadd.f32 %v5271, %v5272
  %v5274 = vsel %vm81, %v5131, 0.0
  %v5275 = vadd.f32 %v5273, %v5274
  %v5276 = vsel %vm81, %v5136, 0.0
  %v5277 = vadd.f32 %v5275, %v5276
  %v5278 = vsel %vm81, %v5141, 0.0
  %v5279 = vadd.f32 %v5277, %v5278
  %v5280 = vsel %vm81, %v5146, 0.0
  %v5281 = vadd.f32 %v5279, %v5280
  %v5282 = vsel %vm81, %v5151, 0.0
  %v5283 = vadd.f32 %v5281, %v5282
  %v5284 = vsel %vm81, %v5156, 0.0
  %v5285 = vadd.f32 %v5283, %v5284
  %v5286 = vrot.slane %v5285, 4
  %v5287 = vadd.f32 %v5285, %v5286
  %v5288 = vrot.slane %v5287, 2
  %v5289 = vadd.f32 %v5287, %v5288
  %v5290 = vrot.slane %v5289, 1
  %v5291 = vadd.f32 %v5289, %v5290
  %v5292 = vmul.f32 %v5291, %v4184
  %v5293 = vsub.f32 %v4841, %v5292
  %v5294 = vsub.f32 %v4846, %v5292
  %v5295 = vsub.f32 %v4851, %v5292
  %v5296 = vsub.f32 %v4856, %v5292
  %v5297 = vsub.f32 %v4861, %v5292
  %v5298 = vsub.f32 %v4866, %v5292
  %v5299 = vsub.f32 %v4871, %v5292
  %v5300 = vsub.f32 %v4876, %v5292
  %v5301 = vsub.f32 %v4881, %v5292
  %v5302 = vsub.f32 %v4886, %v5292
  %v5303 = vsub.f32 %v4891, %v5292
  %v5304 = vsub.f32 %v4896, %v5292
  %v5305 = vsub.f32 %v4901, %v5292
  %v5306 = vsub.f32 %v4906, %v5292
  %v5307 = vsub.f32 %v4911, %v5292
  %v5308 = vsub.f32 %v4916, %v5292
  %v5309 = vsub.f32 %v4921, %v5292
  %v5310 = vsub.f32 %v4926, %v5292
  %v5311 = vsub.f32 %v4931, %v5292
  %v5312 = vsub.f32 %v4936, %v5292
  %v5313 = vsub.f32 %v4941, %v5292
  %v5314 = vsub.f32 %v4946, %v5292
  %v5315 = vsub.f32 %v4951, %v5292
  %v5316 = vsub.f32 %v4956, %v5292
  %v5317 = vsub.f32 %v4961, %v5292
  %v5318 = vsub.f32 %v4966, %v5292
  %v5319 = vsub.f32 %v4971, %v5292
  %v5320 = vsub.f32 %v4976, %v5292
  %v5321 = vsub.f32 %v4981, %v5292
  %v5322 = vsub.f32 %v4986, %v5292
  %v5323 = vsub.f32 %v4991, %v5292
  %v5324 = vsub.f32 %v4996, %v5292
  %v5325 = vsub.f32 %v5001, %v5292
  %v5326 = vsub.f32 %v5006, %v5292
  %v5327 = vsub.f32 %v5011, %v5292
  %v5328 = vsub.f32 %v5016, %v5292
  %v5329 = vsub.f32 %v5021, %v5292
  %v5330 = vsub.f32 %v5026, %v5292
  %v5331 = vsub.f32 %v5031, %v5292
  %v5332 = vsub.f32 %v5036, %v5292
  %v5333 = vsub.f32 %v5041, %v5292
  %v5334 = vsub.f32 %v5046, %v5292
  %v5335 = vsub.f32 %v5051, %v5292
  %v5336 = vsub.f32 %v5056, %v5292
  %v5337 = vsub.f32 %v5061, %v5292
  %v5338 = vsub.f32 %v5066, %v5292
  %v5339 = vsub.f32 %v5071, %v5292
  %v5340 = vsub.f32 %v5076, %v5292
  %v5341 = vsub.f32 %v5081, %v5292
  %v5342 = vsub.f32 %v5086, %v5292
  %v5343 = vsub.f32 %v5091, %v5292
  %v5344 = vsub.f32 %v5096, %v5292
  %v5345 = vsub.f32 %v5101, %v5292
  %v5346 = vsub.f32 %v5106, %v5292
  %v5347 = vsub.f32 %v5111, %v5292
  %v5348 = vsub.f32 %v5116, %v5292
  %v5349 = vsub.f32 %v5121, %v5292
  %v5350 = vsub.f32 %v5126, %v5292
  %v5351 = vsub.f32 %v5131, %v5292
  %v5352 = vsub.f32 %v5136, %v5292
  %v5353 = vsub.f32 %v5141, %v5292
  %v5354 = vsub.f32 %v5146, %v5292
  %v5355 = vsub.f32 %v5151, %v5292
  %v5356 = vsub.f32 %v5156, %v5292
  %v5357 = vmul.f32 %v5293, %v5293
  %v5358 = vmul.f32 %v5294, %v5294
  %v5359 = vmul.f32 %v5295, %v5295
  %v5360 = vmul.f32 %v5296, %v5296
  %v5361 = vmul.f32 %v5297, %v5297
  %v5362 = vmul.f32 %v5298, %v5298
  %v5363 = vmul.f32 %v5299, %v5299
  %v5364 = vmul.f32 %v5300, %v5300
  %v5365 = vmul.f32 %v5301, %v5301
  %v5366 = vmul.f32 %v5302, %v5302
  %v5367 = vmul.f32 %v5303, %v5303
  %v5368 = vmul.f32 %v5304, %v5304
  %v5369 = vmul.f32 %v5305, %v5305
  %v5370 = vmul.f32 %v5306, %v5306
  %v5371 = vmul.f32 %v5307, %v5307
  %v5372 = vmul.f32 %v5308, %v5308
  %v5373 = vmul.f32 %v5309, %v5309
  %v5374 = vmul.f32 %v5310, %v5310
  %v5375 = vmul.f32 %v5311, %v5311
  %v5376 = vmul.f32 %v5312, %v5312
  %v5377 = vmul.f32 %v5313, %v5313
  %v5378 = vmul.f32 %v5314, %v5314
  %v5379 = vmul.f32 %v5315, %v5315
  %v5380 = vmul.f32 %v5316, %v5316
  %v5381 = vmul.f32 %v5317, %v5317
  %v5382 = vmul.f32 %v5318, %v5318
  %v5383 = vmul.f32 %v5319, %v5319
  %v5384 = vmul.f32 %v5320, %v5320
  %v5385 = vmul.f32 %v5321, %v5321
  %v5386 = vmul.f32 %v5322, %v5322
  %v5387 = vmul.f32 %v5323, %v5323
  %v5388 = vmul.f32 %v5324, %v5324
  %v5389 = vmul.f32 %v5325, %v5325
  %v5390 = vmul.f32 %v5326, %v5326
  %v5391 = vmul.f32 %v5327, %v5327
  %v5392 = vmul.f32 %v5328, %v5328
  %v5393 = vmul.f32 %v5329, %v5329
  %v5394 = vmul.f32 %v5330, %v5330
  %v5395 = vmul.f32 %v5331, %v5331
  %v5396 = vmul.f32 %v5332, %v5332
  %v5397 = vmul.f32 %v5333, %v5333
  %v5398 = vmul.f32 %v5334, %v5334
  %v5399 = vmul.f32 %v5335, %v5335
  %v5400 = vmul.f32 %v5336, %v5336
  %v5401 = vmul.f32 %v5337, %v5337
  %v5402 = vmul.f32 %v5338, %v5338
  %v5403 = vmul.f32 %v5339, %v5339
  %v5404 = vmul.f32 %v5340, %v5340
  %v5405 = vmul.f32 %v5341, %v5341
  %v5406 = vmul.f32 %v5342, %v5342
  %v5407 = vmul.f32 %v5343, %v5343
  %v5408 = vmul.f32 %v5344, %v5344
  %v5409 = vmul.f32 %v5345, %v5345
  %v5410 = vmul.f32 %v5346, %v5346
  %v5411 = vmul.f32 %v5347, %v5347
  %v5412 = vmul.f32 %v5348, %v5348
  %v5413 = vmul.f32 %v5349, %v5349
  %v5414 = vmul.f32 %v5350, %v5350
  %v5415 = vmul.f32 %v5351, %v5351
  %v5416 = vmul.f32 %v5352, %v5352
  %v5417 = vmul.f32 %v5353, %v5353
  %v5418 = vmul.f32 %v5354, %v5354
  %v5419 = vmul.f32 %v5355, %v5355
  %v5420 = vmul.f32 %v5356, %v5356
  %v5421 = vsel %vm81, %v5357, 0.0
  %v5422 = vsel %vm81, %v5358, 0.0
  %v5423 = vadd.f32 %v5421, %v5422
  %v5424 = vsel %vm81, %v5359, 0.0
  %v5425 = vadd.f32 %v5423, %v5424
  %v5426 = vsel %vm81, %v5360, 0.0
  %v5427 = vadd.f32 %v5425, %v5426
  %v5428 = vsel %vm81, %v5361, 0.0
  %v5429 = vadd.f32 %v5427, %v5428
  %v5430 = vsel %vm81, %v5362, 0.0
  %v5431 = vadd.f32 %v5429, %v5430
  %v5432 = vsel %vm81, %v5363, 0.0
  %v5433 = vadd.f32 %v5431, %v5432
  %v5434 = vsel %vm81, %v5364, 0.0
  %v5435 = vadd.f32 %v5433, %v5434
  %v5436 = vsel %vm81, %v5365, 0.0
  %v5437 = vadd.f32 %v5435, %v5436
  %v5438 = vsel %vm81, %v5366, 0.0
  %v5439 = vadd.f32 %v5437, %v5438
  %v5440 = vsel %vm81, %v5367, 0.0
  %v5441 = vadd.f32 %v5439, %v5440
  %v5442 = vsel %vm81, %v5368, 0.0
  %v5443 = vadd.f32 %v5441, %v5442
  %v5444 = vsel %vm81, %v5369, 0.0
  %v5445 = vadd.f32 %v5443, %v5444
  %v5446 = vsel %vm81, %v5370, 0.0
  %v5447 = vadd.f32 %v5445, %v5446
  %v5448 = vsel %vm81, %v5371, 0.0
  %v5449 = vadd.f32 %v5447, %v5448
  %v5450 = vsel %vm81, %v5372, 0.0
  %v5451 = vadd.f32 %v5449, %v5450
  %v5452 = vsel %vm81, %v5373, 0.0
  %v5453 = vadd.f32 %v5451, %v5452
  %v5454 = vsel %vm81, %v5374, 0.0
  %v5455 = vadd.f32 %v5453, %v5454
  %v5456 = vsel %vm81, %v5375, 0.0
  %v5457 = vadd.f32 %v5455, %v5456
  %v5458 = vsel %vm81, %v5376, 0.0
  %v5459 = vadd.f32 %v5457, %v5458
  %v5460 = vsel %vm81, %v5377, 0.0
  %v5461 = vadd.f32 %v5459, %v5460
  %v5462 = vsel %vm81, %v5378, 0.0
  %v5463 = vadd.f32 %v5461, %v5462
  %v5464 = vsel %vm81, %v5379, 0.0
  %v5465 = vadd.f32 %v5463, %v5464
  %v5466 = vsel %vm81, %v5380, 0.0
  %v5467 = vadd.f32 %v5465, %v5466
  %v5468 = vsel %vm81, %v5381, 0.0
  %v5469 = vadd.f32 %v5467, %v5468
  %v5470 = vsel %vm81, %v5382, 0.0
  %v5471 = vadd.f32 %v5469, %v5470
  %v5472 = vsel %vm81, %v5383, 0.0
  %v5473 = vadd.f32 %v5471, %v5472
  %v5474 = vsel %vm81, %v5384, 0.0
  %v5475 = vadd.f32 %v5473, %v5474
  %v5476 = vsel %vm81, %v5385, 0.0
  %v5477 = vadd.f32 %v5475, %v5476
  %v5478 = vsel %vm81, %v5386, 0.0
  %v5479 = vadd.f32 %v5477, %v5478
  %v5480 = vsel %vm81, %v5387, 0.0
  %v5481 = vadd.f32 %v5479, %v5480
  %v5482 = vsel %vm81, %v5388, 0.0
  %v5483 = vadd.f32 %v5481, %v5482
  %v5484 = vsel %vm81, %v5389, 0.0
  %v5485 = vadd.f32 %v5483, %v5484
  %v5486 = vsel %vm81, %v5390, 0.0
  %v5487 = vadd.f32 %v5485, %v5486
  %v5488 = vsel %vm81, %v5391, 0.0
  %v5489 = vadd.f32 %v5487, %v5488
  %v5490 = vsel %vm81, %v5392, 0.0
  %v5491 = vadd.f32 %v5489, %v5490
  %v5492 = vsel %vm81, %v5393, 0.0
  %v5493 = vadd.f32 %v5491, %v5492
  %v5494 = vsel %vm81, %v5394, 0.0
  %v5495 = vadd.f32 %v5493, %v5494
  %v5496 = vsel %vm81, %v5395, 0.0
  %v5497 = vadd.f32 %v5495, %v5496
  %v5498 = vsel %vm81, %v5396, 0.0
  %v5499 = vadd.f32 %v5497, %v5498
  %v5500 = vsel %vm81, %v5397, 0.0
  %v5501 = vadd.f32 %v5499, %v5500
  %v5502 = vsel %vm81, %v5398, 0.0
  %v5503 = vadd.f32 %v5501, %v5502
  %v5504 = vsel %vm81, %v5399, 0.0
  %v5505 = vadd.f32 %v5503, %v5504
  %v5506 = vsel %vm81, %v5400, 0.0
  %v5507 = vadd.f32 %v5505, %v5506
  %v5508 = vsel %vm81, %v5401, 0.0
  %v5509 = vadd.f32 %v5507, %v5508
  %v5510 = vsel %vm81, %v5402, 0.0
  %v5511 = vadd.f32 %v5509, %v5510
  %v5512 = vsel %vm81, %v5403, 0.0
  %v5513 = vadd.f32 %v5511, %v5512
  %v5514 = vsel %vm81, %v5404, 0.0
  %v5515 = vadd.f32 %v5513, %v5514
  %v5516 = vsel %vm81, %v5405, 0.0
  %v5517 = vadd.f32 %v5515, %v5516
  %v5518 = vsel %vm81, %v5406, 0.0
  %v5519 = vadd.f32 %v5517, %v5518
  %v5520 = vsel %vm81, %v5407, 0.0
  %v5521 = vadd.f32 %v5519, %v5520
  %v5522 = vsel %vm81, %v5408, 0.0
  %v5523 = vadd.f32 %v5521, %v5522
  %v5524 = vsel %vm81, %v5409, 0.0
  %v5525 = vadd.f32 %v5523, %v5524
  %v5526 = vsel %vm81, %v5410, 0.0
  %v5527 = vadd.f32 %v5525, %v5526
  %v5528 = vsel %vm81, %v5411, 0.0
  %v5529 = vadd.f32 %v5527, %v5528
  %v5530 = vsel %vm81, %v5412, 0.0
  %v5531 = vadd.f32 %v5529, %v5530
  %v5532 = vsel %vm81, %v5413, 0.0
  %v5533 = vadd.f32 %v5531, %v5532
  %v5534 = vsel %vm81, %v5414, 0.0
  %v5535 = vadd.f32 %v5533, %v5534
  %v5536 = vsel %vm81, %v5415, 0.0
  %v5537 = vadd.f32 %v5535, %v5536
  %v5538 = vsel %vm81, %v5416, 0.0
  %v5539 = vadd.f32 %v5537, %v5538
  %v5540 = vsel %vm81, %v5417, 0.0
  %v5541 = vadd.f32 %v5539, %v5540
  %v5542 = vsel %vm81, %v5418, 0.0
  %v5543 = vadd.f32 %v5541, %v5542
  %v5544 = vsel %vm81, %v5419, 0.0
  %v5545 = vadd.f32 %v5543, %v5544
  %v5546 = vsel %vm81, %v5420, 0.0
  %v5547 = vadd.f32 %v5545, %v5546
  %v5548 = vrot.slane %v5547, 4
  %v5549 = vadd.f32 %v5547, %v5548
  %v5550 = vrot.slane %v5549, 2
  %v5551 = vadd.f32 %v5549, %v5550
  %v5552 = vrot.slane %v5551, 1
  %v5553 = vadd.f32 %v5551, %v5552
  %v5554 = vmul.f32 %v5553, %v4184
  %v5555 = vadd.f32 %v5554, 1e-05
  %v5556 = vrsqrt.pop %v5555
  %v5557 = vmul.f32 %v5293, %v5556
  %v5558 = vmul.f32 %v5294, %v5556
  %v5559 = vmul.f32 %v5295, %v5556
  %v5560 = vmul.f32 %v5296, %v5556
  %v5561 = vmul.f32 %v5297, %v5556
  %v5562 = vmul.f32 %v5298, %v5556
  %v5563 = vmul.f32 %v5299, %v5556
  %v5564 = vmul.f32 %v5300, %v5556
  %v5565 = vmul.f32 %v5301, %v5556
  %v5566 = vmul.f32 %v5302, %v5556
  %v5567 = vmul.f32 %v5303, %v5556
  %v5568 = vmul.f32 %v5304, %v5556
  %v5569 = vmul.f32 %v5305, %v5556
  %v5570 = vmul.f32 %v5306, %v5556
  %v5571 = vmul.f32 %v5307, %v5556
  %v5572 = vmul.f32 %v5308, %v5556
  %v5573 = vmul.f32 %v5309, %v5556
  %v5574 = vmul.f32 %v5310, %v5556
  %v5575 = vmul.f32 %v5311, %v5556
  %v5576 = vmul.f32 %v5312, %v5556
  %v5577 = vmul.f32 %v5313, %v5556
  %v5578 = vmul.f32 %v5314, %v5556
  %v5579 = vmul.f32 %v5315, %v5556
  %v5580 = vmul.f32 %v5316, %v5556
  %v5581 = vmul.f32 %v5317, %v5556
  %v5582 = vmul.f32 %v5318, %v5556
  %v5583 = vmul.f32 %v5319, %v5556
  %v5584 = vmul.f32 %v5320, %v5556
  %v5585 = vmul.f32 %v5321, %v5556
  %v5586 = vmul.f32 %v5322, %v5556
  %v5587 = vmul.f32 %v5323, %v5556
  %v5588 = vmul.f32 %v5324, %v5556
  %v5589 = vmul.f32 %v5325, %v5556
  %v5590 = vmul.f32 %v5326, %v5556
  %v5591 = vmul.f32 %v5327, %v5556
  %v5592 = vmul.f32 %v5328, %v5556
  %v5593 = vmul.f32 %v5329, %v5556
  %v5594 = vmul.f32 %v5330, %v5556
  %v5595 = vmul.f32 %v5331, %v5556
  %v5596 = vmul.f32 %v5332, %v5556
  %v5597 = vmul.f32 %v5333, %v5556
  %v5598 = vmul.f32 %v5334, %v5556
  %v5599 = vmul.f32 %v5335, %v5556
  %v5600 = vmul.f32 %v5336, %v5556
  %v5601 = vmul.f32 %v5337, %v5556
  %v5602 = vmul.f32 %v5338, %v5556
  %v5603 = vmul.f32 %v5339, %v5556
  %v5604 = vmul.f32 %v5340, %v5556
  %v5605 = vmul.f32 %v5341, %v5556
  %v5606 = vmul.f32 %v5342, %v5556
  %v5607 = vmul.f32 %v5343, %v5556
  %v5608 = vmul.f32 %v5344, %v5556
  %v5609 = vmul.f32 %v5345, %v5556
  %v5610 = vmul.f32 %v5346, %v5556
  %v5611 = vmul.f32 %v5347, %v5556
  %v5612 = vmul.f32 %v5348, %v5556
  %v5613 = vmul.f32 %v5349, %v5556
  %v5614 = vmul.f32 %v5350, %v5556
  %v5615 = vmul.f32 %v5351, %v5556
  %v5616 = vmul.f32 %v5352, %v5556
  %v5617 = vmul.f32 %v5353, %v5556
  %v5618 = vmul.f32 %v5354, %v5556
  %v5619 = vmul.f32 %v5355, %v5556
  %v5620 = vmul.f32 %v5356, %v5556
  %v5621 = vadd.f32 %v17, %v5557
  %v5622 = vadd.f32 %v18, %v5558
  %v5623 = vadd.f32 %v19, %v5559
  %v5624 = vadd.f32 %v20, %v5560
  %v5625 = vadd.f32 %v21, %v5561
  %v5626 = vadd.f32 %v22, %v5562
  %v5627 = vadd.f32 %v23, %v5563
  %v5628 = vadd.f32 %v24, %v5564
  %v5629 = vadd.f32 %v25, %v5565
  %v5630 = vadd.f32 %v26, %v5566
  %v5631 = vadd.f32 %v27, %v5567
  %v5632 = vadd.f32 %v28, %v5568
  %v5633 = vadd.f32 %v29, %v5569
  %v5634 = vadd.f32 %v30, %v5570
  %v5635 = vadd.f32 %v31, %v5571
  %v5636 = vadd.f32 %v32, %v5572
  %v5637 = vadd.f32 %v33, %v5573
  %v5638 = vadd.f32 %v34, %v5574
  %v5639 = vadd.f32 %v35, %v5575
  %v5640 = vadd.f32 %v36, %v5576
  %v5641 = vadd.f32 %v37, %v5577
  %v5642 = vadd.f32 %v38, %v5578
  %v5643 = vadd.f32 %v39, %v5579
  %v5644 = vadd.f32 %v40, %v5580
  %v5645 = vadd.f32 %v41, %v5581
  %v5646 = vadd.f32 %v42, %v5582
  %v5647 = vadd.f32 %v43, %v5583
  %v5648 = vadd.f32 %v44, %v5584
  %v5649 = vadd.f32 %v45, %v5585
  %v5650 = vadd.f32 %v46, %v5586
  %v5651 = vadd.f32 %v47, %v5587
  %v5652 = vadd.f32 %v48, %v5588
  %v5653 = vadd.f32 %v49, %v5589
  %v5654 = vadd.f32 %v50, %v5590
  %v5655 = vadd.f32 %v51, %v5591
  %v5656 = vadd.f32 %v52, %v5592
  %v5657 = vadd.f32 %v53, %v5593
  %v5658 = vadd.f32 %v54, %v5594
  %v5659 = vadd.f32 %v55, %v5595
  %v5660 = vadd.f32 %v56, %v5596
  %v5661 = vadd.f32 %v57, %v5597
  %v5662 = vadd.f32 %v58, %v5598
  %v5663 = vadd.f32 %v59, %v5599
  %v5664 = vadd.f32 %v60, %v5600
  %v5665 = vadd.f32 %v61, %v5601
  %v5666 = vadd.f32 %v62, %v5602
  %v5667 = vadd.f32 %v63, %v5603
  %v5668 = vadd.f32 %v64, %v5604
  %v5669 = vadd.f32 %v65, %v5605
  %v5670 = vadd.f32 %v66, %v5606
  %v5671 = vadd.f32 %v67, %v5607
  %v5672 = vadd.f32 %v68, %v5608
  %v5673 = vadd.f32 %v69, %v5609
  %v5674 = vadd.f32 %v70, %v5610
  %v5675 = vadd.f32 %v71, %v5611
  %v5676 = vadd.f32 %v72, %v5612
  %v5677 = vadd.f32 %v73, %v5613
  %v5678 = vadd.f32 %v74, %v5614
  %v5679 = vadd.f32 %v75, %v5615
  %v5680 = vadd.f32 %v76, %v5616
  %v5681 = vadd.f32 %v77, %v5617
  %v5682 = vadd.f32 %v78, %v5618
  %v5683 = vadd.f32 %v79, %v5619
  %v5684 = vadd.f32 %v80, %v5620
  %5685 = vst.msk [vmem:[%s255 + $0x1] sm:$0xff] %vm81, %v5621
  %5686 = vst.msk [vmem:[%s255 + $0x9] sm:$0xff] %vm81, %v5622
  %5687 = vst.msk [vmem:[%s255 + $0x19] sm:$0xff] %vm81, %v5623
  %5688 = vst.msk [vmem:[%s255 + $0x21] sm:$0xff] %vm81, %v5624
  %5689 = vst.msk [vmem:[%s255 + $0x31] sm:$0xff] %vm81, %v5625
  %5690 = vst.msk [vmem:[%s255 + $0x39] sm:$0xff] %vm81, %v5626
  %5691 = vst.msk [vmem:[%s255 + $0x49] sm:$0xff] %vm81, %v5627
  %5692 = vst.msk [vmem:[%s255 + $0x51] sm:$0xff] %vm81, %v5628
  %5693 = vst.msk [vmem:[%s255 + $0x61] sm:$0xff] %vm81, %v5629
  %5694 = vst.msk [vmem:[%s255 + $0x69] sm:$0xff] %vm81, %v5630
  %5695 = vst.msk [vmem:[%s255 + $0x79] sm:$0xff] %vm81, %v5631
  %5696 = vst.msk [vmem:[%s255 + $0x81] sm:$0xff] %vm81, %v5632
  %5697 = vst.msk [vmem:[%s255 + $0x91] sm:$0xff] %vm81, %v5633
  %5698 = vst.msk [vmem:[%s255 + $0x99] sm:$0xff] %vm81, %v5634
  %5699 = vst.msk [vmem:[%s255 + $0xa9] sm:$0xff] %vm81, %v5635
  %5700 = vst.msk [vmem:[%s255 + $0xb1] sm:$0xff] %vm81, %v5636
  %5701 = vst.msk [vmem:[%s255 + $0xc1] sm:$0xff] %vm81, %v5637
  %5702 = vst.msk [vmem:[%s255 + $0xc9] sm:$0xff] %vm81, %v5638
  %5703 = vst.msk [vmem:[%s255 + $0xd9] sm:$0xff] %vm81, %v5639
  %5704 = vst.msk [vmem:[%s255 + $0xe1] sm:$0xff] %vm81, %v5640
  %5705 = vst.msk [vmem:[%s255 + $0xf1] sm:$0xff] %vm81, %v5641
  %5706 = vst.msk [vmem:[%s255 + $0xf9] sm:$0xff] %vm81, %v5642
  %5707 = vst.msk [vmem:[%s255 + $0x109] sm:$0xff] %vm81, %v5643
  %5708 = vst.msk [vmem:[%s255 + $0x111] sm:$0xff] %vm81, %v5644
  %5709 = vst.msk [vmem:[%s255 + $0x121] sm:$0xff] %vm81, %v5645
  %5710 = vst.msk [vmem:[%s255 + $0x129] sm:$0xff] %vm81, %v5646
  %5711 = vst.msk [vmem:[%s255 + $0x139] sm:$0xff] %vm81, %v5647
  %5712 = vst.msk [vmem:[%s255 + $0x141] sm:$0xff] %vm81, %v5648
  %5713 = vst.msk [vmem:[%s255 + $0x151] sm:$0xff] %vm81, %v5649
  %5714 = vst.msk [vmem:[%s255 + $0x159] sm:$0xff] %vm81, %v5650
  %5715 = vst.msk [vmem:[%s255 + $0x169] sm:$0xff] %vm81, %v5651
  %5716 = vst.msk [vmem:[%s255 + $0x171] sm:$0xff] %vm81, %v5652
  %5717 = vst.msk [vmem:[%s255 + $0x1b1] sm:$0xff] %vm81, %v5653
  %5718 = vst.msk [vmem:[%s255 + $0x1b9] sm:$0xff] %vm81, %v5654
  %5719 = vst.msk [vmem:[%s255 + $0x1c9] sm:$0xff] %vm81, %v5655
  %5720 = vst.msk [vmem:[%s255 + $0x1d1] sm:$0xff] %vm81, %v5656
  %5721 = vst.msk [vmem:[%s255 + $0x1e1] sm:$0xff] %vm81, %v5657
  %5722 = vst.msk [vmem:[%s255 + $0x1e9] sm:$0xff] %vm81, %v5658
  %5723 = vst.msk [vmem:[%s255 + $0x1f9] sm:$0xff] %vm81, %v5659
  %5724 = vst.msk [vmem:[%s255 + $0x201] sm:$0xff] %vm81, %v5660
  %5725 = vst.msk [vmem:[%s255 + $0x211] sm:$0xff] %vm81, %v5661
  %5726 = vst.msk [vmem:[%s255 + $0x219] sm:$0xff] %vm81, %v5662
  %5727 = vst.msk [vmem:[%s255 + $0x229] sm:$0xff] %vm81, %v5663
  %5728 = vst.msk [vmem:[%s255 + $0x231] sm:$0xff] %vm81, %v5664
  %5729 = vst.msk [vmem:[%s255 + $0x241] sm:$0xff] %vm81, %v5665
  %5730 = vst.msk [vmem:[%s255 + $0x249] sm:$0xff] %vm81, %v5666
  %5731 = vst.msk [vmem:[%s255 + $0x259] sm:$0xff] %vm81, %v5667
  %5732 = vst.msk [vmem:[%s255 + $0x261] sm:$0xff] %vm81, %v5668
  %5733 = vst.msk [vmem:[%s255 + $0x271] sm:$0xff] %vm81, %v5669
  %5734 = vst.msk [vmem:[%s255 + $0x279] sm:$0xff] %vm81, %v5670
  %5735 = vst.msk [vmem:[%s255 + $0x289] sm:$0xff] %vm81, %v5671
  %5736 = vst.msk [vmem:[%s255 + $0x291] sm:$0xff] %vm81, %v5672
  %5737 = vst.msk [vmem:[%s255 + $0x2a1] sm:$0xff] %vm81, %v5673
  %5738 = vst.msk [vmem:[%s255 + $0x2a9] sm:$0xff] %vm81, %v5674
  %5739 = vst.msk [vmem:[%s255 + $0x2b9] sm:$0xff] %vm81, %v5675
  %5740 = vst.msk [vmem:[%s255 + $0x2c1] sm:$0xff] %vm81, %v5676
  %5741 = vst.msk [vmem:[%s255 + $0x2d1] sm:$0xff] %vm81, %v5677
  %5742 = vst.msk [vmem:[%s255 + $0x2d9] sm:$0xff] %vm81, %v5678
  %5743 = vst.msk [vmem:[%s255 + $0x2e9] sm:$0xff] %vm81, %v5679
  %5744 = vst.msk [vmem:[%s255 + $0x2f1] sm:$0xff] %vm81, %v5680
  %5745 = vst.msk [vmem:[%s255 + $0x301] sm:$0xff] %vm81, %v5681
  %5746 = vst.msk [vmem:[%s255 + $0x309] sm:$0xff] %vm81, %v5682
  %5747 = vst.msk [vmem:[%s255 + $0x319] sm:$0xff] %vm81, %v5683
  %5748 = vst.msk [vmem:[%s255 + $0x321] sm:$0xff] %vm81, %v5684
  %v5749 = vld [vmem:[#allocation2] sm:$0xff]
  %v5750 = vld [vmem:[#allocation2 + $0x8] sm:$0xff]
  %v5751 = vld [vmem:[#allocation2 + $0x10] sm:$0x3]
  %v5752 = vld [vmem:[#allocation2 + $0x18] sm:$0xff]
  %v5753 = vld [vmem:[#allocation2 + $0x20] sm:$0xff]
  %v5754 = vld [vmem:[#allocation2 + $0x28] sm:$0x3]
  %v5755 = vld [vmem:[#allocation2 + $0x30] sm:$0xff]
  %v5756 = vld [vmem:[#allocation2 + $0x38] sm:$0xff]
  %v5757 = vld [vmem:[#allocation2 + $0x40] sm:$0x3]
  %v5758 = vld [vmem:[#allocation2 + $0x48] sm:$0xff]
  %v5759 = vld [vmem:[#allocation2 + $0x50] sm:$0xff]
  %v5760 = vld [vmem:[#allocation2 + $0x58] sm:$0x3]
  %v5761 = vld [vmem:[#allocation2 + $0x60] sm:$0xff]
  %v5762 = vld [vmem:[#allocation2 + $0x68] sm:$0xff]
  %v5763 = vld [vmem:[#allocation2 + $0x70] sm:$0x3]
  %v5764 = vld [vmem:[#allocation2 + $0x78] sm:$0xff]
  %v5765 = vld [vmem:[#allocation2 + $0x80] sm:$0xff]
  %v5766 = vld [vmem:[#allocation2 + $0x88] sm:$0x3]
  %v5767 = vld [vmem:[#allocation2 + $0x90] sm:$0xff]
  %v5768 = vld [vmem:[#allocation2 + $0x98] sm:$0xff]
  %v5769 = vld [vmem:[#allocation2 + $0xa0] sm:$0x3]
  %v5770 = vld [vmem:[#allocation2 + $0xa8] sm:$0xff]
  %v5771 = vld [vmem:[#allocation2 + $0xb0] sm:$0xff]
  %v5772 = vld [vmem:[#allocation2 + $0xb8] sm:$0x3]
  %v5773 = vld [vmem:[#allocation2 + $0xc0] sm:$0xff]
  %v5774 = vld [vmem:[#allocation2 + $0xc8] sm:$0xff]
  %v5775 = vld [vmem:[#allocation2 + $0xd0] sm:$0x3]
  %v5776 = vld [vmem:[#allocation2 + $0xd8] sm:$0xff]
  %v5777 = vld [vmem:[#allocation2 + $0xe0] sm:$0xff]
  %v5778 = vld [vmem:[#allocation2 + $0xe8] sm:$0x3]
  %v5779 = vld [vmem:[#allocation2 + $0xf0] sm:$0xff]
  %v5780 = vld [vmem:[#allocation2 + $0xf8] sm:$0xff]
  %v5781 = vld [vmem:[#allocation2 + $0x100] sm:$0x3]
  %v5782 = vld [vmem:[#allocation2 + $0x108] sm:$0xff]
  %v5783 = vld [vmem:[#allocation2 + $0x110] sm:$0xff]
  %v5784 = vld [vmem:[#allocation2 + $0x118] sm:$0x3]
  %v5785 = vld [vmem:[#allocation2 + $0x120] sm:$0xff]
  %v5786 = vld [vmem:[#allocation2 + $0x128] sm:$0xff]
  %v5787 = vld [vmem:[#allocation2 + $0x130] sm:$0x3]
  %v5788 = vld [vmem:[#allocation2 + $0x138] sm:$0xff]
  %v5789 = vld [vmem:[#allocation2 + $0x140] sm:$0xff]
  %v5790 = vld [vmem:[#allocation2 + $0x148] sm:$0x3]
  %v5791 = vld [vmem:[#allocation2 + $0x150] sm:$0xff]
  %v5792 = vld [vmem:[#allocation2 + $0x158] sm:$0xff]
  %v5793 = vld [vmem:[#allocation2 + $0x160] sm:$0x3]
  %v5794 = vld [vmem:[#allocation2 + $0x168] sm:$0xff]
  %v5795 = vld [vmem:[#allocation2 + $0x170] sm:$0xff]
  %v5796 = vld [vmem:[#allocation2 + $0x178] sm:$0x3]
  %v5797 = vld [vmem:[#allocation2 + $0x180] sm:$0xff]
  %v5798 = vld [vmem:[#allocation2 + $0x188] sm:$0xff]
  %v5799 = vld [vmem:[#allocation2 + $0x190] sm:$0x3]
  %v5800 = vld [vmem:[#allocation2 + $0x198] sm:$0xff]
  %v5801 = vld [vmem:[#allocation2 + $0x1a0] sm:$0xff]
  %v5802 = vld [vmem:[#allocation2 + $0x1a8] sm:$0x3]
  %v5803 = vld [vmem:[#allocation2 + $0x1b0] sm:$0xff]
  %v5804 = vld [vmem:[#allocation2 + $0x1b8] sm:$0xff]
  %v5805 = vld [vmem:[#allocation2 + $0x1c0] sm:$0x3]
  %v5806 = vld [vmem:[#allocation2 + $0x1c8] sm:$0xff]
  %v5807 = vld [vmem:[#allocation2 + $0x1d0] sm:$0xff]
  %v5808 = vld [vmem:[#allocation2 + $0x1d8] sm:$0x3]
  %v5809 = vld [vmem:[#allocation2 + $0x1e0] sm:$0xff]
  %v5810 = vld [vmem:[#allocation2 + $0x1e8] sm:$0xff]
  %v5811 = vld [vmem:[#allocation2 + $0x1f0] sm:$0x3]
  %v5812 = vld [vmem:[#allocation2 + $0x1f8] sm:$0xff]
  %v5813 = vld [vmem:[#allocation2 + $0x200] sm:$0xff]
  %v5814 = vld [vmem:[#allocation2 + $0x208] sm:$0x3]
  %v5815 = vld [vmem:[#allocation2 + $0x210] sm:$0xff]
  %v5816 = vld [vmem:[#allocation2 + $0x218] sm:$0xff]
  %v5817 = vld [vmem:[#allocation2 + $0x220] sm:$0x3]
  %v5818 = vld [vmem:[#allocation2 + $0x228] sm:$0xff]
  %v5819 = vld [vmem:[#allocation2 + $0x230] sm:$0xff]
  %v5820 = vld [vmem:[#allocation2 + $0x238] sm:$0x3]
  %v5821 = vld [vmem:[#allocation2 + $0x240] sm:$0xff]
  %v5822 = vld [vmem:[#allocation2 + $0x248] sm:$0xff]
  %v5823 = vld [vmem:[#allocation2 + $0x250] sm:$0x3]
  %v5824 = vld [vmem:[#allocation2 + $0x258] sm:$0xff]
  %v5825 = vld [vmem:[#allocation2 + $0x260] sm:$0xff]
  %v5826 = vld [vmem:[#allocation2 + $0x268] sm:$0x3]
  %v5827 = vld [vmem:[#allocation2 + $0x270] sm:$0xff]
  %v5828 = vld [vmem:[#allocation2 + $0x278] sm:$0xff]
  %v5829 = vld [vmem:[#allocation2 + $0x280] sm:$0x3]
  %v5830 = vld [vmem:[#allocation2 + $0x288] sm:$0xff]
  %v5831 = vld [vmem:[#allocation2 + $0x290] sm:$0xff]
  %v5832 = vld [vmem:[#allocation2 + $0x298] sm:$0x3]
  %v5833 = vld [vmem:[#allocation2 + $0x2a0] sm:$0xff]
  %v5834 = vld [vmem:[#allocation2 + $0x2a8] sm:$0xff]
  %v5835 = vld [vmem:[#allocation2 + $0x2b0] sm:$0x3]
  %v5836 = vld [vmem:[#allocation2 + $0x2b8] sm:$0xff]
  %v5837 = vld [vmem:[#allocation2 + $0x2c0] sm:$0xff]
  %v5838 = vld [vmem:[#allocation2 + $0x2c8] sm:$0x3]
  %v5839 = vld [vmem:[#allocation2 + $0x2d0] sm:$0xff]
  %v5840 = vld [vmem:[#allocation2 + $0x2d8] sm:$0xff]
  %v5841 = vld [vmem:[#allocation2 + $0x2e0] sm:$0x3]
  %v5842 = vld [vmem:[#allocation2 + $0x2e8] sm:$0xff]
  %v5843 = vld [vmem:[#allocation2 + $0x2f0] sm:$0xff]
  %v5844 = vld [vmem:[#allocation2 + $0x2f8] sm:$0x3]
  %v5845 = vld [vmem:[#allocation2 + $0x300] sm:$0xff]
  %v5846 = vld [vmem:[#allocation2 + $0x308] sm:$0xff]
  %v5847 = vld [vmem:[#allocation2 + $0x310] sm:$0x3]
  %v5848 = vld [vmem:[#allocation2 + $0x318] sm:$0xff]
  %v5849 = vld [vmem:[#allocation2 + $0x320] sm:$0xff]
  %v5850 = vld [vmem:[#allocation2 + $0x328] sm:$0x3]
  %v5851 = vld [vmem:[#allocation2 + $0x330] sm:$0xff]
  %v5852 = vld [vmem:[#allocation2 + $0x338] sm:$0xff]
  %v5853 = vld [vmem:[#allocation2 + $0x340] sm:$0x3]
  %v5854 = vld [vmem:[#allocation2 + $0x348] sm:$0xff]
  %v5855 = vld [vmem:[#allocation2 + $0x350] sm:$0xff]
  %v5856 = vld [vmem:[#allocation2 + $0x358] sm:$0x3]
  %vm5965 = vcmask 1046528
  %v5966 = vrot.slane %v5749, 1
  %v5967 = vrot.slane %v5750, 1
  %v5968 = vsel %vm5965, %v5966, %v5967
  %v5969 = vrot.slane %v5751, 1
  %v5970 = vsel %vm5965, %v5967, %v5969
  %v5971 = vrot.slane %v5752, 1
  %v5972 = vrot.slane %v5753, 1
  %v5973 = vsel %vm5965, %v5971, %v5972
  %v5974 = vrot.slane %v5754, 1
  %v5975 = vsel %vm5965, %v5972, %v5974
  %v5976 = vrot.slane %v5755, 1
  %v5977 = vrot.slane %v5756, 1
  %v5978 = vsel %vm5965, %v5976, %v5977
  %v5979 = vrot.slane %v5757, 1
  %v5980 = vsel %vm5965, %v5977, %v5979
  %v5981 = vrot.slane %v5758, 1
  %v5982 = vrot.slane %v5759, 1
  %v5983 = vsel %vm5965, %v5981, %v5982
  %v5984 = vrot.slane %v5760, 1
  %v5985 = vsel %vm5965, %v5982, %v5984
  %v5986 = vrot.slane %v5761, 1
  %v5987 = vrot.slane %v5762, 1
  %v5988 = vsel %vm5965, %v5986, %v5987
  %v5989 = vrot.slane %v5763, 1
  %v5990 = vsel %vm5965, %v5987, %v5989
  %v5991 = vrot.slane %v5764, 1
  %v5992 = vrot.slane %v5765, 1
  %v5993 = vsel %vm5965, %v5991, %v5992
  %v5994 = vrot.slane %v5766, 1
  %v5995 = vsel %vm5965, %v5992, %v5994
  %v5996 = vrot.slane %v5767, 1
  %v5997 = vrot.slane %v5768, 1
  %v5998 = vsel %vm5965, %v5996, %v5997
  %v5999 = vrot.slane %v5769, 1
  %v6000 = vsel %vm5965, %v5997, %v5999
  %v6001 = vrot.slane %v5770, 1
  %v6002 = vrot.slane %v5771, 1
  %v6003 = vsel %vm5965, %v6001, %v6002
  %v6004 = vrot.slane %v5772, 1
  %v6005 = vsel %vm5965, %v6002, %v6004
  %v6006 = vrot.slane %v5773, 1
  %v6007 = vrot.slane %v5774, 1
  %v6008 = vsel %vm5965, %v6006, %v6007
  %v6009 = vrot.slane %v5775, 1
  %v6010 = vsel %vm5965, %v6007, %v6009
  %v6011 = vrot.slane %v5776, 1
  %v6012 = vrot.slane %v5777, 1
  %v6013 = vsel %vm5965, %v6011, %v6012
  %v6014 = vrot.slane %v5778, 1
  %v6015 = vsel %vm5965, %v6012, %v6014
  %v6016 = vrot.slane %v5779, 1
  %v6017 = vrot.slane %v5780, 1
  %v6018 = vsel %vm5965, %v6016, %v6017
  %v6019 = vrot.slane %v5781, 1
  %v6020 = vsel %vm5965, %v6017, %v6019
  %v6021 = vrot.slane %v5782, 1
  %v6022 = vrot.slane %v5783, 1
  %v6023 = vsel %vm5965, %v6021, %v6022
  %v6024 = vrot.slane %v5784, 1
  %v6025 = vsel %vm5965, %v6022, %v6024
  %v6026 = vrot.slane %v5785, 1
  %v6027 = vrot.slane %v5786, 1
  %v6028 = vsel %vm5965, %v6026, %v6027
  %v6029 = vrot.slane %v5787, 1
  %v6030 = vsel %vm5965, %v6027, %v6029
  %v6031 = vrot.slane %v5788, 1
  %v6032 = vrot.slane %v5789, 1
  %v6033 = vsel %vm5965, %v6031, %v6032
  %v6034 = vrot.slane %v5790, 1
  %v6035 = vsel %vm5965, %v6032, %v6034
  %v6036 = vrot.slane %v5791, 1
  %v6037 = vrot.slane %v5792, 1
  %v6038 = vsel %vm5965, %v6036, %v6037
  %v6039 = vrot.slane %v5793, 1
  %v6040 = vsel %vm5965, %v6037, %v6039
  %v6041 = vrot.slane %v5794, 1
  %v6042 = vrot.slane %v5795, 1
  %v6043 = vsel %vm5965, %v6041, %v6042
  %v6044 = vrot.slane %v5796, 1
  %v6045 = vsel %vm5965, %v6042, %v6044
  %v6046 = vrot.slane %v5797, 1
  %v6047 = vrot.slane %v5798, 1
  %v6048 = vsel %vm5965, %v6046, %v6047
  %v6049 = vrot.slane %v5799, 1
  %v6050 = vsel %vm5965, %v6047, %v6049
  %v6051 = vrot.slane %v5800, 1
  %v6052 = vrot.slane %v5801, 1
  %v6053 = vsel %vm5965, %v6051, %v6052
  %v6054 = vrot.slane %v5802, 1
  %v6055 = vsel %vm5965, %v6052, %v6054
  %v6056 = vrot.slane %v5803, 1
  %v6057 = vrot.slane %v5804, 1
  %v6058 = vsel %vm5965, %v6056, %v6057
  %v6059 = vrot.slane %v5805, 1
  %v6060 = vsel %vm5965, %v6057, %v6059
  %v6061 = vrot.slane %v5806, 1
  %v6062 = vrot.slane %v5807, 1
  %v6063 = vsel %vm5965, %v6061, %v6062
  %v6064 = vrot.slane %v5808, 1
  %v6065 = vsel %vm5965, %v6062, %v6064
  %v6066 = vrot.slane %v5809, 1
  %v6067 = vrot.slane %v5810, 1
  %v6068 = vsel %vm5965, %v6066, %v6067
  %v6069 = vrot.slane %v5811, 1
  %v6070 = vsel %vm5965, %v6067, %v6069
  %v6071 = vrot.slane %v5812, 1
  %v6072 = vrot.slane %v5813, 1
  %v6073 = vsel %vm5965, %v6071, %v6072
  %v6074 = vrot.slane %v5814, 1
  %v6075 = vsel %vm5965, %v6072, %v6074
  %v6076 = vrot.slane %v5815, 1
  %v6077 = vrot.slane %v5816, 1
  %v6078 = vsel %vm5965, %v6076, %v6077
  %v6079 = vrot.slane %v5817, 1
  %v6080 = vsel %vm5965, %v6077, %v6079
  %v6081 = vrot.slane %v5818, 1
  %v6082 = vrot.slane %v5819, 1
  %v6083 = vsel %vm5965, %v6081, %v6082
  %v6084 = vrot.slane %v5820, 1
  %v6085 = vsel %vm5965, %v6082, %v6084
  %v6086 = vrot.slane %v5821, 1
  %v6087 = vrot.slane %v5822, 1
  %v6088 = vsel %vm5965, %v6086, %v6087
  %v6089 = vrot.slane %v5823, 1
  %v6090 = vsel %vm5965, %v6087, %v6089
  %v6091 = vrot.slane %v5824, 1
  %v6092 = vrot.slane %v5825, 1
  %v6093 = vsel %vm5965, %v6091, %v6092
  %v6094 = vrot.slane %v5826, 1
  %v6095 = vsel %vm5965, %v6092, %v6094
  %v6096 = vrot.slane %v5827, 1
  %v6097 = vrot.slane %v5828, 1
  %v6098 = vsel %vm5965, %v6096, %v6097
  %v6099 = vrot.slane %v5829, 1
  %v6100 = vsel %vm5965, %v6097, %v6099
  %v6101 = vrot.slane %v5830, 1
  %v6102 = vrot.slane %v5831, 1
  %v6103 = vsel %vm5965, %v6101, %v6102
  %v6104 = vrot.slane %v5832, 1
  %v6105 = vsel %vm5965, %v6102, %v6104
  %v6106 = vrot.slane %v5833, 1
  %v6107 = vrot.slane %v5834, 1
  %v6108 = vsel %vm5965, %v6106, %v6107
  %v6109 = vrot.slane %v5835, 1
  %v6110 = vsel %vm5965, %v6107, %v6109
  %v6111 = vrot.slane %v5836, 1
  %v6112 = vrot.slane %v5837, 1
  %v6113 = vsel %vm5965, %v6111, %v6112
  %v6114 = vrot.slane %v5838, 1
  %v6115 = vsel %vm5965, %v6112, %v6114
  %v6116 = vrot.slane %v5839, 1
  %v6117 = vrot.slane %v5840, 1
  %v6118 = vsel %vm5965, %v6116, %v6117
  %v6119 = vrot.slane %v5841, 1
  %v6120 = vsel %vm5965, %v6117, %v6119
  %v6121 = vrot.slane %v5842, 1
  %v6122 = vrot.slane %v5843, 1
  %v6123 = vsel %vm5965, %v6121, %v6122
  %v6124 = vrot.slane %v5844, 1
  %v6125 = vsel %vm5965, %v6122, %v6124
  %v6126 = vrot.slane %v5845, 1
  %v6127 = vrot.slane %v5846, 1
  %v6128 = vsel %vm5965, %v6126, %v6127
  %v6129 = vrot.slane %v5847, 1
  %v6130 = vsel %vm5965, %v6127, %v6129
  %v6131 = vrot.slane %v5848, 1
  %v6132 = vrot.slane %v5849, 1
  %v6133 = vsel %vm5965, %v6131, %v6132
  %v6134 = vrot.slane %v5850, 1
  %v6135 = vsel %vm5965, %v6132, %v6134
  %v6136 = vrot.slane %v5851, 1
  %v6137 = vrot.slane %v5852, 1
  %v6138 = vsel %vm5965, %v6136, %v6137
  %v6139 = vrot.slane %v5853, 1
  %v6140 = vsel %vm5965, %v6137, %v6139
  %v6141 = vrot.slane %v5854, 1
  %v6142 = vrot.slane %v5855, 1
  %v6143 = vsel %vm5965, %v6141, %v6142
  %v6144 = vrot.slane %v5856, 1
  %v6145 = vsel %vm5965, %v6142, %v6144
  %v6218 = vadd.f32 %v5749, %v5968
  %v6219 = vadd.f32 %v5750, %v5970
  %v6220 = vadd.f32 %v5752, %v5973
  %v6221 = vadd.f32 %v5753, %v5975
  %v6222 = vadd.f32 %v5755, %v5978
  %v6223 = vadd.f32 %v5756, %v5980
  %v6224 = vadd.f32 %v5758, %v5983
  %v6225 = vadd.f32 %v5759, %v5985
  %v6226 = vadd.f32 %v5761, %v5988
  %v6227 = vadd.f32 %v5762, %v5990
  %v6228 = vadd.f32 %v5764, %v5993
  %v6229 = vadd.f32 %v5765, %v5995
  %v6230 = vadd.f32 %v5767, %v5998
  %v6231 = vadd.f32 %v5768, %v6000
  %v6232 = vadd.f32 %v5770, %v6003
  %v6233 = vadd.f32 %v5771, %v6005
  %v6234 = vadd.f32 %v5773, %v6008
  %v6235 = vadd.f32 %v5774, %v6010
  %v6236 = vadd.f32 %v5776, %v6013
  %v6237 = vadd.f32 %v5777, %v6015
  %v6238 = vadd.f32 %v5779, %v6018
  %v6239 = vadd.f32 %v5780, %v6020
  %v6240 = vadd.f32 %v5782, %v6023
  %v6241 = vadd.f32 %v5783, %v6025
  %v6242 = vadd.f32 %v5785, %v6028
  %v6243 = vadd.f32 %v5786, %v6030
  %v6244 = vadd.f32 %v5788, %v6033
  %v6245 = vadd.f32 %v5789, %v6035
  %v6246 = vadd.f32 %v5791, %v6038
  %v6247 = vadd.f32 %v5792, %v6040
  %v6248 = vadd.f32 %v5794, %v6043
  %v6249 = vadd.f32 %v5795, %v6045
  %v6250 = vadd.f32 %v5797, %v6048
  %v6251 = vadd.f32 %v5798, %v6050
  %v6252 = vadd.f32 %v5800, %v6053
  %v6253 = vadd.f32 %v5801, %v6055
  %v6254 = vadd.f32 %v5803, %v6058
  %v6255 = vadd.f32 %v5804, %v6060
  %v6256 = vadd.f32 %v5806, %v6063
  %v6257 = vadd.f32 %v5807, %v6065
  %v6258 = vadd.f32 %v5809, %v6068
  %v6259 = vadd.f32 %v5810, %v6070
  %v6260 = vadd.f32 %v5812, %v6073
  %v6261 = vadd.f32 %v5813, %v6075
  %v6262 = vadd.f32 %v5815, %v6078
  %v6263 = vadd.f32 %v5816, %v6080
  %v6264 = vadd.f32 %v5818, %v6083
  %v6265 = vadd.f32 %v5819, %v6085
  %v6266 = vadd.f32 %v5821, %v6088
  %v6267 = vadd.f32 %v5822, %v6090
  %v6268 = vadd.f32 %v5824, %v6093
  %v6269 = vadd.f32 %v5825, %v6095
  %v6270 = vadd.f32 %v5827, %v6098
  %v6271 = vadd.f32 %v5828, %v6100
  %v6272 = vadd.f32 %v5830, %v6103
  %v6273 = vadd.f32 %v5831, %v6105
  %v6274 = vadd.f32 %v5833, %v6108
  %v6275 = vadd.f32 %v5834, %v6110
  %v6276 = vadd.f32 %v5836, %v6113
  %v6277 = vadd.f32 %v5837, %v6115
  %v6278 = vadd.f32 %v5839, %v6118
  %v6279 = vadd.f32 %v5840, %v6120
  %v6280 = vadd.f32 %v5842, %v6123
  %v6281 = vadd.f32 %v5843, %v6125
  %v6282 = vadd.f32 %v5845, %v6128
  %v6283 = vadd.f32 %v5846, %v6130
  %v6284 = vadd.f32 %v5848, %v6133
  %v6285 = vadd.f32 %v5849, %v6135
  %v6286 = vadd.f32 %v5851, %v6138
  %v6287 = vadd.f32 %v5852, %v6140
  %v6288 = vadd.f32 %v5854, %v6143
  %v6289 = vadd.f32 %v5855, %v6145
  %vm6290 = vcmask 1045504
  %v6291 = vrot.slane %v5749, 2
  %v6292 = vrot.slane %v5750, 2
  %v6293 = vsel %vm6290, %v6291, %v6292
  %v6294 = vrot.slane %v5751, 2
  %v6295 = vsel %vm6290, %v6292, %v6294
  %v6296 = vrot.slane %v5752, 2
  %v6297 = vrot.slane %v5753, 2
  %v6298 = vsel %vm6290, %v6296, %v6297
  %v6299 = vrot.slane %v5754, 2
  %v6300 = vsel %vm6290, %v6297, %v6299
  %v6301 = vrot.slane %v5755, 2
  %v6302 = vrot.slane %v5756, 2
  %v6303 = vsel %vm6290, %v6301, %v6302
  %v6304 = vrot.slane %v5757, 2
  %v6305 = vsel %vm6290, %v6302, %v6304
  %v6306 = vrot.slane %v5758, 2
  %v6307 = vrot.slane %v5759, 2
  %v6308 = vsel %vm6290, %v6306, %v6307
  %v6309 = vrot.slane %v5760, 2
  %v6310 = vsel %vm6290, %v6307, %v6309
  %v6311 = vrot.slane %v5761, 2
  %v6312 = vrot.slane %v5762, 2
  %v6313 = vsel %vm6290, %v6311, %v6312
  %v6314 = vrot.slane %v5763, 2
  %v6315 = vsel %vm6290, %v6312, %v6314
  %v6316 = vrot.slane %v5764, 2
  %v6317 = vrot.slane %v5765, 2
  %v6318 = vsel %vm6290, %v6316, %v6317
  %v6319 = vrot.slane %v5766, 2
  %v6320 = vsel %vm6290, %v6317, %v6319
  %v6321 = vrot.slane %v5767, 2
  %v6322 = vrot.slane %v5768, 2
  %v6323 = vsel %vm6290, %v6321, %v6322
  %v6324 = vrot.slane %v5769, 2
  %v6325 = vsel %vm6290, %v6322, %v6324
  %v6326 = vrot.slane %v5770, 2
  %v6327 = vrot.slane %v5771, 2
  %v6328 = vsel %vm6290, %v6326, %v6327
  %v6329 = vrot.slane %v5772, 2
  %v6330 = vsel %vm6290, %v6327, %v6329
  %v6331 = vrot.slane %v5773, 2
  %v6332 = vrot.slane %v5774, 2
  %v6333 = vsel %vm6290, %v6331, %v6332
  %v6334 = vrot.slane %v5775, 2
  %v6335 = vsel %vm6290, %v6332, %v6334
  %v6336 = vrot.slane %v5776, 2
  %v6337 = vrot.slane %v5777, 2
  %v6338 = vsel %vm6290, %v6336, %v6337
  %v6339 = vrot.slane %v5778, 2
  %v6340 = vsel %vm6290, %v6337, %v6339
  %v6341 = vrot.slane %v5779, 2
  %v6342 = vrot.slane %v5780, 2
  %v6343 = vsel %vm6290, %v6341, %v6342
  %v6344 = vrot.slane %v5781, 2
  %v6345 = vsel %vm6290, %v6342, %v6344
  %v6346 = vrot.slane %v5782, 2
  %v6347 = vrot.slane %v5783, 2
  %v6348 = vsel %vm6290, %v6346, %v6347
  %v6349 = vrot.slane %v5784, 2
  %v6350 = vsel %vm6290, %v6347, %v6349
  %v6351 = vrot.slane %v5785, 2
  %v6352 = vrot.slane %v5786, 2
  %v6353 = vsel %vm6290, %v6351, %v6352
  %v6354 = vrot.slane %v5787, 2
  %v6355 = vsel %vm6290, %v6352, %v6354
  %v6356 = vrot.slane %v5788, 2
  %v6357 = vrot.slane %v5789, 2
  %v6358 = vsel %vm6290, %v6356, %v6357
  %v6359 = vrot.slane %v5790, 2
  %v6360 = vsel %vm6290, %v6357, %v6359
  %v6361 = vrot.slane %v5791, 2
  %v6362 = vrot.slane %v5792, 2
  %v6363 = vsel %vm6290, %v6361, %v6362
  %v6364 = vrot.slane %v5793, 2
  %v6365 = vsel %vm6290, %v6362, %v6364
  %v6366 = vrot.slane %v5794, 2
  %v6367 = vrot.slane %v5795, 2
  %v6368 = vsel %vm6290, %v6366, %v6367
  %v6369 = vrot.slane %v5796, 2
  %v6370 = vsel %vm6290, %v6367, %v6369
  %v6371 = vrot.slane %v5797, 2
  %v6372 = vrot.slane %v5798, 2
  %v6373 = vsel %vm6290, %v6371, %v6372
  %v6374 = vrot.slane %v5799, 2
  %v6375 = vsel %vm6290, %v6372, %v6374
  %v6376 = vrot.slane %v5800, 2
  %v6377 = vrot.slane %v5801, 2
  %v6378 = vsel %vm6290, %v6376, %v6377
  %v6379 = vrot.slane %v5802, 2
  %v6380 = vsel %vm6290, %v6377, %v6379
  %v6381 = vrot.slane %v5803, 2
  %v6382 = vrot.slane %v5804, 2
  %v6383 = vsel %vm6290, %v6381, %v6382
  %v6384 = vrot.slane %v5805, 2
  %v6385 = vsel %vm6290, %v6382, %v6384
  %v6386 = vrot.slane %v5806, 2
  %v6387 = vrot.slane %v5807, 2
  %v6388 = vsel %vm6290, %v6386, %v6387
  %v6389 = vrot.slane %v5808, 2
  %v6390 = vsel %vm6290, %v6387, %v6389
  %v6391 = vrot.slane %v5809, 2
  %v6392 = vrot.slane %v5810, 2
  %v6393 = vsel %vm6290, %v6391, %v6392
  %v6394 = vrot.slane %v5811, 2
  %v6395 = vsel %vm6290, %v6392, %v6394
  %v6396 = vrot.slane %v5812, 2
  %v6397 = vrot.slane %v5813, 2
  %v6398 = vsel %vm6290, %v6396, %v6397
  %v6399 = vrot.slane %v5814, 2
  %v6400 = vsel %vm6290, %v6397, %v6399
  %v6401 = vrot.slane %v5815, 2
  %v6402 = vrot.slane %v5816, 2
  %v6403 = vsel %vm6290, %v6401, %v6402
  %v6404 = vrot.slane %v5817, 2
  %v6405 = vsel %vm6290, %v6402, %v6404
  %v6406 = vrot.slane %v5818, 2
  %v6407 = vrot.slane %v5819, 2
  %v6408 = vsel %vm6290, %v6406, %v6407
  %v6409 = vrot.slane %v5820, 2
  %v6410 = vsel %vm6290, %v6407, %v6409
  %v6411 = vrot.slane %v5821, 2
  %v6412 = vrot.slane %v5822, 2
  %v6413 = vsel %vm6290, %v6411, %v6412
  %v6414 = vrot.slane %v5823, 2
  %v6415 = vsel %vm6290, %v6412, %v6414
  %v6416 = vrot.slane %v5824, 2
  %v6417 = vrot.slane %v5825, 2
  %v6418 = vsel %vm6290, %v6416, %v6417
  %v6419 = vrot.slane %v5826, 2
  %v6420 = vsel %vm6290, %v6417, %v6419
  %v6421 = vrot.slane %v5827, 2
  %v6422 = vrot.slane %v5828, 2
  %v6423 = vsel %vm6290, %v6421, %v6422
  %v6424 = vrot.slane %v5829, 2
  %v6425 = vsel %vm6290, %v6422, %v6424
  %v6426 = vrot.slane %v5830, 2
  %v6427 = vrot.slane %v5831, 2
  %v6428 = vsel %vm6290, %v6426, %v6427
  %v6429 = vrot.slane %v5832, 2
  %v6430 = vsel %vm6290, %v6427, %v6429
  %v6431 = vrot.slane %v5833, 2
  %v6432 = vrot.slane %v5834, 2
  %v6433 = vsel %vm6290, %v6431, %v6432
  %v6434 = vrot.slane %v5835, 2
  %v6435 = vsel %vm6290, %v6432, %v6434
  %v6436 = vrot.slane %v5836, 2
  %v6437 = vrot.slane %v5837, 2
  %v6438 = vsel %vm6290, %v6436, %v6437
  %v6439 = vrot.slane %v5838, 2
  %v6440 = vsel %vm6290, %v6437, %v6439
  %v6441 = vrot.slane %v5839, 2
  %v6442 = vrot.slane %v5840, 2
  %v6443 = vsel %vm6290, %v6441, %v6442
  %v6444 = vrot.slane %v5841, 2
  %v6445 = vsel %vm6290, %v6442, %v6444
  %v6446 = vrot.slane %v5842, 2
  %v6447 = vrot.slane %v5843, 2
  %v6448 = vsel %vm6290, %v6446, %v6447
  %v6449 = vrot.slane %v5844, 2
  %v6450 = vsel %vm6290, %v6447, %v6449
  %v6451 = vrot.slane %v5845, 2
  %v6452 = vrot.slane %v5846, 2
  %v6453 = vsel %vm6290, %v6451, %v6452
  %v6454 = vrot.slane %v5847, 2
  %v6455 = vsel %vm6290, %v6452, %v6454
  %v6456 = vrot.slane %v5848, 2
  %v6457 = vrot.slane %v5849, 2
  %v6458 = vsel %vm6290, %v6456, %v6457
  %v6459 = vrot.slane %v5850, 2
  %v6460 = vsel %vm6290, %v6457, %v6459
  %v6461 = vrot.slane %v5851, 2
  %v6462 = vrot.slane %v5852, 2
  %v6463 = vsel %vm6290, %v6461, %v6462
  %v6464 = vrot.slane %v5853, 2
  %v6465 = vsel %vm6290, %v6462, %v6464
  %v6466 = vrot.slane %v5854, 2
  %v6467 = vrot.slane %v5855, 2
  %v6468 = vsel %vm6290, %v6466, %v6467
  %v6469 = vrot.slane %v5856, 2
  %v6470 = vsel %vm6290, %v6467, %v6469
  %v6543 = vadd.f32 %v6218, %v6293
  %v6544 = vadd.f32 %v6219, %v6295
  %v6545 = vadd.f32 %v6220, %v6298
  %v6546 = vadd.f32 %v6221, %v6300
  %v6547 = vadd.f32 %v6222, %v6303
  %v6548 = vadd.f32 %v6223, %v6305
  %v6549 = vadd.f32 %v6224, %v6308
  %v6550 = vadd.f32 %v6225, %v6310
  %v6551 = vadd.f32 %v6226, %v6313
  %v6552 = vadd.f32 %v6227, %v6315
  %v6553 = vadd.f32 %v6228, %v6318
  %v6554 = vadd.f32 %v6229, %v6320
  %v6555 = vadd.f32 %v6230, %v6323
  %v6556 = vadd.f32 %v6231, %v6325
  %v6557 = vadd.f32 %v6232, %v6328
  %v6558 = vadd.f32 %v6233, %v6330
  %v6559 = vadd.f32 %v6234, %v6333
  %v6560 = vadd.f32 %v6235, %v6335
  %v6561 = vadd.f32 %v6236, %v6338
  %v6562 = vadd.f32 %v6237, %v6340
  %v6563 = vadd.f32 %v6238, %v6343
  %v6564 = vadd.f32 %v6239, %v6345
  %v6565 = vadd.f32 %v6240, %v6348
  %v6566 = vadd.f32 %v6241, %v6350
  %v6567 = vadd.f32 %v6242, %v6353
  %v6568 = vadd.f32 %v6243, %v6355
  %v6569 = vadd.f32 %v6244, %v6358
  %v6570 = vadd.f32 %v6245, %v6360
  %v6571 = vadd.f32 %v6246, %v6363
  %v6572 = vadd.f32 %v6247, %v6365
  %v6573 = vadd.f32 %v6248, %v6368
  %v6574 = vadd.f32 %v6249, %v6370
  %v6575 = vadd.f32 %v6250, %v6373
  %v6576 = vadd.f32 %v6251, %v6375
  %v6577 = vadd.f32 %v6252, %v6378
  %v6578 = vadd.f32 %v6253, %v6380
  %v6579 = vadd.f32 %v6254, %v6383
  %v6580 = vadd.f32 %v6255, %v6385
  %v6581 = vadd.f32 %v6256, %v6388
  %v6582 = vadd.f32 %v6257, %v6390
  %v6583 = vadd.f32 %v6258, %v6393
  %v6584 = vadd.f32 %v6259, %v6395
  %v6585 = vadd.f32 %v6260, %v6398
  %v6586 = vadd.f32 %v6261, %v6400
  %v6587 = vadd.f32 %v6262, %v6403
  %v6588 = vadd.f32 %v6263, %v6405
  %v6589 = vadd.f32 %v6264, %v6408
  %v6590 = vadd.f32 %v6265, %v6410
  %v6591 = vadd.f32 %v6266, %v6413
  %v6592 = vadd.f32 %v6267, %v6415
  %v6593 = vadd.f32 %v6268, %v6418
  %v6594 = vadd.f32 %v6269, %v6420
  %v6595 = vadd.f32 %v6270, %v6423
  %v6596 = vadd.f32 %v6271, %v6425
  %v6597 = vadd.f32 %v6272, %v6428
  %v6598 = vadd.f32 %v6273, %v6430
  %v6599 = vadd.f32 %v6274, %v6433
  %v6600 = vadd.f32 %v6275, %v6435
  %v6601 = vadd.f32 %v6276, %v6438
  %v6602 = vadd.f32 %v6277, %v6440
  %v6603 = vadd.f32 %v6278, %v6443
  %v6604 = vadd.f32 %v6279, %v6445
  %v6605 = vadd.f32 %v6280, %v6448
  %v6606 = vadd.f32 %v6281, %v6450
  %v6607 = vadd.f32 %v6282, %v6453
  %v6608 = vadd.f32 %v6283, %v6455
  %v6609 = vadd.f32 %v6284, %v6458
  %v6610 = vadd.f32 %v6285, %v6460
  %v6611 = vadd.f32 %v6286, %v6463
  %v6612 = vadd.f32 %v6287, %v6465
  %v6613 = vadd.f32 %v6288, %v6468
  %v6614 = vadd.f32 %v6289, %v6470
  %v6615 = vadd.f32 %v6543, %v6545
  %v6616 = vadd.f32 %v6544, %v6546
  %v6617 = vadd.f32 %v6545, %v6547
  %v6618 = vadd.f32 %v6546, %v6548
  %v6619 = vadd.f32 %v6547, %v6549
  %v6620 = vadd.f32 %v6548, %v6550
  %v6621 = vadd.f32 %v6549, %v6551
  %v6622 = vadd.f32 %v6550, %v6552
  %v6623 = vadd.f32 %v6551, %v6553
  %v6624 = vadd.f32 %v6552, %v6554
  %v6625 = vadd.f32 %v6553, %v6555
  %v6626 = vadd.f32 %v6554, %v6556
  %v6627 = vadd.f32 %v6555, %v6557
  %v6628 = vadd.f32 %v6556, %v6558
  %v6629 = vadd.f32 %v6557, %v6559
  %v6630 = vadd.f32 %v6558, %v6560
  %v6631 = vadd.f32 %v6559, %v6561
  %v6632 = vadd.f32 %v6560, %v6562
  %v6633 = vadd.f32 %v6561, %v6563
  %v6634 = vadd.f32 %v6562, %v6564
  %v6635 = vadd.f32 %v6563, %v6565
  %v6636 = vadd.f32 %v6564, %v6566
  %v6637 = vadd.f32 %v6565, %v6567
  %v6638 = vadd.f32 %v6566, %v6568
  %v6639 = vadd.f32 %v6567, %v6569
  %v6640 = vadd.f32 %v6568, %v6570
  %v6641 = vadd.f32 %v6569, %v6571
  %v6642 = vadd.f32 %v6570, %v6572
  %v6643 = vadd.f32 %v6571, %v6573
  %v6644 = vadd.f32 %v6572, %v6574
  %v6645 = vadd.f32 %v6573, %v6575
  %v6646 = vadd.f32 %v6574, %v6576
  %v6647 = vadd.f32 %v6579, %v6581
  %v6648 = vadd.f32 %v6580, %v6582
  %v6649 = vadd.f32 %v6581, %v6583
  %v6650 = vadd.f32 %v6582, %v6584
  %v6651 = vadd.f32 %v6583, %v6585
  %v6652 = vadd.f32 %v6584, %v6586
  %v6653 = vadd.f32 %v6585, %v6587
  %v6654 = vadd.f32 %v6586, %v6588
  %v6655 = vadd.f32 %v6587, %v6589
  %v6656 = vadd.f32 %v6588, %v6590
  %v6657 = vadd.f32 %v6589, %v6591
  %v6658 = vadd.f32 %v6590, %v6592
  %v6659 = vadd.f32 %v6591, %v6593
  %v6660 = vadd.f32 %v6592, %v6594
  %v6661 = vadd.f32 %v6593, %v6595
  %v6662 = vadd.f32 %v6594, %v6596
  %v6663 = vadd.f32 %v6595, %v6597
  %v6664 = vadd.f32 %v6596, %v6598
  %v6665 = vadd.f32 %v6597, %v6599
  %v6666 = vadd.f32 %v6598, %v6600
  %v6667 = vadd.f32 %v6599, %v6601
  %v6668 = vadd.f32 %v6600, %v6602
  %v6669 = vadd.f32 %v6601, %v6603
  %v6670 = vadd.f32 %v6602, %v6604
  %v6671 = vadd.f32 %v6603, %v6605
  %v6672 = vadd.f32 %v6604, %v6606
  %v6673 = vadd.f32 %v6605, %v6607
  %v6674 = vadd.f32 %v6606, %v6608
  %v6675 = vadd.f32 %v6607, %v6609
  %v6676 = vadd.f32 %v6608, %v6610
  %v6677 = vadd.f32 %v6609, %v6611
  %v6678 = vadd.f32 %v6610, %v6612
  %v6679 = vadd.f32 %v6615, %v6547
  %v6680 = vadd.f32 %v6616, %v6548
  %v6681 = vadd.f32 %v6617, %v6549
  %v6682 = vadd.f32 %v6618, %v6550
  %v6683 = vadd.f32 %v6619, %v6551
  %v6684 = vadd.f32 %v6620, %v6552
  %v6685 = vadd.f32 %v6621, %v6553
  %v6686 = vadd.f32 %v6622, %v6554
  %v6687 = vadd.f32 %v6623, %v6555
  %v6688 = vadd.f32 %v6624, %v6556
  %v6689 = vadd.f32 %v6625, %v6557
  %v6690 = vadd.f32 %v6626, %v6558
  %v6691 = vadd.f32 %v6627, %v6559
  %v6692 = vadd.f32 %v6628, %v6560
  %v6693 = vadd.f32 %v6629, %v6561
  %v6694 = vadd.f32 %v6630, %v6562
  %v6695 = vadd.f32 %v6631, %v6563
  %v6696 = vadd.f32 %v6632, %v6564
  %v6697 = vadd.f32 %v6633, %v6565
  %v6698 = vadd.f32 %v6634, %v6566
  %v6699 = vadd.f32 %v6635, %v6567
  %v6700 = vadd.f32 %v6636, %v6568
  %v6701 = vadd.f32 %v6637, %v6569
  %v6702 = vadd.f32 %v6638, %v6570
  %v6703 = vadd.f32 %v6639, %v6571
  %v6704 = vadd.f32 %v6640, %v6572
  %v6705 = vadd.f32 %v6641, %v6573
  %v6706 = vadd.f32 %v6642, %v6574
  %v6707 = vadd.f32 %v6643, %v6575
  %v6708 = vadd.f32 %v6644, %v6576
  %v6709 = vadd.f32 %v6645, %v6577
  %v6710 = vadd.f32 %v6646, %v6578
  %v6711 = vadd.f32 %v6647, %v6583
  %v6712 = vadd.f32 %v6648, %v6584
  %v6713 = vadd.f32 %v6649, %v6585
  %v6714 = vadd.f32 %v6650, %v6586
  %v6715 = vadd.f32 %v6651, %v6587
  %v6716 = vadd.f32 %v6652, %v6588
  %v6717 = vadd.f32 %v6653, %v6589
  %v6718 = vadd.f32 %v6654, %v6590
  %v6719 = vadd.f32 %v6655, %v6591
  %v6720 = vadd.f32 %v6656, %v6592
  %v6721 = vadd.f32 %v6657, %v6593
  %v6722 = vadd.f32 %v6658, %v6594
  %v6723 = vadd.f32 %v6659, %v6595
  %v6724 = vadd.f32 %v6660, %v6596
  %v6725 = vadd.f32 %v6661, %v6597
  %v6726 = vadd.f32 %v6662, %v6598
  %v6727 = vadd.f32 %v6663, %v6599
  %v6728 = vadd.f32 %v6664, %v6600
  %v6729 = vadd.f32 %v6665, %v6601
  %v6730 = vadd.f32 %v6666, %v6602
  %v6731 = vadd.f32 %v6667, %v6603
  %v6732 = vadd.f32 %v6668, %v6604
  %v6733 = vadd.f32 %v6669, %v6605
  %v6734 = vadd.f32 %v6670, %v6606
  %v6735 = vadd.f32 %v6671, %v6607
  %v6736 = vadd.f32 %v6672, %v6608
  %v6737 = vadd.f32 %v6673, %v6609
  %v6738 = vadd.f32 %v6674, %v6610
  %v6739 = vadd.f32 %v6675, %v6611
  %v6740 = vadd.f32 %v6676, %v6612
  %v6741 = vadd.f32 %v6677, %v6613
  %v6742 = vadd.f32 %v6678, %v6614
  %v6743 = vld [vmem:[%s3] sm:$0xff]
  %v6744 = vld [vmem:[%s3 + $0x8] sm:$0xff]
  %v6745 = vlaneseq
  %v6746 = vshrl.u32 %v6745, 7
  %v6747 = vsub.s32 0, %v6746
  %v6748 = vrot.slane %v6743, %v6747
  %6750 = vbcast.lane.b32.xlu0 %v6748, 256
  %v6751 = vpop.permute.xlu0 %6750
  %s6753 = sor.u32 256, 8
  %6754 = vbcast.lane.b32.xlu0 %v6748, %s6753
  %v6755 = vpop.permute.xlu0 %6754
  %v6756 = vlaneseq
  %v6757 = vshrl.u32 %v6756, 7
  %v6758 = vsub.s32 1, %v6757
  %v6759 = vrot.slane %v6743, %v6758
  %6761 = vbcast.lane.b32.xlu0 %v6759, 256
  %v6762 = vpop.permute.xlu0 %6761
  %s6764 = sor.u32 256, 8
  %6765 = vbcast.lane.b32.xlu0 %v6759, %s6764
  %v6766 = vpop.permute.xlu0 %6765
  %v6767 = vlaneseq
  %v6768 = vshrl.u32 %v6767, 7
  %v6769 = vsub.s32 2, %v6768
  %v6770 = vrot.slane %v6743, %v6769
  %6772 = vbcast.lane.b32.xlu0 %v6770, 256
  %v6773 = vpop.permute.xlu0 %6772
  %s6775 = sor.u32 256, 8
  %6776 = vbcast.lane.b32.xlu0 %v6770, %s6775
  %v6777 = vpop.permute.xlu0 %6776
  %v6778 = vlaneseq
  %v6779 = vshrl.u32 %v6778, 7
  %v6780 = vsub.s32 3, %v6779
  %v6781 = vrot.slane %v6743, %v6780
  %6783 = vbcast.lane.b32.xlu0 %v6781, 256
  %v6784 = vpop.permute.xlu0 %6783
  %s6786 = sor.u32 256, 8
  %6787 = vbcast.lane.b32.xlu0 %v6781, %s6786
  %v6788 = vpop.permute.xlu0 %6787
  %v6789 = vlaneseq
  %v6790 = vshrl.u32 %v6789, 7
  %v6791 = vsub.s32 4, %v6790
  %v6792 = vrot.slane %v6743, %v6791
  %6794 = vbcast.lane.b32.xlu0 %v6792, 256
  %v6795 = vpop.permute.xlu0 %6794
  %s6797 = sor.u32 256, 8
  %6798 = vbcast.lane.b32.xlu0 %v6792, %s6797
  %v6799 = vpop.permute.xlu0 %6798
  %v6800 = vlaneseq
  %v6801 = vshrl.u32 %v6800, 7
  %v6802 = vsub.s32 5, %v6801
  %v6803 = vrot.slane %v6743, %v6802
  %6805 = vbcast.lane.b32.xlu0 %v6803, 256
  %v6806 = vpop.permute.xlu0 %6805
  %s6808 = sor.u32 256, 8
  %6809 = vbcast.lane.b32.xlu0 %v6803, %s6808
  %v6810 = vpop.permute.xlu0 %6809
  %v6811 = vlaneseq
  %v6812 = vshrl.u32 %v6811, 7
  %v6813 = vsub.s32 6, %v6812
  %v6814 = vrot.slane %v6743, %v6813
  %6816 = vbcast.lane.b32.xlu0 %v6814, 256
  %v6817 = vpop.permute.xlu0 %6816
  %s6819 = sor.u32 256, 8
  %6820 = vbcast.lane.b32.xlu0 %v6814, %s6819
  %v6821 = vpop.permute.xlu0 %6820
  %v6822 = vlaneseq
  %v6823 = vshrl.u32 %v6822, 7
  %v6824 = vsub.s32 7, %v6823
  %v6825 = vrot.slane %v6743, %v6824
  %6827 = vbcast.lane.b32.xlu0 %v6825, 256
  %v6828 = vpop.permute.xlu0 %6827
  %s6830 = sor.u32 256, 8
  %6831 = vbcast.lane.b32.xlu0 %v6825, %s6830
  %v6832 = vpop.permute.xlu0 %6831
  %v6833 = vlaneseq
  %v6834 = vshrl.u32 %v6833, 7
  %v6835 = vsub.s32 0, %v6834
  %v6836 = vrot.slane %v6744, %v6835
  %6838 = vbcast.lane.b32.xlu0 %v6836, 256
  %v6839 = vpop.permute.xlu0 %6838
  %s6841 = sor.u32 256, 8
  %6842 = vbcast.lane.b32.xlu0 %v6836, %s6841
  %v6843 = vpop.permute.xlu0 %6842
  %v6844 = vlaneseq
  %v6845 = vshrl.u32 %v6844, 7
  %v6846 = vsub.s32 1, %v6845
  %v6847 = vrot.slane %v6744, %v6846
  %6849 = vbcast.lane.b32.xlu0 %v6847, 256
  %v6850 = vpop.permute.xlu0 %6849
  %s6852 = sor.u32 256, 8
  %6853 = vbcast.lane.b32.xlu0 %v6847, %s6852
  %v6854 = vpop.permute.xlu0 %6853
  %v6855 = vlaneseq
  %v6856 = vshrl.u32 %v6855, 7
  %v6857 = vsub.s32 2, %v6856
  %v6858 = vrot.slane %v6744, %v6857
  %6860 = vbcast.lane.b32.xlu0 %v6858, 256
  %v6861 = vpop.permute.xlu0 %6860
  %s6863 = sor.u32 256, 8
  %6864 = vbcast.lane.b32.xlu0 %v6858, %s6863
  %v6865 = vpop.permute.xlu0 %6864
  %v6866 = vlaneseq
  %v6867 = vshrl.u32 %v6866, 7
  %v6868 = vsub.s32 3, %v6867
  %v6869 = vrot.slane %v6744, %v6868
  %6871 = vbcast.lane.b32.xlu0 %v6869, 256
  %v6872 = vpop.permute.xlu0 %6871
  %s6874 = sor.u32 256, 8
  %6875 = vbcast.lane.b32.xlu0 %v6869, %s6874
  %v6876 = vpop.permute.xlu0 %6875
  %v6877 = vlaneseq
  %v6878 = vshrl.u32 %v6877, 7
  %v6879 = vsub.s32 4, %v6878
  %v6880 = vrot.slane %v6744, %v6879
  %6882 = vbcast.lane.b32.xlu0 %v6880, 256
  %v6883 = vpop.permute.xlu0 %6882
  %s6885 = sor.u32 256, 8
  %6886 = vbcast.lane.b32.xlu0 %v6880, %s6885
  %v6887 = vpop.permute.xlu0 %6886
  %v6888 = vlaneseq
  %v6889 = vshrl.u32 %v6888, 7
  %v6890 = vsub.s32 5, %v6889
  %v6891 = vrot.slane %v6744, %v6890
  %6893 = vbcast.lane.b32.xlu0 %v6891, 256
  %v6894 = vpop.permute.xlu0 %6893
  %s6896 = sor.u32 256, 8
  %6897 = vbcast.lane.b32.xlu0 %v6891, %s6896
  %v6898 = vpop.permute.xlu0 %6897
  %v6899 = vlaneseq
  %v6900 = vshrl.u32 %v6899, 7
  %v6901 = vsub.s32 6, %v6900
  %v6902 = vrot.slane %v6744, %v6901
  %6904 = vbcast.lane.b32.xlu0 %v6902, 256
  %v6905 = vpop.permute.xlu0 %6904
  %s6907 = sor.u32 256, 8
  %6908 = vbcast.lane.b32.xlu0 %v6902, %s6907
  %v6909 = vpop.permute.xlu0 %6908
  %v6910 = vlaneseq
  %v6911 = vshrl.u32 %v6910, 7
  %v6912 = vsub.s32 7, %v6911
  %v6913 = vrot.slane %v6744, %v6912
  %6915 = vbcast.lane.b32.xlu0 %v6913, 256
  %v6916 = vpop.permute.xlu0 %6915
  %s6918 = sor.u32 256, 8
  %6919 = vbcast.lane.b32.xlu0 %v6913, %s6918
  %v6920 = vpop.permute.xlu0 %6919
  %v6921 = vmul.f32 %v6679, %v6751
  %v6922 = vmul.f32 %v6680, %v6755
  %v6923 = vmul.f32 %v6681, %v6762
  %v6924 = vmul.f32 %v6682, %v6766
  %v6925 = vmul.f32 %v6683, %v6773
  %v6926 = vmul.f32 %v6684, %v6777
  %v6927 = vmul.f32 %v6685, %v6784
  %v6928 = vmul.f32 %v6686, %v6788
  %v6929 = vmul.f32 %v6687, %v6795
  %v6930 = vmul.f32 %v6688, %v6799
  %v6931 = vmul.f32 %v6689, %v6806
  %v6932 = vmul.f32 %v6690, %v6810
  %v6933 = vmul.f32 %v6691, %v6817
  %v6934 = vmul.f32 %v6692, %v6821
  %v6935 = vmul.f32 %v6693, %v6828
  %v6936 = vmul.f32 %v6694, %v6832
  %v6937 = vmul.f32 %v6695, %v6839
  %v6938 = vmul.f32 %v6696, %v6843
  %v6939 = vmul.f32 %v6697, %v6850
  %v6940 = vmul.f32 %v6698, %v6854
  %v6941 = vmul.f32 %v6699, %v6861
  %v6942 = vmul.f32 %v6700, %v6865
  %v6943 = vmul.f32 %v6701, %v6872
  %v6944 = vmul.f32 %v6702, %v6876
  %v6945 = vmul.f32 %v6703, %v6883
  %v6946 = vmul.f32 %v6704, %v6887
  %v6947 = vmul.f32 %v6705, %v6894
  %v6948 = vmul.f32 %v6706, %v6898
  %v6949 = vmul.f32 %v6707, %v6905
  %v6950 = vmul.f32 %v6708, %v6909
  %v6951 = vmul.f32 %v6709, %v6916
  %v6952 = vmul.f32 %v6710, %v6920
  %v6953 = vmul.f32 %v6711, %v6751
  %v6954 = vmul.f32 %v6712, %v6755
  %v6955 = vmul.f32 %v6713, %v6762
  %v6956 = vmul.f32 %v6714, %v6766
  %v6957 = vmul.f32 %v6715, %v6773
  %v6958 = vmul.f32 %v6716, %v6777
  %v6959 = vmul.f32 %v6717, %v6784
  %v6960 = vmul.f32 %v6718, %v6788
  %v6961 = vmul.f32 %v6719, %v6795
  %v6962 = vmul.f32 %v6720, %v6799
  %v6963 = vmul.f32 %v6721, %v6806
  %v6964 = vmul.f32 %v6722, %v6810
  %v6965 = vmul.f32 %v6723, %v6817
  %v6966 = vmul.f32 %v6724, %v6821
  %v6967 = vmul.f32 %v6725, %v6828
  %v6968 = vmul.f32 %v6726, %v6832
  %v6969 = vmul.f32 %v6727, %v6839
  %v6970 = vmul.f32 %v6728, %v6843
  %v6971 = vmul.f32 %v6729, %v6850
  %v6972 = vmul.f32 %v6730, %v6854
  %v6973 = vmul.f32 %v6731, %v6861
  %v6974 = vmul.f32 %v6732, %v6865
  %v6975 = vmul.f32 %v6733, %v6872
  %v6976 = vmul.f32 %v6734, %v6876
  %v6977 = vmul.f32 %v6735, %v6883
  %v6978 = vmul.f32 %v6736, %v6887
  %v6979 = vmul.f32 %v6737, %v6894
  %v6980 = vmul.f32 %v6738, %v6898
  %v6981 = vmul.f32 %v6739, %v6905
  %v6982 = vmul.f32 %v6740, %v6909
  %v6983 = vmul.f32 %v6741, %v6916
  %v6984 = vmul.f32 %v6742, %v6920
  %v6985 = vadd.f32 %v17, %v4450
  %v6986 = vadd.f32 %v18, %v4451
  %v6987 = vadd.f32 %v19, %v4452
  %v6988 = vadd.f32 %v20, %v4453
  %v6989 = vadd.f32 %v21, %v4454
  %v6990 = vadd.f32 %v22, %v4455
  %v6991 = vadd.f32 %v23, %v4456
  %v6992 = vadd.f32 %v24, %v4457
  %v6993 = vadd.f32 %v25, %v4458
  %v6994 = vadd.f32 %v26, %v4459
  %v6995 = vadd.f32 %v27, %v4460
  %v6996 = vadd.f32 %v28, %v4461
  %v6997 = vadd.f32 %v29, %v4462
  %v6998 = vadd.f32 %v30, %v4463
  %v6999 = vadd.f32 %v31, %v4464
  %v7000 = vadd.f32 %v32, %v4465
  %v7001 = vadd.f32 %v33, %v4466
  %v7002 = vadd.f32 %v34, %v4467
  %v7003 = vadd.f32 %v35, %v4468
  %v7004 = vadd.f32 %v36, %v4469
  %v7005 = vadd.f32 %v37, %v4470
  %v7006 = vadd.f32 %v38, %v4471
  %v7007 = vadd.f32 %v39, %v4472
  %v7008 = vadd.f32 %v40, %v4473
  %v7009 = vadd.f32 %v41, %v4474
  %v7010 = vadd.f32 %v42, %v4475
  %v7011 = vadd.f32 %v43, %v4476
  %v7012 = vadd.f32 %v44, %v4477
  %v7013 = vadd.f32 %v45, %v4478
  %v7014 = vadd.f32 %v46, %v4479
  %v7015 = vadd.f32 %v47, %v4480
  %v7016 = vadd.f32 %v48, %v4481
  %v7017 = vadd.f32 %v49, %v4482
  %v7018 = vadd.f32 %v50, %v4483
  %v7019 = vadd.f32 %v51, %v4484
  %v7020 = vadd.f32 %v52, %v4485
  %v7021 = vadd.f32 %v53, %v4486
  %v7022 = vadd.f32 %v54, %v4487
  %v7023 = vadd.f32 %v55, %v4488
  %v7024 = vadd.f32 %v56, %v4489
  %v7025 = vadd.f32 %v57, %v4490
  %v7026 = vadd.f32 %v58, %v4491
  %v7027 = vadd.f32 %v59, %v4492
  %v7028 = vadd.f32 %v60, %v4493
  %v7029 = vadd.f32 %v61, %v4494
  %v7030 = vadd.f32 %v62, %v4495
  %v7031 = vadd.f32 %v63, %v4496
  %v7032 = vadd.f32 %v64, %v4497
  %v7033 = vadd.f32 %v65, %v4498
  %v7034 = vadd.f32 %v66, %v4499
  %v7035 = vadd.f32 %v67, %v4500
  %v7036 = vadd.f32 %v68, %v4501
  %v7037 = vadd.f32 %v69, %v4502
  %v7038 = vadd.f32 %v70, %v4503
  %v7039 = vadd.f32 %v71, %v4504
  %v7040 = vadd.f32 %v72, %v4505
  %v7041 = vadd.f32 %v73, %v4506
  %v7042 = vadd.f32 %v74, %v4507
  %v7043 = vadd.f32 %v75, %v4508
  %v7044 = vadd.f32 %v76, %v4509
  %v7045 = vadd.f32 %v77, %v4510
  %v7046 = vadd.f32 %v78, %v4511
  %v7047 = vadd.f32 %v79, %v4512
  %v7048 = vadd.f32 %v80, %v4513
  %v7049 = vadd.f32 %v6985, %v6921
  %v7050 = vadd.f32 %v6986, %v6922
  %v7051 = vadd.f32 %v6987, %v6923
  %v7052 = vadd.f32 %v6988, %v6924
  %v7053 = vadd.f32 %v6989, %v6925
  %v7054 = vadd.f32 %v6990, %v6926
  %v7055 = vadd.f32 %v6991, %v6927
  %v7056 = vadd.f32 %v6992, %v6928
  %v7057 = vadd.f32 %v6993, %v6929
  %v7058 = vadd.f32 %v6994, %v6930
  %v7059 = vadd.f32 %v6995, %v6931
  %v7060 = vadd.f32 %v6996, %v6932
  %v7061 = vadd.f32 %v6997, %v6933
  %v7062 = vadd.f32 %v6998, %v6934
  %v7063 = vadd.f32 %v6999, %v6935
  %v7064 = vadd.f32 %v7000, %v6936
  %v7065 = vadd.f32 %v7001, %v6937
  %v7066 = vadd.f32 %v7002, %v6938
  %v7067 = vadd.f32 %v7003, %v6939
  %v7068 = vadd.f32 %v7004, %v6940
  %v7069 = vadd.f32 %v7005, %v6941
  %v7070 = vadd.f32 %v7006, %v6942
  %v7071 = vadd.f32 %v7007, %v6943
  %v7072 = vadd.f32 %v7008, %v6944
  %v7073 = vadd.f32 %v7009, %v6945
  %v7074 = vadd.f32 %v7010, %v6946
  %v7075 = vadd.f32 %v7011, %v6947
  %v7076 = vadd.f32 %v7012, %v6948
  %v7077 = vadd.f32 %v7013, %v6949
  %v7078 = vadd.f32 %v7014, %v6950
  %v7079 = vadd.f32 %v7015, %v6951
  %v7080 = vadd.f32 %v7016, %v6952
  %v7081 = vadd.f32 %v7017, %v6953
  %v7082 = vadd.f32 %v7018, %v6954
  %v7083 = vadd.f32 %v7019, %v6955
  %v7084 = vadd.f32 %v7020, %v6956
  %v7085 = vadd.f32 %v7021, %v6957
  %v7086 = vadd.f32 %v7022, %v6958
  %v7087 = vadd.f32 %v7023, %v6959
  %v7088 = vadd.f32 %v7024, %v6960
  %v7089 = vadd.f32 %v7025, %v6961
  %v7090 = vadd.f32 %v7026, %v6962
  %v7091 = vadd.f32 %v7027, %v6963
  %v7092 = vadd.f32 %v7028, %v6964
  %v7093 = vadd.f32 %v7029, %v6965
  %v7094 = vadd.f32 %v7030, %v6966
  %v7095 = vadd.f32 %v7031, %v6967
  %v7096 = vadd.f32 %v7032, %v6968
  %v7097 = vadd.f32 %v7033, %v6969
  %v7098 = vadd.f32 %v7034, %v6970
  %v7099 = vadd.f32 %v7035, %v6971
  %v7100 = vadd.f32 %v7036, %v6972
  %v7101 = vadd.f32 %v7037, %v6973
  %v7102 = vadd.f32 %v7038, %v6974
  %v7103 = vadd.f32 %v7039, %v6975
  %v7104 = vadd.f32 %v7040, %v6976
  %v7105 = vadd.f32 %v7041, %v6977
  %v7106 = vadd.f32 %v7042, %v6978
  %v7107 = vadd.f32 %v7043, %v6979
  %v7108 = vadd.f32 %v7044, %v6980
  %v7109 = vadd.f32 %v7045, %v6981
  %v7110 = vadd.f32 %v7046, %v6982
  %v7111 = vadd.f32 %v7047, %v6983
  %v7112 = vadd.f32 %v7048, %v6984
  %7113 = vst.msk [vmem:[%s4] sm:$0xff] %vm81, %v7049
  %7114 = vst.msk [vmem:[%s4 + $0x8] sm:$0xff] %vm81, %v7050
  %7115 = vst.msk [vmem:[%s4 + $0x10] sm:$0xff] %vm81, %v7051
  %7116 = vst.msk [vmem:[%s4 + $0x18] sm:$0xff] %vm81, %v7052
  %7117 = vst.msk [vmem:[%s4 + $0x20] sm:$0xff] %vm81, %v7053
  %7118 = vst.msk [vmem:[%s4 + $0x28] sm:$0xff] %vm81, %v7054
  %7119 = vst.msk [vmem:[%s4 + $0x30] sm:$0xff] %vm81, %v7055
  %7120 = vst.msk [vmem:[%s4 + $0x38] sm:$0xff] %vm81, %v7056
  %7121 = vst.msk [vmem:[%s4 + $0x40] sm:$0xff] %vm81, %v7057
  %7122 = vst.msk [vmem:[%s4 + $0x48] sm:$0xff] %vm81, %v7058
  %7123 = vst.msk [vmem:[%s4 + $0x50] sm:$0xff] %vm81, %v7059
  %7124 = vst.msk [vmem:[%s4 + $0x58] sm:$0xff] %vm81, %v7060
  %7125 = vst.msk [vmem:[%s4 + $0x60] sm:$0xff] %vm81, %v7061
  %7126 = vst.msk [vmem:[%s4 + $0x68] sm:$0xff] %vm81, %v7062
  %7127 = vst.msk [vmem:[%s4 + $0x70] sm:$0xff] %vm81, %v7063
  %7128 = vst.msk [vmem:[%s4 + $0x78] sm:$0xff] %vm81, %v7064
  %7129 = vst.msk [vmem:[%s4 + $0x80] sm:$0xff] %vm81, %v7065
  %7130 = vst.msk [vmem:[%s4 + $0x88] sm:$0xff] %vm81, %v7066
  %7131 = vst.msk [vmem:[%s4 + $0x90] sm:$0xff] %vm81, %v7067
  %7132 = vst.msk [vmem:[%s4 + $0x98] sm:$0xff] %vm81, %v7068
  %7133 = vst.msk [vmem:[%s4 + $0xa0] sm:$0xff] %vm81, %v7069
  %7134 = vst.msk [vmem:[%s4 + $0xa8] sm:$0xff] %vm81, %v7070
  %7135 = vst.msk [vmem:[%s4 + $0xb0] sm:$0xff] %vm81, %v7071
  %7136 = vst.msk [vmem:[%s4 + $0xb8] sm:$0xff] %vm81, %v7072
  %7137 = vst.msk [vmem:[%s4 + $0xc0] sm:$0xff] %vm81, %v7073
  %7138 = vst.msk [vmem:[%s4 + $0xc8] sm:$0xff] %vm81, %v7074
  %7139 = vst.msk [vmem:[%s4 + $0xd0] sm:$0xff] %vm81, %v7075
  %7140 = vst.msk [vmem:[%s4 + $0xd8] sm:$0xff] %vm81, %v7076
  %7141 = vst.msk [vmem:[%s4 + $0xe0] sm:$0xff] %vm81, %v7077
  %7142 = vst.msk [vmem:[%s4 + $0xe8] sm:$0xff] %vm81, %v7078
  %7143 = vst.msk [vmem:[%s4 + $0xf0] sm:$0xff] %vm81, %v7079
  %7144 = vst.msk [vmem:[%s4 + $0xf8] sm:$0xff] %vm81, %v7080
  %7145 = vst.msk [vmem:[%s4 + $0x100] sm:$0xff] %vm81, %v7081
  %7146 = vst.msk [vmem:[%s4 + $0x108] sm:$0xff] %vm81, %v7082
  %7147 = vst.msk [vmem:[%s4 + $0x110] sm:$0xff] %vm81, %v7083
  %7148 = vst.msk [vmem:[%s4 + $0x118] sm:$0xff] %vm81, %v7084
  %7149 = vst.msk [vmem:[%s4 + $0x120] sm:$0xff] %vm81, %v7085
  %7150 = vst.msk [vmem:[%s4 + $0x128] sm:$0xff] %vm81, %v7086
  %7151 = vst.msk [vmem:[%s4 + $0x130] sm:$0xff] %vm81, %v7087
  %7152 = vst.msk [vmem:[%s4 + $0x138] sm:$0xff] %vm81, %v7088
  %7153 = vst.msk [vmem:[%s4 + $0x140] sm:$0xff] %vm81, %v7089
  %7154 = vst.msk [vmem:[%s4 + $0x148] sm:$0xff] %vm81, %v7090
  %7155 = vst.msk [vmem:[%s4 + $0x150] sm:$0xff] %vm81, %v7091
  %7156 = vst.msk [vmem:[%s4 + $0x158] sm:$0xff] %vm81, %v7092
  %7157 = vst.msk [vmem:[%s4 + $0x160] sm:$0xff] %vm81, %v7093
  %7158 = vst.msk [vmem:[%s4 + $0x168] sm:$0xff] %vm81, %v7094
  %7159 = vst.msk [vmem:[%s4 + $0x170] sm:$0xff] %vm81, %v7095
  %7160 = vst.msk [vmem:[%s4 + $0x178] sm:$0xff] %vm81, %v7096
  %7161 = vst.msk [vmem:[%s4 + $0x180] sm:$0xff] %vm81, %v7097
  %7162 = vst.msk [vmem:[%s4 + $0x188] sm:$0xff] %vm81, %v7098
  %7163 = vst.msk [vmem:[%s4 + $0x190] sm:$0xff] %vm81, %v7099
  %7164 = vst.msk [vmem:[%s4 + $0x198] sm:$0xff] %vm81, %v7100
  %7165 = vst.msk [vmem:[%s4 + $0x1a0] sm:$0xff] %vm81, %v7101
  %7166 = vst.msk [vmem:[%s4 + $0x1a8] sm:$0xff] %vm81, %v7102
  %7167 = vst.msk [vmem:[%s4 + $0x1b0] sm:$0xff] %vm81, %v7103
  %7168 = vst.msk [vmem:[%s4 + $0x1b8] sm:$0xff] %vm81, %v7104
  %7169 = vst.msk [vmem:[%s4 + $0x1c0] sm:$0xff] %vm81, %v7105
  %7170 = vst.msk [vmem:[%s4 + $0x1c8] sm:$0xff] %vm81, %v7106
  %7171 = vst.msk [vmem:[%s4 + $0x1d0] sm:$0xff] %vm81, %v7107
  %7172 = vst.msk [vmem:[%s4 + $0x1d8] sm:$0xff] %vm81, %v7108
  %7173 = vst.msk [vmem:[%s4 + $0x1e0] sm:$0xff] %vm81, %v7109
  %7174 = vst.msk [vmem:[%s4 + $0x1e8] sm:$0xff] %vm81, %v7110
  %7175 = vst.msk [vmem:[%s4 + $0x1f0] sm:$0xff] %vm81, %v7111
  %7176 = vst.msk [vmem:[%s4 + $0x1f8] sm:$0xff] %vm81, %v7112
  // Predicated region
  $region18: #{tpu_custom_call.1} parent=0 // pred_check
    _
  $region19: #{tpu_custom_call.1} parent=0 // pred_check_branch
    %7178 = sbr.rel (0) target = $region21
  $region20: #{tpu_custom_call.1} parent=0 // pred_region
    _
  $region21: #{tpu_custom_call.1} parent=0 // pred_fallthru
    _
  // Predicated region
  $region22: #{tpu_custom_call.1} parent=0 // pred_check
    _
  $region23: #{tpu_custom_call.1} parent=0 // pred_check_branch
    %7180 = sbr.rel (0) target = $region25
  $region24: #{tpu_custom_call.1} parent=0 // pred_region
    _
  $region25: #{tpu_custom_call.1} parent=0 // pred_fallthru
    _

</llo_original>
